<compile_context>
chip_gen: v7x
topology: tpu7x:2x2x1
jax: 0.10.0
libtpu: 0.0.40
codegen_flags: <defaults>
</compile_context>

<pallas_src>
import functools

import jax
import jax.numpy as jnp
from jax.experimental import pallas as pl
from jax.experimental.pallas import tpu as pltpu

_INV_SQRT2 = 0.7071067811865476

# ----------------------- generation-aware VMEM / tile caps -------------------

try:
    _VMEM_PHYS = int(pltpu.get_tpu_info().vmem_capacity_bytes)
except Exception:                                    # unknown generation
    _VMEM_PHYS = 64 * 1024 * 1024                    # conservative (v7x-like)

# ~half of physical VMEM, clamped: 32 MiB on v7x (64 MiB phys), 64 MiB on
# v5e/v6e (128 MiB phys).
_VMEM_LIMIT = min(max(_VMEM_PHYS // 2, 32 * 1024 * 1024), 96 * 1024 * 1024)
_BIG_VMEM = _VMEM_LIMIT >= 64 * 1024 * 1024
_TM_CAP = 512 if _BIG_VMEM else 256
_TN_CAP = 1024 if _BIG_VMEM else 512
_TK_CAP = 512


def _plan_dim(dim, cap, align):
    """Pick (tile, padded_dim): tile <= cap, tile divides padded_dim >= dim.

    Prefers an aligned divisor of `dim` (no padding); if only tiny divisors
    exist, pads `dim` up to a multiple of the cap-aligned tile instead of
    silently using the full dimension (which can blow the VMEM budget)."""
    if dim <= cap:
        return dim, dim
    t = max((cap // align) * align, align)
    floor = max(align, t // 4)
    cand = t
    while cand >= floor:
        if dim % cand == 0:
            return cand, dim
        cand -= align
    return t, ((dim + t - 1) // t) * t


def _gelu(x):
    # Exact (erf-based) GELU, matching torch.nn.GELU default.
    return 0.5 * x * (1.0 + jax.lax.erf(x * _INV_SQRT2))


# --------------------- fused LayerNorm -> matmul kernel ----------------------

def _ln_mm_kernel(x_ref, g_ref, bln_ref, w_ref, b_ref, o_ref, h_ref, *, eps, act):
    # LayerNorm is computed once per row-tile (j == 0) and cached in VMEM;
    # all output-N tiles (j > 0) reuse the cached bf16 normalized block.
    @pl.when(pl.program_id(1) == 0)
    def _compute_ln():
        x = x_ref[...].astype(jnp.float32)
        mu = jnp.mean(x, axis=-1, keepdims=True)
        var = jnp.mean(jnp.square(x - mu), axis=-1, keepdims=True)
        xn = (x - mu) * jax.lax.rsqrt(var + eps)
        h_ref[...] = (xn * g_ref[...].astype(jnp.float32)
                      + bln_ref[...].astype(jnp.float32)).astype(jnp.bfloat16)

    y = jnp.dot(h_ref[...], w_ref[...].astype(jnp.bfloat16),
                preferred_element_type=jnp.float32)
    y = y + b_ref[...].astype(jnp.float32)
    if act == 'gelu':
        y = _gelu(y)
    o_ref[...] = y.astype(o_ref.dtype)


def ln_matmul_bias(x, gamma, beta, w, b, *, eps, act='none',
                   out_dtype=jnp.bfloat16):
    """act(LayerNorm(x) @ w + b).  LN stats in f32, MXU in bf16, full K per tile."""
    M, K = x.shape
    N = w.shape[1]
    tm, Mp = _plan_dim(M, _TM_CAP, 8)
    tn, Np = _plan_dim(N, _TN_CAP, 128)

    xp = x if Mp == M else jnp.pad(x, ((0, Mp - M), (0, 0)))
    wb = w.astype(jnp.bfloat16)
    bb = b.reshape(1, N)
    if Np != N:
        wb = jnp.pad(wb, ((0, 0), (0, Np - N)))
        bb = jnp.pad(bb, ((0, 0), (0, Np - N)))

    out = pl.pallas_call(
        functools.partial(_ln_mm_kernel, eps=eps, act=act),
        out_shape=jax.ShapeDtypeStruct((Mp, Np), out_dtype),
        grid=(Mp // tm, Np // tn),
        in_specs=[pl.BlockSpec((tm, K), lambda i, j: (i, 0)),
                  pl.BlockSpec((1, K), lambda i, j: (0, 0)),
                  pl.BlockSpec((1, K), lambda i, j: (0, 0)),
                  pl.BlockSpec((K, tn), lambda i, j: (0, j)),
                  pl.BlockSpec((1, tn), lambda i, j: (0, j))],
        out_specs=pl.BlockSpec((tm, tn), lambda i, j: (i, j)),
        scratch_shapes=[pltpu.VMEM((tm, K), jnp.bfloat16)],
        compiler_params=pltpu.CompilerParams(
            dimension_semantics=("parallel", "arbitrary"),
            vmem_limit_bytes=_VMEM_LIMIT),
    )(xp, gamma.reshape(1, K), beta.reshape(1, K), wb, bb)

    if (Mp, Np) != (M, N):
        out = out[:M, :N]
    return out


# ------------------ tiled matmul (+bias, +GELU, +residual) -------------------

def _mm_kernel(x_ref, w_ref, b_ref, o_ref, acc_ref, *, act):
    @pl.when(pl.program_id(2) == 0)
    def _init():
        acc_ref[...] = jnp.zeros_like(acc_ref)

    acc_ref[...] += jnp.dot(x_ref[...].astype(jnp.bfloat16),
                            w_ref[...].astype(jnp.bfloat16),
                            preferred_element_type=jnp.float32)

    @pl.when(pl.program_id(2) == pl.num_programs(2) - 1)
    def _fin():
        y = acc_ref[...] + b_ref[...].astype(jnp.float32)
        if act == 'gelu':
            y = _gelu(y)
        o_ref[...] = y.astype(o_ref.dtype)


def _mm_res_kernel(x_ref, w_ref, b_ref, r_ref, o_ref, acc_ref, *, act):
    @pl.when(pl.program_id(2) == 0)
    def _init():
        acc_ref[...] = jnp.zeros_like(acc_ref)

    acc_ref[...] += jnp.dot(x_ref[...].astype(jnp.bfloat16),
                            w_ref[...].astype(jnp.bfloat16),
                            preferred_element_type=jnp.float32)

    @pl.when(pl.program_id(2) == pl.num_programs(2) - 1)
    def _fin():
        y = acc_ref[...] + b_ref[...].astype(jnp.float32)
        if act == 'gelu':
            y = _gelu(y)
        y = y + r_ref[...].astype(jnp.float32)   # fused residual add epilogue
        o_ref[...] = y.astype(o_ref.dtype)


def matmul_bias(x, w, b, residual=None, act='none', out_dtype=jnp.bfloat16):
    """y = act(x @ w + b) [+ residual], tiled (M,N,K) grid, f32 accumulator."""
    M, K = x.shape
    N = w.shape[1]
    tm, Mp = _plan_dim(M, _TM_CAP, 8)
    tn, Np = _plan_dim(N, _TN_CAP, 128)
    tk, Kp = _plan_dim(K, _TK_CAP, 128)

    xb = x.astype(jnp.bfloat16)
    wb = w.astype(jnp.bfloat16)
    bb = b.reshape(1, N)
    if (Mp, Kp) != (M, K):
        xb = jnp.pad(xb, ((0, Mp - M), (0, Kp - K)))
    if (Kp, Np) != (K, N):
        wb = jnp.pad(wb, ((0, Kp - K), (0, Np - N)))
    if Np != N:
        bb = jnp.pad(bb, ((0, 0), (0, Np - N)))

    in_specs = [pl.BlockSpec((tm, tk), lambda i, j, k: (i, k)),
                pl.BlockSpec((tk, tn), lambda i, j, k: (k, j)),
                pl.BlockSpec((1, tn), lambda i, j, k: (0, j))]
    args = [xb, wb, bb]
    if residual is None:
        kernel = functools.partial(_mm_kernel, act=act)
    else:
        kernel = functools.partial(_mm_res_kernel, act=act)
        rb = residual
        if (Mp, Np) != (M, N):
            rb = jnp.pad(residual, ((0, Mp - M), (0, Np - N)))
        in_specs.append(pl.BlockSpec((tm, tn), lambda i, j, k: (i, j)))
        args.append(rb)

    out = pl.pallas_call(
        kernel,
        out_shape=jax.ShapeDtypeStruct((Mp, Np), out_dtype),
        grid=(Mp // tm, Np // tn, Kp // tk),
        in_specs=in_specs,
        out_specs=pl.BlockSpec((tm, tn), lambda i, j, k: (i, j)),
        scratch_shapes=[pltpu.VMEM((tm, tn), jnp.float32)],
        compiler_params=pltpu.CompilerParams(
            dimension_semantics=("parallel", "parallel", "arbitrary"),
            vmem_limit_bytes=_VMEM_LIMIT),
    )(*args)

    if (Mp, Np) != (M, N):
        out = out[:M, :N]
    return out


# ------------------------------ LayerNorm ------------------------------------

def _ln_kernel(x_ref, g_ref, b_ref, o_ref, *, eps):
    x = x_ref[...].astype(jnp.float32)
    mu = jnp.mean(x, axis=-1, keepdims=True)
    var = jnp.mean(jnp.square(x - mu), axis=-1, keepdims=True)
    xn = (x - mu) * jax.lax.rsqrt(var + eps)
    o_ref[...] = (xn * g_ref[...].astype(jnp.float32)
                  + b_ref[...].astype(jnp.float32)).astype(o_ref.dtype)


def layernorm(x2d, gamma, beta, eps, out_dtype=jnp.bfloat16):
    M, D = x2d.shape
    tm, Mp = _plan_dim(M, _TM_CAP, 8)
    xp = x2d if Mp == M else jnp.pad(x2d, ((0, Mp - M), (0, 0)))
    out = pl.pallas_call(
        functools.partial(_ln_kernel, eps=eps),
        out_shape=jax.ShapeDtypeStruct((Mp, D), out_dtype),
        grid=(Mp // tm,),
        in_specs=[pl.BlockSpec((tm, D), lambda i: (i, 0)),
                  pl.BlockSpec((1, D), lambda i: (0, 0)),
                  pl.BlockSpec((1, D), lambda i: (0, 0))],
        out_specs=pl.BlockSpec((tm, D), lambda i: (i, 0)),
        compiler_params=pltpu.CompilerParams(
            dimension_semantics=("parallel",),
            vmem_limit_bytes=_VMEM_LIMIT),
    )(xp, gamma.reshape(1, D), beta.reshape(1, D))
    return out if Mp == M else out[:M]


# ------------------------------ attention ------------------------------------

def _attn_kernel(qkv_ref, o_ref, *, num_heads, head_dim, scale):
    """One batch element per grid step.  q/k/v are read per head directly out
    of the fused (N, 3D) QKV activation (no XLA reshape/transpose needed) and
    the per-head outputs are written back in (N, D) layout, exactly as the
    following projection matmul consumes them.  Only one head's (N, N) score
    tile is live at any time."""
    D = num_heads * head_dim
    outs = []
    for h in range(num_heads):
        q = qkv_ref[0, :, h * head_dim:(h + 1) * head_dim].astype(jnp.bfloat16)
        k = qkv_ref[0, :, D + h * head_dim:D + (h + 1) * head_dim].astype(jnp.bfloat16)
        v = qkv_ref[0, :, 2 * D + h * head_dim:2 * D + (h + 1) * head_dim].astype(jnp.bfloat16)
        s = jnp.dot(q, k.T, preferred_element_type=jnp.float32) * scale
        s = s - jnp.max(s, axis=-1, keepdims=True)           # stable softmax (f32)
        p = jnp.exp(s)
        p = p * pl.reciprocal(jnp.sum(p, axis=-1, keepdims=True), approx=True)
        o = jnp.dot(p.astype(jnp.bfloat16), v, preferred_element_type=jnp.float32)
        outs.append(o.astype(o_ref.dtype))
    o_ref[0] = jnp.concatenate(outs, axis=-1)                # one dense (N, D) store
    # TODO(synk): for very long sequences add a kv-tiled flash-style online
    # softmax (grid=(B, H, kv_tiles)) to further bound VMEM on v7x.


def attention(qkv3d, num_heads, head_dim, out_dtype=jnp.bfloat16):
    """qkv3d: (B, N, 3D) fused QKV activation -> (B, N, D) attention output."""
    B, N, threeD = qkv3d.shape
    D = num_heads * head_dim
    scale = head_dim ** -0.5
    return pl.pallas_call(
        functools.partial(_attn_kernel, num_heads=num_heads,
                          head_dim=head_dim, scale=scale),
        out_shape=jax.ShapeDtypeStruct((B, N, D), out_dtype),
        grid=(B,),
        in_specs=[pl.BlockSpec((1, N, threeD), lambda b: (b, 0, 0))],
        out_specs=pl.BlockSpec((1, N, D), lambda b: (b, 0, 0)),
        compiler_params=pltpu.CompilerParams(
            dimension_semantics=("parallel",),
            vmem_limit_bytes=_VMEM_LIMIT),
    )(qkv3d)


# ------------------------------ model (glue) ---------------------------------

def mutable_pos_embed(pos_embed, f_dim, total_dim):
    """Faithful port of ASTModel.get_mutable_pos_embedding (pure indexing)."""
    time_dim = total_dim // f_dim
    pieces = [pos_embed[:, :2, :]]
    for f in range(f_dim):
        pieces.append(pos_embed[:, 2 + f * time_dim: 2 + (f + 1) * time_dim, :])
    return jnp.concatenate(pieces, axis=1)


def block_forward(p, x2d, B, N, num_heads):
    """One timm-0.4.5 ViT block: x += Attn(LN(x)); x += MLP(LN(x)).  x2d is bf16."""
    D = x2d.shape[1]
    hd = D // num_heads

    # LN1 -> QKV (fused kernel, LN cached across N tiles).
    qkv = ln_matmul_bias(x2d, p['ln1_g'], p['ln1_b'], p['qkv_w'], p['qkv_b'],
                         eps=1e-6)                                   # (B*N, 3D) bf16
    # Attention reads head slices directly from the QKV activation and writes
    # (B, N, D); no XLA transposes in or out.
    attn = attention(qkv.reshape(B, N, 3 * D), num_heads, hd)        # (B, N, D) bf16
    # attn projection + bias + residual (fused epilogue)
    x2d = matmul_bias(attn.reshape(B * N, D), p['proj_w'], p['proj_b'],
                      residual=x2d)

    # LN2 -> fc1 + GELU (fused), then fc2 + residual (fused epilogue)
    h = ln_matmul_bias(x2d, p['ln2_g'], p['ln2_b'], p['fc1_w'], p['fc1_b'],
                       eps=1e-6, act='gelu')
    x2d = matmul_bias(h, p['fc2_w'], p['fc2_b'], residual=x2d)
    return x2d


def ast_forward(params, x, cfg):
    """x: (B, time_frames, freq_bins) -> output dict, mirroring ASTModel.forward."""
    B, T, F = x.shape
    P = cfg['patch_size']
    fs, ts = cfg['fstride'], cfg['tstride']
    D = cfg['embed_dim']

    # x.unsqueeze(1).transpose(2, 3) -> (B, 1, F, T); drop the channel dim.
    x_img = jnp.transpose(x, (0, 2, 1))                              # (B, F, T)
    f_dim = (F - P) // fs + 1
    t_dim = (T - P) // ts + 1
    num_patches = f_dim * t_dim

    # Patch extraction matching Conv2d(kernel=16, stride=(fs,ts)).flatten(2).T
    if fs == P and ts == P and F % P == 0 and T % P == 0:
        # Non-overlapping strides: a single reshape/transpose (no slice loop).
        patches = (x_img.reshape(B, f_dim, P, t_dim, P)
                   .transpose(0, 1, 3, 2, 4)
                   .reshape(B, num_patches, P * P))
    else:
        # TODO(synk): overlapping strides use an XLA patch-extraction helper.
        pat = jax.lax.conv_general_dilated_patches(
            x_img[:, None, :, :], filter_shape=(P, P),
            window_strides=(fs, ts), padding='VALID')                # (B,P*P,f,t)
        patches = pat.reshape(B, P * P, num_patches).transpose(0, 2, 1)

    emb = matmul_bias(patches.reshape(B * num_patches, P * P),
                      params['proj_w'], params['proj_b']
                      ).reshape(B, num_patches, D)                   # bf16

    cls = jnp.broadcast_to(params['cls_token'], (B, 1, D))
    dist = jnp.broadcast_to(params['dist_token'], (B, 1, D))
    pos = mutable_pos_embed(params['pos_embed'], cfg['f_dim'], num_patches)
    # pos-embed add folded into plain jnp (fused by XLA with the concat);
    # pos_drop / drop_path: Dropout at inference -> identity.
    tok = jnp.concatenate([cls, dist, emb.astype(jnp.float32)], axis=1) + pos
    tok = tok.astype(jnp.bfloat16)                                   # (B, N, D)
    N = num_patches + 2

    output = {}
    x2d = tok.reshape(B * N, D)
    for k_i, blk in enumerate(params['blocks']):
        x2d = block_forward(blk, x2d, B, N, cfg['num_heads'])
        output['layer{}_out'.format(k_i + 1)] = jnp.transpose(
            x2d.reshape(B, N, D), (0, 2, 1)).astype(jnp.float32)

    xn = layernorm(x2d, params['norm_g'], params['norm_b'], eps=1e-6,
                   out_dtype=jnp.float32).reshape(B, N, D)

    g = (xn[:, 0, :] + xn[:, 1, :]) * 0.5                            # (B, D) f32
    # mlp_head = LayerNorm(eps=1e-5) -> Linear, fused into one kernel.
    g = ln_matmul_bias(g, params['head_ln_g'], params['head_ln_b'],
                       params['head_w'], params['head_b'], eps=1e-5,
                       out_dtype=jnp.float32)

    output['globals'] = g
    output['frame'] = jnp.transpose(xn, (0, 2, 1))
    output['t_dim'] = t_dim
    output['f_dim'] = cfg['f_dim']
    return output


# ----------------------------- parameter init --------------------------------

def init_params(key, cfg, num_patches):
    D = cfg['embed_dim']
    hidden = D * cfg['mlp_ratio']
    patch_area = cfg['patch_size'] * cfg['patch_size']
    label_dim = cfg['label_dim']
    depth = cfg['depth']
    keys = jax.random.split(key, 8 + depth)

    def nrm(k, shape, dtype=jnp.float32):
        return (0.02 * jax.random.normal(k, shape, dtype=jnp.float32)).astype(dtype)

    bf16 = jnp.bfloat16   # matmul weights kept in bf16 (MXU fast path, f32 accum)
    params = {
        'proj_w': nrm(keys[0], (patch_area, D), bf16),   # flattened Conv2d(1,D,16,16)
        'proj_b': nrm(keys[1], (D,)),
        'cls_token': nrm(keys[2], (1, 1, D)),
        'dist_token': nrm(keys[3], (1, 1, D)),
        'pos_embed': nrm(keys[4], (1, num_patches + 2, D)),
        'norm_g': jnp.ones((D,), jnp.float32),
        'norm_b': jnp.zeros((D,), jnp.float32),
        'head_ln_g': jnp.ones((D,), jnp.float32),
        'head_ln_b': jnp.zeros((D,), jnp.float32),
        'head_w': nrm(keys[5], (D, label_dim), bf16),
        'head_b': nrm(keys[6], (label_dim,)),
        'blocks': [],
    }
    for i in range(depth):
        bk = jax.random.split(keys[7 + i], 8)
        params['blocks'].append({
            'ln1_g': jnp.ones((D,), jnp.float32), 'ln1_b': jnp.zeros((D,), jnp.float32),
            'qkv_w': nrm(bk[0], (D, 3 * D), bf16), 'qkv_b': nrm(bk[1], (3 * D,)),
            'proj_w': nrm(bk[2], (D, D), bf16), 'proj_b': nrm(bk[3], (D,)),
            'ln2_g': jnp.ones((D,), jnp.float32), 'ln2_b': jnp.zeros((D,), jnp.float32),
            'fc1_w': nrm(bk[4], (D, hidden), bf16), 'fc1_b': nrm(bk[5], (hidden,)),
            'fc2_w': nrm(bk[6], (hidden, D), bf16), 'fc2_b': nrm(bk[7], (D,)),
        })
    return params


# ---------------------------------- main --------------------------------------

if __name__ == "__main__":
    # Small synthetic AST configuration (ViT depth/width scaled down).
    cfg = dict(
        patch_size=16, fstride=16, tstride=16,
        input_fdim=32, input_tdim=64,
        embed_dim=64, num_heads=4, depth=2, mlp_ratio=4,
        label_dim=8,
    )
    f_dim = (cfg['input_fdim'] - cfg['patch_size']) // cfg['fstride'] + 1   # 2
    t_dim = (cfg['input_tdim'] - cfg['patch_size']) // cfg['tstride'] + 1   # 4
    cfg['f_dim'], cfg['t_dim'] = f_dim, t_dim
    num_patches = f_dim * t_dim                                             # 8

    key = jax.random.PRNGKey(0)
    k_param, k_input = jax.random.split(key)
    params = init_params(k_param, cfg, num_patches)

    B = 2
    # Input spectrogram: (batch, time_frames, freq_bins)
    x = jax.random.normal(k_input, (B, cfg['input_tdim'], cfg['input_fdim']),
                          dtype=jnp.float32)

    forward = jax.jit(functools.partial(ast_forward, cfg=cfg))
    out = forward(params, x)

    jax.block_until_ready(out['globals'])
    jax.block_until_ready(out['frame'])
    for k in range(cfg['depth']):
        jax.block_until_ready(out['layer{}_out'.format(k + 1)])

    assert out['globals'].shape == (B, cfg['label_dim'])
    assert out['frame'].shape == (B, cfg['embed_dim'], num_patches + 2)
    assert out['layer1_out'].shape == (B, cfg['embed_dim'], num_patches + 2)
    assert bool(out['t_dim'] == t_dim) and bool(out['f_dim'] == f_dim)
    assert bool(jnp.all(jnp.isfinite(out['globals'])))
    assert bool(jnp.all(jnp.isfinite(out['frame'])))

    print("KERNEL_OK")
</pallas_src>

<mosaic_0001>
module attributes {stable_mosaic.version = 11 : i64} {
  func.func @_mm_kernel(%arg0: i32, %arg1: i32, %arg2: i32, %arg3: memref<16x256xbf16, #tpu.memory_space<vmem>>, %arg4: memref<256x64xbf16, #tpu.memory_space<vmem>>, %arg5: memref<1x64xf32, #tpu.memory_space<vmem>>, %arg6: memref<16x64xbf16, #tpu.memory_space<vmem>>, %arg7: memref<16x64xf32, #tpu.memory_space<vmem>>) attributes {dimension_semantics = [#tpu.dimension_semantics<parallel>, #tpu.dimension_semantics<parallel>, #tpu.dimension_semantics<arbitrary>], iteration_bounds = array<i64: 1, 1, 1>, scalar_prefetch = 0 : i64, scratch_operands = 1 : i64, tpu.core_type = #tpu.core_type<tc>, window_params = [{transform_indices = @transform_0, window_bounds = array<i64: 16, 256>}, {transform_indices = @transform_1, window_bounds = array<i64: 256, 64>}, {transform_indices = @transform_2, window_bounds = array<i64: 1, 64>}, {transform_indices = @transform_3, window_bounds = array<i64: 16, 64>}]} {
    %c0_i32 = arith.constant 0 : i32
    %0 = arith.cmpi eq, %arg2, %c0_i32 : i32
    %1 = arith.extui %0 : i1 to i32
    %c0_i32_0 = arith.constant 0 : i32
    %2 = arith.cmpi ne, %1, %c0_i32_0 : i32
    scf.if %2 {
      %cst_10 = arith.constant 0.000000e+00 : f32
      %12 = vector.broadcast %cst_10 : f32 to vector<16x64xf32>
      %c0_11 = arith.constant 0 : index
      %c0_12 = arith.constant 0 : index
      %13 = vector.load %arg7[%c0_11, %c0_12] : memref<16x64xf32, #tpu.memory_space<vmem>>, vector<16x64xf32>
      tpu.vector_store %arg7[%c0_11, %c0_12], %12 {strides = array<i32>} : memref<16x64xf32, #tpu.memory_space<vmem>>, vector<16x64xf32>,
    } else {
    }
    %c0 = arith.constant 0 : index
    %c0_1 = arith.constant 0 : index
    %3 = vector.load %arg7[%c0, %c0_1] : memref<16x64xf32, #tpu.memory_space<vmem>>, vector<16x64xf32>
    %c0_2 = arith.constant 0 : index
    %c0_3 = arith.constant 0 : index
    %4 = vector.load %arg3[%c0_2, %c0_3] : memref<16x256xbf16, #tpu.memory_space<vmem>>, vector<16x256xbf16>
    %c0_4 = arith.constant 0 : index
    %c0_5 = arith.constant 0 : index
    %5 = vector.load %arg4[%c0_4, %c0_5] : memref<256x64xbf16, #tpu.memory_space<vmem>>, vector<256x64xbf16>
    %cst = arith.constant dense<0.000000e+00> : vector<16x64xf32>
    %6 = tpu.matmul %4, %5, %cst {dimension_numbers = #tpu.dot_dimension_numbers<[1], [0], [0], [1], [0, 0, 1, 1], [], []>} : vector<16x256xbf16>, vector<256x64xbf16>, vector<16x64xf32> -> vector<16x64xf32>
    %7 = arith.addf %3, %6 : vector<16x64xf32>
    %c0_6 = arith.constant 0 : index
    %c0_7 = arith.constant 0 : index
    %8 = vector.load %arg7[%c0_6, %c0_7] : memref<16x64xf32, #tpu.memory_space<vmem>>, vector<16x64xf32>
    tpu.vector_store %arg7[%c0_6, %c0_7], %7 {strides = array<i32>} : memref<16x64xf32, #tpu.memory_space<vmem>>, vector<16x64xf32>,
    %c0_i32_8 = arith.constant 0 : i32
    %9 = arith.cmpi eq, %arg2, %c0_i32_8 : i32
    %10 = arith.extui %9 : i1 to i32
    %c0_i32_9 = arith.constant 0 : i32
    %11 = arith.cmpi ne, %10, %c0_i32_9 : i32
    scf.if %11 {
      %c0_10 = arith.constant 0 : index
      %c0_11 = arith.constant 0 : index
      %12 = vector.load %arg7[%c0_10, %c0_11] : memref<16x64xf32, #tpu.memory_space<vmem>>, vector<16x64xf32>
      %c0_12 = arith.constant 0 : index
      %c0_13 = arith.constant 0 : index
      %13 = vector.load %arg5[%c0_12, %c0_13] : memref<1x64xf32, #tpu.memory_space<vmem>>, vector<1x64xf32>
      %14 = vector.broadcast %13 : vector<1x64xf32> to vector<16x64xf32>
      %15 = arith.addf %12, %14 : vector<16x64xf32>
      %16 = arith.truncf %15 : vector<16x64xf32> to vector<16x64xbf16>
      %c0_14 = arith.constant 0 : index
      %c0_15 = arith.constant 0 : index
      %17 = vector.load %arg6[%c0_14, %c0_15] : memref<16x64xbf16, #tpu.memory_space<vmem>>, vector<16x64xbf16>
      tpu.vector_store %arg6[%c0_14, %c0_15], %16 {strides = array<i32>} : memref<16x64xbf16, #tpu.memory_space<vmem>>, vector<16x64xbf16>,
    } else {
    }
    return
  }
  func.func @transform_0(%arg0: i32, %arg1: i32, %arg2: i32) -> (i32, i32) {
    %c0_i32 = arith.constant 0 : i32
    return %arg0, %arg2 : i32, i32
  }
  func.func @transform_1(%arg0: i32, %arg1: i32, %arg2: i32) -> (i32, i32) {
    %c0_i32 = arith.constant 0 : i32
    return %arg2, %arg1 : i32, i32
  }
  func.func @transform_2(%arg0: i32, %arg1: i32, %arg2: i32) -> (i32, i32) {
    %c0_i32 = arith.constant 0 : i32
    %c0_i32_0 = arith.constant 0 : i32
    return %c0_i32, %arg1 : i32, i32
  }
  func.func @transform_3(%arg0: i32, %arg1: i32, %arg2: i32) -> (i32, i32) {
    %c0_i32 = arith.constant 0 : i32
    return %arg0, %arg1 : i32, i32
  }
}

module attributes {stable_mosaic.version = 11 : i64} {
  func.func @_ln_mm_kernel(%arg0: i32, %arg1: i32, %arg2: memref<20x64xbf16, #tpu.memory_space<vmem>>, %arg3: memref<1x64xf32, #tpu.memory_space<vmem>>, %arg4: memref<1x64xf32, #tpu.memory_space<vmem>>, %arg5: memref<64x192xbf16, #tpu.memory_space<vmem>>, %arg6: memref<1x192xf32, #tpu.memory_space<vmem>>, %arg7: memref<20x192xbf16, #tpu.memory_space<vmem>>, %arg8: memref<20x64xbf16, #tpu.memory_space<vmem>>) attributes {dimension_semantics = [#tpu.dimension_semantics<parallel>, #tpu.dimension_semantics<arbitrary>], iteration_bounds = array<i64: 1, 1>, scalar_prefetch = 0 : i64, scratch_operands = 1 : i64, tpu.core_type = #tpu.core_type<tc>, window_params = [{transform_indices = @transform_0, window_bounds = array<i64: 20, 64>}, {pipeline_mode = #tpu.pipeline_mode<synchronous>, transform_indices = @transform_1, window_bounds = array<i64: 1, 64>}, {pipeline_mode = #tpu.pipeline_mode<synchronous>, transform_indices = @transform_2, window_bounds = array<i64: 1, 64>}, {transform_indices = @transform_3, window_bounds = array<i64: 64, 192>}, {transform_indices = @transform_4, window_bounds = array<i64: 1, 192>}, {transform_indices = @transform_5, window_bounds = array<i64: 20, 192>}]} {
    %c0_i32 = arith.constant 0 : i32
    %0 = arith.cmpi eq, %arg1, %c0_i32 : i32
    %1 = arith.extui %0 : i1 to i32
    %c0_i32_0 = arith.constant 0 : i32
    %2 = arith.cmpi ne, %1, %c0_i32_0 : i32
    scf.if %2 {
      %c0_8 = arith.constant 0 : index
      %c0_9 = arith.constant 0 : index
      %11 = vector.load %arg2[%c0_8, %c0_9] : memref<20x64xbf16, #tpu.memory_space<vmem>>, vector<20x64xbf16>
      %12 = arith.extf %11 : vector<20x64xbf16> to vector<20x64xf32>
      %cst_10 = arith.constant dense<0.000000e+00> : vector<20xf32>
      %13 = vector.multi_reduction <add>, %12, %cst_10 [1] : vector<20x64xf32> to vector<20xf32>
      %14 = vector.shape_cast %13 : vector<20xf32> to vector<20x1xf32>
      %cst_11 = arith.constant 6.400000e+01 : f32
      %15 = vector.broadcast %cst_11 : f32 to vector<20x1xf32>
      %16 = arith.divf %14, %15 : vector<20x1xf32>
      %17 = vector.broadcast %16 : vector<20x1xf32> to vector<20x64xf32>
      %18 = arith.subf %12, %17 : vector<20x64xf32>
      %19 = arith.mulf %18, %18 : vector<20x64xf32>
      %cst_12 = arith.constant dense<0.000000e+00> : vector<20xf32>
      %20 = vector.multi_reduction <add>, %19, %cst_12 [1] : vector<20x64xf32> to vector<20xf32>
      %21 = vector.shape_cast %20 : vector<20xf32> to vector<20x1xf32>
      %cst_13 = arith.constant 6.400000e+01 : f32
      %22 = vector.broadcast %cst_13 : f32 to vector<20x1xf32>
      %23 = arith.divf %21, %22 : vector<20x1xf32>
      %24 = vector.broadcast %16 : vector<20x1xf32> to vector<20x64xf32>
      %25 = arith.subf %12, %24 : vector<20x64xf32>
      %cst_14 = arith.constant 9.99999997E-7 : f32
      %26 = vector.broadcast %cst_14 : f32 to vector<20x1xf32>
      %27 = arith.addf %23, %26 : vector<20x1xf32>
      %28 = math.rsqrt %27 : vector<20x1xf32>
      %29 = vector.broadcast %28 : vector<20x1xf32> to vector<20x64xf32>
      %30 = arith.mulf %25, %29 : vector<20x64xf32>
      %c0_15 = arith.constant 0 : index
      %c0_16 = arith.constant 0 : index
      %31 = vector.load %arg3[%c0_15, %c0_16] : memref<1x64xf32, #tpu.memory_space<vmem>>, vector<1x64xf32>
      %32 = vector.broadcast %31 : vector<1x64xf32> to vector<20x64xf32>
      %33 = arith.mulf %30, %32 : vector<20x64xf32>
      %c0_17 = arith.constant 0 : index
      %c0_18 = arith.constant 0 : index
      %34 = vector.load %arg4[%c0_17, %c0_18] : memref<1x64xf32, #tpu.memory_space<vmem>>, vector<1x64xf32>
      %35 = vector.broadcast %34 : vector<1x64xf32> to vector<20x64xf32>
      %36 = arith.addf %33, %35 : vector<20x64xf32>
      %37 = arith.truncf %36 : vector<20x64xf32> to vector<20x64xbf16>
      %c0_19 = arith.constant 0 : index
      %c0_20 = arith.constant 0 : index
      %38 = vector.load %arg8[%c0_19, %c0_20] : memref<20x64xbf16, #tpu.memory_space<vmem>>, vector<20x64xbf16>
      tpu.vector_store %arg8[%c0_19, %c0_20], %37 {strides = array<i32>} : memref<20x64xbf16, #tpu.memory_space<vmem>>, vector<20x64xbf16>,
    } else {
    }
    %c0 = arith.constant 0 : index
    %c0_1 = arith.constant 0 : index
    %3 = vector.load %arg8[%c0, %c0_1] : memref<20x64xbf16, #tpu.memory_space<vmem>>, vector<20x64xbf16>
    %c0_2 = arith.constant 0 : index
    %c0_3 = arith.constant 0 : index
    %4 = vector.load %arg5[%c0_2, %c0_3] : memref<64x192xbf16, #tpu.memory_space<vmem>>, vector<64x192xbf16>
    %cst = arith.constant dense<0.000000e+00> : vector<20x192xf32>
    %5 = tpu.matmul %3, %4, %cst {dimension_numbers = #tpu.dot_dimension_numbers<[1], [0], [0], [1], [0, 0, 1, 1], [], []>} : vector<20x64xbf16>, vector<64x192xbf16>, vector<20x192xf32> -> vector<20x192xf32>
    %c0_4 = arith.constant 0 : index
    %c0_5 = arith.constant 0 : index
    %6 = vector.load %arg6[%c0_4, %c0_5] : memref<1x192xf32, #tpu.memory_space<vmem>>, vector<1x192xf32>
    %7 = vector.broadcast %6 : vector<1x192xf32> to vector<20x192xf32>
    %8 = arith.addf %5, %7 : vector<20x192xf32>
    %9 = arith.truncf %8 : vector<20x192xf32> to vector<20x192xbf16>
    %c0_6 = arith.constant 0 : index
    %c0_7 = arith.constant 0 : index
    %10 = vector.load %arg7[%c0_6, %c0_7] : memref<20x192xbf16, #tpu.memory_space<vmem>>, vector<20x192xbf16>
    tpu.vector_store %arg7[%c0_6, %c0_7], %9 {strides = array<i32>} : memref<20x192xbf16, #tpu.memory_space<vmem>>, vector<20x192xbf16>,
    return
  }
  func.func @transform_0(%arg0: i32, %arg1: i32) -> (i32, i32) {
    %c0_i32 = arith.constant 0 : i32
    %c0_i32_0 = arith.constant 0 : i32
    return %arg0, %c0_i32 : i32, i32
  }
  func.func @transform_1(%arg0: i32, %arg1: i32) -> (i32, i32) {
    %c0_i32 = arith.constant 0 : i32
    %c0_i32_0 = arith.constant 0 : i32
    %c0_i32_1 = arith.constant 0 : i32
    return %c0_i32, %c0_i32_0 : i32, i32
  }
  func.func @transform_2(%arg0: i32, %arg1: i32) -> (i32, i32) {
    %c0_i32 = arith.constant 0 : i32
    %c0_i32_0 = arith.constant 0 : i32
    %c0_i32_1 = arith.constant 0 : i32
    return %c0_i32, %c0_i32_0 : i32, i32
  }
  func.func @transform_3(%arg0: i32, %arg1: i32) -> (i32, i32) {
    %c0_i32 = arith.constant 0 : i32
    %c0_i32_0 = arith.constant 0 : i32
    return %c0_i32, %arg1 : i32, i32
  }
  func.func @transform_4(%arg0: i32, %arg1: i32) -> (i32, i32) {
    %c0_i32 = arith.constant 0 : i32
    %c0_i32_0 = arith.constant 0 : i32
    return %c0_i32, %arg1 : i32, i32
  }
  func.func @transform_5(%arg0: i32, %arg1: i32) -> (i32, i32) {
    %c0_i32 = arith.constant 0 : i32
    return %arg0, %arg1 : i32, i32
  }
}

module attributes {stable_mosaic.version = 11 : i64} {
  func.func @_attn_kernel(%arg0: i32, %arg1: memref<1x10x192xbf16, #tpu.memory_space<vmem>>, %arg2: memref<1x10x64xbf16, #tpu.memory_space<vmem>>) attributes {dimension_semantics = [#tpu.dimension_semantics<parallel>], iteration_bounds = array<i64: 2>, scalar_prefetch = 0 : i64, scratch_operands = 0 : i64, tpu.core_type = #tpu.core_type<tc>, window_params = [{transform_indices = @transform_0, window_bounds = array<i64: 1, 10, 192>}, {transform_indices = @transform_1, window_bounds = array<i64: 1, 10, 64>}]} {
    %c0 = arith.constant 0 : index
    %c0_0 = arith.constant 0 : index
    %c0_1 = arith.constant 0 : index
    %0 = vector.load %arg1[%c0, %c0_0, %c0_1] : memref<1x10x192xbf16, #tpu.memory_space<vmem>>, vector<1x10x16xbf16>
    %1 = vector.shape_cast %0 : vector<1x10x16xbf16> to vector<10x16xbf16>
    %c0_2 = arith.constant 0 : index
    %c0_3 = arith.constant 0 : index
    %c64 = arith.constant 64 : index
    %2 = vector.load %arg1[%c0_2, %c0_3, %c64] : memref<1x10x192xbf16, #tpu.memory_space<vmem>>, vector<1x10x16xbf16>
    %3 = vector.shape_cast %2 : vector<1x10x16xbf16> to vector<10x16xbf16>
    %c0_4 = arith.constant 0 : index
    %c0_5 = arith.constant 0 : index
    %c128 = arith.constant 128 : index
    %4 = vector.load %arg1[%c0_4, %c0_5, %c128] : memref<1x10x192xbf16, #tpu.memory_space<vmem>>, vector<1x10x16xbf16>
    %5 = vector.shape_cast %4 : vector<1x10x16xbf16> to vector<10x16xbf16>
    %6 = tpu.transpose %3, [1, 0] : vector<10x16xbf16> -> vector<16x10xbf16>
    %cst = arith.constant dense<0.000000e+00> : vector<10x10xf32>
    %7 = tpu.matmul %1, %6, %cst {dimension_numbers = #tpu.dot_dimension_numbers<[1], [0], [0], [1], [0, 0, 1, 1], [], []>} : vector<10x16xbf16>, vector<16x10xbf16>, vector<10x10xf32> -> vector<10x10xf32>
    %cst_6 = arith.constant 2.500000e-01 : f32
    %8 = vector.broadcast %cst_6 : f32 to vector<10x10xf32>
    %9 = arith.mulf %7, %8 : vector<10x10xf32>
    %cst_7 = arith.constant dense<0xFF800000> : vector<10xf32>
    %10 = vector.multi_reduction <maximumf>, %9, %cst_7 [1] : vector<10x10xf32> to vector<10xf32>
    %11 = vector.shape_cast %10 : vector<10xf32> to vector<10x1xf32>
    %12 = vector.broadcast %11 : vector<10x1xf32> to vector<10x10xf32>
    %13 = arith.subf %9, %12 : vector<10x10xf32>
    %14 = math.exp %13 : vector<10x10xf32>
    %cst_8 = arith.constant dense<0.000000e+00> : vector<10xf32>
    %15 = vector.multi_reduction <add>, %14, %cst_8 [1] : vector<10x10xf32> to vector<10xf32>
    %16 = vector.shape_cast %15 : vector<10xf32> to vector<10x1xf32>
    %17 = tpu.reciprocal %16 {approx = true} : vector<10x1xf32> -> vector<10x1xf32>
    %18 = vector.broadcast %17 : vector<10x1xf32> to vector<10x10xf32>
    %19 = arith.mulf %14, %18 : vector<10x10xf32>
    %20 = arith.truncf %19 : vector<10x10xf32> to vector<10x10xbf16>
    %cst_9 = arith.constant dense<0.000000e+00> : vector<10x16xf32>
    %21 = tpu.matmul %20, %5, %cst_9 {dimension_numbers = #tpu.dot_dimension_numbers<[1], [0], [0], [1], [0, 0, 1, 1], [], []>} : vector<10x10xbf16>, vector<10x16xbf16>, vector<10x16xf32> -> vector<10x16xf32>
    %22 = arith.truncf %21 : vector<10x16xf32> to vector<10x16xbf16>
    %c0_10 = arith.constant 0 : index
    %c0_11 = arith.constant 0 : index
    %c16 = arith.constant 16 : index
    %23 = vector.load %arg1[%c0_10, %c0_11, %c16] : memref<1x10x192xbf16, #tpu.memory_space<vmem>>, vector<1x10x16xbf16>
    %24 = vector.shape_cast %23 : vector<1x10x16xbf16> to vector<10x16xbf16>
    %c0_12 = arith.constant 0 : index
    %c0_13 = arith.constant 0 : index
    %c80 = arith.constant 80 : index
    %25 = vector.load %arg1[%c0_12, %c0_13, %c80] : memref<1x10x192xbf16, #tpu.memory_space<vmem>>, vector<1x10x16xbf16>
    %26 = vector.shape_cast %25 : vector<1x10x16xbf16> to vector<10x16xbf16>
    %c0_14 = arith.constant 0 : index
    %c0_15 = arith.constant 0 : index
    %c144 = arith.constant 144 : index
    %27 = vector.load %arg1[%c0_14, %c0_15, %c144] : memref<1x10x192xbf16, #tpu.memory_space<vmem>>, vector<1x10x16xbf16>
    %28 = vector.shape_cast %27 : vector<1x10x16xbf16> to vector<10x16xbf16>
    %29 = tpu.transpose %26, [1, 0] : vector<10x16xbf16> -> vector<16x10xbf16>
    %cst_16 = arith.constant dense<0.000000e+00> : vector<10x10xf32>
    %30 = tpu.matmul %24, %29, %cst_16 {dimension_numbers = #tpu.dot_dimension_numbers<[1], [0], [0], [1], [0, 0, 1, 1], [], []>} : vector<10x16xbf16>, vector<16x10xbf16>, vector<10x10xf32> -> vector<10x10xf32>
    %cst_17 = arith.constant 2.500000e-01 : f32
    %31 = vector.broadcast %cst_17 : f32 to vector<10x10xf32>
    %32 = arith.mulf %30, %31 : vector<10x10xf32>
    %cst_18 = arith.constant dense<0xFF800000> : vector<10xf32>
    %33 = vector.multi_reduction <maximumf>, %32, %cst_18 [1] : vector<10x10xf32> to vector<10xf32>
    %34 = vector.shape_cast %33 : vector<10xf32> to vector<10x1xf32>
    %35 = vector.broadcast %34 : vector<10x1xf32> to vector<10x10xf32>
    %36 = arith.subf %32, %35 : vector<10x10xf32>
    %37 = math.exp %36 : vector<10x10xf32>
    %cst_19 = arith.constant dense<0.000000e+00> : vector<10xf32>
    %38 = vector.multi_reduction <add>, %37, %cst_19 [1] : vector<10x10xf32> to vector<10xf32>
    %39 = vector.shape_cast %38 : vector<10xf32> to vector<10x1xf32>
    %40 = tpu.reciprocal %39 {approx = true} : vector<10x1xf32> -> vector<10x1xf32>
    %41 = vector.broadcast %40 : vector<10x1xf32> to vector<10x10xf32>
    %42 = arith.mulf %37, %41 : vector<10x10xf32>
    %43 = arith.truncf %42 : vector<10x10xf32> to vector<10x10xbf16>
    %cst_20 = arith.constant dense<0.000000e+00> : vector<10x16xf32>
    %44 = tpu.matmul %43, %28, %cst_20 {dimension_numbers = #tpu.dot_dimension_numbers<[1], [0], [0], [1], [0, 0, 1, 1], [], []>} : vector<10x10xbf16>, vector<10x16xbf16>, vector<10x16xf32> -> vector<10x16xf32>
    %45 = arith.truncf %44 : vector<10x16xf32> to vector<10x16xbf16>
    %c0_21 = arith.constant 0 : index
    %c0_22 = arith.constant 0 : index
    %c32 = arith.constant 32 : index
    %46 = vector.load %arg1[%c0_21, %c0_22, %c32] : memref<1x10x192xbf16, #tpu.memory_space<vmem>>, vector<1x10x16xbf16>
    %47 = vector.shape_cast %46 : vector<1x10x16xbf16> to vector<10x16xbf16>
    %c0_23 = arith.constant 0 : index
    %c0_24 = arith.constant 0 : index
    %c96 = arith.constant 96 : index
    %48 = vector.load %arg1[%c0_23, %c0_24, %c96] : memref<1x10x192xbf16, #tpu.memory_space<vmem>>, vector<1x10x16xbf16>
    %49 = vector.shape_cast %48 : vector<1x10x16xbf16> to vector<10x16xbf16>
    %c0_25 = arith.constant 0 : index
    %c0_26 = arith.constant 0 : index
    %c160 = arith.constant 160 : index
    %50 = vector.load %arg1[%c0_25, %c0_26, %c160] : memref<1x10x192xbf16, #tpu.memory_space<vmem>>, vector<1x10x16xbf16>
    %51 = vector.shape_cast %50 : vector<1x10x16xbf16> to vector<10x16xbf16>
    %52 = tpu.transpose %49, [1, 0] : vector<10x16xbf16> -> vector<16x10xbf16>
    %cst_27 = arith.constant dense<0.000000e+00> : vector<10x10xf32>
    %53 = tpu.matmul %47, %52, %cst_27 {dimension_numbers = #tpu.dot_dimension_numbers<[1], [0], [0], [1], [0, 0, 1, 1], [], []>} : vector<10x16xbf16>, vector<16x10xbf16>, vector<10x10xf32> -> vector<10x10xf32>
    %cst_28 = arith.constant 2.500000e-01 : f32
    %54 = vector.broadcast %cst_28 : f32 to vector<10x10xf32>
    %55 = arith.mulf %53, %54 : vector<10x10xf32>
    %cst_29 = arith.constant dense<0xFF800000> : vector<10xf32>
    %56 = vector.multi_reduction <maximumf>, %55, %cst_29 [1] : vector<10x10xf32> to vector<10xf32>
    %57 = vector.shape_cast %56 : vector<10xf32> to vector<10x1xf32>
    %58 = vector.broadcast %57 : vector<10x1xf32> to vector<10x10xf32>
    %59 = arith.subf %55, %58 : vector<10x10xf32>
    %60 = math.exp %59 : vector<10x10xf32>
    %cst_30 = arith.constant dense<0.000000e+00> : vector<10xf32>
    %61 = vector.multi_reduction <add>, %60, %cst_30 [1] : vector<10x10xf32> to vector<10xf32>
    %62 = vector.shape_cast %61 : vector<10xf32> to vector<10x1xf32>
    %63 = tpu.reciprocal %62 {approx = true} : vector<10x1xf32> -> vector<10x1xf32>
    %64 = vector.broadcast %63 : vector<10x1xf32> to vector<10x10xf32>
    %65 = arith.mulf %60, %64 : vector<10x10xf32>
    %66 = arith.truncf %65 : vector<10x10xf32> to vector<10x10xbf16>
    %cst_31 = arith.constant dense<0.000000e+00> : vector<10x16xf32>
    %67 = tpu.matmul %66, %51, %cst_31 {dimension_numbers = #tpu.dot_dimension_numbers<[1], [0], [0], [1], [0, 0, 1, 1], [], []>} : vector<10x10xbf16>, vector<10x16xbf16>, vector<10x16xf32> -> vector<10x16xf32>
    %68 = arith.truncf %67 : vector<10x16xf32> to vector<10x16xbf16>
    %c0_32 = arith.constant 0 : index
    %c0_33 = arith.constant 0 : index
    %c48 = arith.constant 48 : index
    %69 = vector.load %arg1[%c0_32, %c0_33, %c48] : memref<1x10x192xbf16, #tpu.memory_space<vmem>>, vector<1x10x16xbf16>
    %70 = vector.shape_cast %69 : vector<1x10x16xbf16> to vector<10x16xbf16>
    %c0_34 = arith.constant 0 : index
    %c0_35 = arith.constant 0 : index
    %c112 = arith.constant 112 : index
    %71 = vector.load %arg1[%c0_34, %c0_35, %c112] : memref<1x10x192xbf16, #tpu.memory_space<vmem>>, vector<1x10x16xbf16>
    %72 = vector.shape_cast %71 : vector<1x10x16xbf16> to vector<10x16xbf16>
    %c0_36 = arith.constant 0 : index
    %c0_37 = arith.constant 0 : index
    %c176 = arith.constant 176 : index
    %73 = vector.load %arg1[%c0_36, %c0_37, %c176] : memref<1x10x192xbf16, #tpu.memory_space<vmem>>, vector<1x10x16xbf16>
    %74 = vector.shape_cast %73 : vector<1x10x16xbf16> to vector<10x16xbf16>
    %75 = tpu.transpose %72, [1, 0] : vector<10x16xbf16> -> vector<16x10xbf16>
    %cst_38 = arith.constant dense<0.000000e+00> : vector<10x10xf32>
    %76 = tpu.matmul %70, %75, %cst_38 {dimension_numbers = #tpu.dot_dimension_numbers<[1], [0], [0], [1], [0, 0, 1, 1], [], []>} : vector<10x16xbf16>, vector<16x10xbf16>, vector<10x10xf32> -> vector<10x10xf32>
    %cst_39 = arith.constant 2.500000e-01 : f32
    %77 = vector.broadcast %cst_39 : f32 to vector<10x10xf32>
    %78 = arith.mulf %76, %77 : vector<10x10xf32>
    %cst_40 = arith.constant dense<0xFF800000> : vector<10xf32>
    %79 = vector.multi_reduction <maximumf>, %78, %cst_40 [1] : vector<10x10xf32> to vector<10xf32>
    %80 = vector.shape_cast %79 : vector<10xf32> to vector<10x1xf32>
    %81 = vector.broadcast %80 : vector<10x1xf32> to vector<10x10xf32>
    %82 = arith.subf %78, %81 : vector<10x10xf32>
    %83 = math.exp %82 : vector<10x10xf32>
    %cst_41 = arith.constant dense<0.000000e+00> : vector<10xf32>
    %84 = vector.multi_reduction <add>, %83, %cst_41 [1] : vector<10x10xf32> to vector<10xf32>
    %85 = vector.shape_cast %84 : vector<10xf32> to vector<10x1xf32>
    %86 = tpu.reciprocal %85 {approx = true} : vector<10x1xf32> -> vector<10x1xf32>
    %87 = vector.broadcast %86 : vector<10x1xf32> to vector<10x10xf32>
    %88 = arith.mulf %83, %87 : vector<10x10xf32>
    %89 = arith.truncf %88 : vector<10x10xf32> to vector<10x10xbf16>
    %cst_42 = arith.constant dense<0.000000e+00> : vector<10x16xf32>
    %90 = tpu.matmul %89, %74, %cst_42 {dimension_numbers = #tpu.dot_dimension_numbers<[1], [0], [0], [1], [0, 0, 1, 1], [], []>} : vector<10x10xbf16>, vector<10x16xbf16>, vector<10x16xf32> -> vector<10x16xf32>
    %91 = arith.truncf %90 : vector<10x16xf32> to vector<10x16xbf16>
    %92 = tpu.concatenate %22, %45, %68, %91 in 1 : vector<10x16xbf16>, vector<10x16xbf16>, vector<10x16xbf16>, vector<10x16xbf16> -> vector<10x64xbf16>
    %c0_43 = arith.constant 0 : index
    %c0_44 = arith.constant 0 : index
    %c0_45 = arith.constant 0 : index
    %93 = vector.load %arg2[%c0_43, %c0_44, %c0_45] : memref<1x10x64xbf16, #tpu.memory_space<vmem>>, vector<1x10x64xbf16>
    %94 = vector.shape_cast %93 : vector<1x10x64xbf16> to vector<10x64xbf16>
    %95 = vector.shape_cast %92 : vector<10x64xbf16> to vector<1x10x64xbf16>
    tpu.vector_store %arg2[%c0_43, %c0_44, %c0_45], %95 {strides = array<i32>} : memref<1x10x64xbf16, #tpu.memory_space<vmem>>, vector<1x10x64xbf16>,
    return
  }
  func.func @transform_0(%arg0: i32) -> (i32, i32, i32) {
    %c0_i32 = arith.constant 0 : i32
    %c0_i32_0 = arith.constant 0 : i32
    %c0_i32_1 = arith.constant 0 : i32
    return %arg0, %c0_i32, %c0_i32_0 : i32, i32, i32
  }
  func.func @transform_1(%arg0: i32) -> (i32, i32, i32) {
    %c0_i32 = arith.constant 0 : i32
    %c0_i32_0 = arith.constant 0 : i32
    %c0_i32_1 = arith.constant 0 : i32
    return %arg0, %c0_i32, %c0_i32_0 : i32, i32, i32
  }
}

module attributes {stable_mosaic.version = 11 : i64} {
  func.func @_mm_res_kernel(%arg0: i32, %arg1: i32, %arg2: i32, %arg3: memref<20x64xbf16, #tpu.memory_space<vmem>>, %arg4: memref<64x64xbf16, #tpu.memory_space<vmem>>, %arg5: memref<1x64xf32, #tpu.memory_space<vmem>>, %arg6: memref<20x64xbf16, #tpu.memory_space<vmem>>, %arg7: memref<20x64xbf16, #tpu.memory_space<vmem>>, %arg8: memref<20x64xf32, #tpu.memory_space<vmem>>) attributes {dimension_semantics = [#tpu.dimension_semantics<parallel>, #tpu.dimension_semantics<parallel>, #tpu.dimension_semantics<arbitrary>], iteration_bounds = array<i64: 1, 1, 1>, scalar_prefetch = 0 : i64, scratch_operands = 1 : i64, tpu.core_type = #tpu.core_type<tc>, window_params = [{transform_indices = @transform_0, window_bounds = array<i64: 20, 64>}, {transform_indices = @transform_1, window_bounds = array<i64: 64, 64>}, {transform_indices = @transform_2, window_bounds = array<i64: 1, 64>}, {transform_indices = @transform_3, window_bounds = array<i64: 20, 64>}, {transform_indices = @transform_4, window_bounds = array<i64: 20, 64>}]} {
    %c0_i32 = arith.constant 0 : i32
    %0 = arith.cmpi eq, %arg2, %c0_i32 : i32
    %1 = arith.extui %0 : i1 to i32
    %c0_i32_0 = arith.constant 0 : i32
    %2 = arith.cmpi ne, %1, %c0_i32_0 : i32
    scf.if %2 {
      %cst_10 = arith.constant 0.000000e+00 : f32
      %12 = vector.broadcast %cst_10 : f32 to vector<20x64xf32>
      %c0_11 = arith.constant 0 : index
      %c0_12 = arith.constant 0 : index
      %13 = vector.load %arg8[%c0_11, %c0_12] : memref<20x64xf32, #tpu.memory_space<vmem>>, vector<20x64xf32>
      tpu.vector_store %arg8[%c0_11, %c0_12], %12 {strides = array<i32>} : memref<20x64xf32, #tpu.memory_space<vmem>>, vector<20x64xf32>,
    } else {
    }
    %c0 = arith.constant 0 : index
    %c0_1 = arith.constant 0 : index
    %3 = vector.load %arg8[%c0, %c0_1] : memref<20x64xf32, #tpu.memory_space<vmem>>, vector<20x64xf32>
    %c0_2 = arith.constant 0 : index
    %c0_3 = arith.constant 0 : index
    %4 = vector.load %arg3[%c0_2, %c0_3] : memref<20x64xbf16, #tpu.memory_space<vmem>>, vector<20x64xbf16>
    %c0_4 = arith.constant 0 : index
    %c0_5 = arith.constant 0 : index
    %5 = vector.load %arg4[%c0_4, %c0_5] : memref<64x64xbf16, #tpu.memory_space<vmem>>, vector<64x64xbf16>
    %cst = arith.constant dense<0.000000e+00> : vector<20x64xf32>
    %6 = tpu.matmul %4, %5, %cst {dimension_numbers = #tpu.dot_dimension_numbers<[1], [0], [0], [1], [0, 0, 1, 1], [], []>} : vector<20x64xbf16>, vector<64x64xbf16>, vector<20x64xf32> -> vector<20x64xf32>
    %7 = arith.addf %3, %6 : vector<20x64xf32>
    %c0_6 = arith.constant 0 : index
    %c0_7 = arith.constant 0 : index
    %8 = vector.load %arg8[%c0_6, %c0_7] : memref<20x64xf32, #tpu.memory_space<vmem>>, vector<20x64xf32>
    tpu.vector_store %arg8[%c0_6, %c0_7], %7 {strides = array<i32>} : memref<20x64xf32, #tpu.memory_space<vmem>>, vector<20x64xf32>,
    %c0_i32_8 = arith.constant 0 : i32
    %9 = arith.cmpi eq, %arg2, %c0_i32_8 : i32
    %10 = arith.extui %9 : i1 to i32
    %c0_i32_9 = arith.constant 0 : i32
    %11 = arith.cmpi ne, %10, %c0_i32_9 : i32
    scf.if %11 {
      %c0_10 = arith.constant 0 : index
      %c0_11 = arith.constant 0 : index
      %12 = vector.load %arg8[%c0_10, %c0_11] : memref<20x64xf32, #tpu.memory_space<vmem>>, vector<20x64xf32>
      %c0_12 = arith.constant 0 : index
      %c0_13 = arith.constant 0 : index
      %13 = vector.load %arg5[%c0_12, %c0_13] : memref<1x64xf32, #tpu.memory_space<vmem>>, vector<1x64xf32>
      %14 = vector.broadcast %13 : vector<1x64xf32> to vector<20x64xf32>
      %15 = arith.addf %12, %14 : vector<20x64xf32>
      %c0_14 = arith.constant 0 : index
      %c0_15 = arith.constant 0 : index
      %16 = vector.load %arg6[%c0_14, %c0_15] : memref<20x64xbf16, #tpu.memory_space<vmem>>, vector<20x64xbf16>
      %17 = arith.extf %16 : vector<20x64xbf16> to vector<20x64xf32>
      %18 = arith.addf %15, %17 : vector<20x64xf32>
      %19 = arith.truncf %18 : vector<20x64xf32> to vector<20x64xbf16>
      %c0_16 = arith.constant 0 : index
      %c0_17 = arith.constant 0 : index
      %20 = vector.load %arg7[%c0_16, %c0_17] : memref<20x64xbf16, #tpu.memory_space<vmem>>, vector<20x64xbf16>
      tpu.vector_store %arg7[%c0_16, %c0_17], %19 {strides = array<i32>} : memref<20x64xbf16, #tpu.memory_space<vmem>>, vector<20x64xbf16>,
    } else {
    }
    return
  }
  func.func @transform_0(%arg0: i32, %arg1: i32, %arg2: i32) -> (i32, i32) {
    %c0_i32 = arith.constant 0 : i32
    return %arg0, %arg2 : i32, i32
  }
  func.func @transform_1(%arg0: i32, %arg1: i32, %arg2: i32) -> (i32, i32) {
    %c0_i32 = arith.constant 0 : i32
    return %arg2, %arg1 : i32, i32
  }
  func.func @transform_2(%arg0: i32, %arg1: i32, %arg2: i32) -> (i32, i32) {
    %c0_i32 = arith.constant 0 : i32
    %c0_i32_0 = arith.constant 0 : i32
    return %c0_i32, %arg1 : i32, i32
  }
  func.func @transform_3(%arg0: i32, %arg1: i32, %arg2: i32) -> (i32, i32) {
    %c0_i32 = arith.constant 0 : i32
    return %arg0, %arg1 : i32, i32
  }
  func.func @transform_4(%arg0: i32, %arg1: i32, %arg2: i32) -> (i32, i32) {
    %c0_i32 = arith.constant 0 : i32
    return %arg0, %arg1 : i32, i32
  }
}

module attributes {stable_mosaic.version = 11 : i64} {
  func.func @_ln_kernel(%arg0: i32, %arg1: memref<20x64xbf16, #tpu.memory_space<vmem>>, %arg2: memref<1x64xf32, #tpu.memory_space<vmem>>, %arg3: memref<1x64xf32, #tpu.memory_space<vmem>>, %arg4: memref<20x64xf32, #tpu.memory_space<vmem>>) attributes {dimension_semantics = [#tpu.dimension_semantics<parallel>], iteration_bounds = array<i64: 1>, scalar_prefetch = 0 : i64, scratch_operands = 0 : i64, tpu.core_type = #tpu.core_type<tc>, window_params = [{transform_indices = @transform_0, window_bounds = array<i64: 20, 64>}, {pipeline_mode = #tpu.pipeline_mode<synchronous>, transform_indices = @transform_1, window_bounds = array<i64: 1, 64>}, {pipeline_mode = #tpu.pipeline_mode<synchronous>, transform_indices = @transform_2, window_bounds = array<i64: 1, 64>}, {transform_indices = @transform_3, window_bounds = array<i64: 20, 64>}]} {
    %c0 = arith.constant 0 : index
    %c0_0 = arith.constant 0 : index
    %0 = vector.load %arg1[%c0, %c0_0] : memref<20x64xbf16, #tpu.memory_space<vmem>>, vector<20x64xbf16>
    %1 = arith.extf %0 : vector<20x64xbf16> to vector<20x64xf32>
    %cst = arith.constant dense<0.000000e+00> : vector<20xf32>
    %2 = vector.multi_reduction <add>, %1, %cst [1] : vector<20x64xf32> to vector<20xf32>
    %3 = vector.shape_cast %2 : vector<20xf32> to vector<20x1xf32>
    %cst_1 = arith.constant 6.400000e+01 : f32
    %4 = vector.broadcast %cst_1 : f32 to vector<20x1xf32>
    %5 = arith.divf %3, %4 : vector<20x1xf32>
    %6 = vector.broadcast %5 : vector<20x1xf32> to vector<20x64xf32>
    %7 = arith.subf %1, %6 : vector<20x64xf32>
    %8 = arith.mulf %7, %7 : vector<20x64xf32>
    %cst_2 = arith.constant dense<0.000000e+00> : vector<20xf32>
    %9 = vector.multi_reduction <add>, %8, %cst_2 [1] : vector<20x64xf32> to vector<20xf32>
    %10 = vector.shape_cast %9 : vector<20xf32> to vector<20x1xf32>
    %cst_3 = arith.constant 6.400000e+01 : f32
    %11 = vector.broadcast %cst_3 : f32 to vector<20x1xf32>
    %12 = arith.divf %10, %11 : vector<20x1xf32>
    %13 = vector.broadcast %5 : vector<20x1xf32> to vector<20x64xf32>
    %14 = arith.subf %1, %13 : vector<20x64xf32>
    %cst_4 = arith.constant 9.99999997E-7 : f32
    %15 = vector.broadcast %cst_4 : f32 to vector<20x1xf32>
    %16 = arith.addf %12, %15 : vector<20x1xf32>
    %17 = math.rsqrt %16 : vector<20x1xf32>
    %18 = vector.broadcast %17 : vector<20x1xf32> to vector<20x64xf32>
    %19 = arith.mulf %14, %18 : vector<20x64xf32>
    %c0_5 = arith.constant 0 : index
    %c0_6 = arith.constant 0 : index
    %20 = vector.load %arg2[%c0_5, %c0_6] : memref<1x64xf32, #tpu.memory_space<vmem>>, vector<1x64xf32>
    %21 = vector.broadcast %20 : vector<1x64xf32> to vector<20x64xf32>
    %22 = arith.mulf %19, %21 : vector<20x64xf32>
    %c0_7 = arith.constant 0 : index
    %c0_8 = arith.constant 0 : index
    %23 = vector.load %arg3[%c0_7, %c0_8] : memref<1x64xf32, #tpu.memory_space<vmem>>, vector<1x64xf32>
    %24 = vector.broadcast %23 : vector<1x64xf32> to vector<20x64xf32>
    %25 = arith.addf %22, %24 : vector<20x64xf32>
    %c0_9 = arith.constant 0 : index
    %c0_10 = arith.constant 0 : index
    %26 = vector.load %arg4[%c0_9, %c0_10] : memref<20x64xf32, #tpu.memory_space<vmem>>, vector<20x64xf32>
    tpu.vector_store %arg4[%c0_9, %c0_10], %25 {strides = array<i32>} : memref<20x64xf32, #tpu.memory_space<vmem>>, vector<20x64xf32>,
    return
  }
  func.func @transform_0(%arg0: i32) -> (i32, i32) {
    %c0_i32 = arith.constant 0 : i32
    %c0_i32_0 = arith.constant 0 : i32
    return %arg0, %c0_i32 : i32, i32
  }
  func.func @transform_1(%arg0: i32) -> (i32, i32) {
    %c0_i32 = arith.constant 0 : i32
    %c0_i32_0 = arith.constant 0 : i32
    %c0_i32_1 = arith.constant 0 : i32
    return %c0_i32, %c0_i32_0 : i32, i32
  }
  func.func @transform_2(%arg0: i32) -> (i32, i32) {
    %c0_i32 = arith.constant 0 : i32
    %c0_i32_0 = arith.constant 0 : i32
    %c0_i32_1 = arith.constant 0 : i32
    return %c0_i32, %c0_i32_0 : i32, i32
  }
  func.func @transform_3(%arg0: i32) -> (i32, i32) {
    %c0_i32 = arith.constant 0 : i32
    %c0_i32_0 = arith.constant 0 : i32
    return %arg0, %c0_i32 : i32, i32
  }
}

module attributes {stable_mosaic.version = 11 : i64} {
  func.func @_mm_res_kernel(%arg0: i32, %arg1: i32, %arg2: i32, %arg3: memref<20x256xbf16, #tpu.memory_space<vmem>>, %arg4: memref<256x64xbf16, #tpu.memory_space<vmem>>, %arg5: memref<1x64xf32, #tpu.memory_space<vmem>>, %arg6: memref<20x64xbf16, #tpu.memory_space<vmem>>, %arg7: memref<20x64xbf16, #tpu.memory_space<vmem>>, %arg8: memref<20x64xf32, #tpu.memory_space<vmem>>) attributes {dimension_semantics = [#tpu.dimension_semantics<parallel>, #tpu.dimension_semantics<parallel>, #tpu.dimension_semantics<arbitrary>], iteration_bounds = array<i64: 1, 1, 1>, scalar_prefetch = 0 : i64, scratch_operands = 1 : i64, tpu.core_type = #tpu.core_type<tc>, window_params = [{transform_indices = @transform_0, window_bounds = array<i64: 20, 256>}, {transform_indices = @transform_1, window_bounds = array<i64: 256, 64>}, {transform_indices = @transform_2, window_bounds = array<i64: 1, 64>}, {transform_indices = @transform_3, window_bounds = array<i64: 20, 64>}, {transform_indices = @transform_4, window_bounds = array<i64: 20, 64>}]} {
    %c0_i32 = arith.constant 0 : i32
    %0 = arith.cmpi eq, %arg2, %c0_i32 : i32
    %1 = arith.extui %0 : i1 to i32
    %c0_i32_0 = arith.constant 0 : i32
    %2 = arith.cmpi ne, %1, %c0_i32_0 : i32
    scf.if %2 {
      %cst_10 = arith.constant 0.000000e+00 : f32
      %12 = vector.broadcast %cst_10 : f32 to vector<20x64xf32>
      %c0_11 = arith.constant 0 : index
      %c0_12 = arith.constant 0 : index
      %13 = vector.load %arg8[%c0_11, %c0_12] : memref<20x64xf32, #tpu.memory_space<vmem>>, vector<20x64xf32>
      tpu.vector_store %arg8[%c0_11, %c0_12], %12 {strides = array<i32>} : memref<20x64xf32, #tpu.memory_space<vmem>>, vector<20x64xf32>,
    } else {
    }
    %c0 = arith.constant 0 : index
    %c0_1 = arith.constant 0 : index
    %3 = vector.load %arg8[%c0, %c0_1] : memref<20x64xf32, #tpu.memory_space<vmem>>, vector<20x64xf32>
    %c0_2 = arith.constant 0 : index
    %c0_3 = arith.constant 0 : index
    %4 = vector.load %arg3[%c0_2, %c0_3] : memref<20x256xbf16, #tpu.memory_space<vmem>>, vector<20x256xbf16>
    %c0_4 = arith.constant 0 : index
    %c0_5 = arith.constant 0 : index
    %5 = vector.load %arg4[%c0_4, %c0_5] : memref<256x64xbf16, #tpu.memory_space<vmem>>, vector<256x64xbf16>
    %cst = arith.constant dense<0.000000e+00> : vector<20x64xf32>
    %6 = tpu.matmul %4, %5, %cst {dimension_numbers = #tpu.dot_dimension_numbers<[1], [0], [0], [1], [0, 0, 1, 1], [], []>} : vector<20x256xbf16>, vector<256x64xbf16>, vector<20x64xf32> -> vector<20x64xf32>
    %7 = arith.addf %3, %6 : vector<20x64xf32>
    %c0_6 = arith.constant 0 : index
    %c0_7 = arith.constant 0 : index
    %8 = vector.load %arg8[%c0_6, %c0_7] : memref<20x64xf32, #tpu.memory_space<vmem>>, vector<20x64xf32>
    tpu.vector_store %arg8[%c0_6, %c0_7], %7 {strides = array<i32>} : memref<20x64xf32, #tpu.memory_space<vmem>>, vector<20x64xf32>,
    %c0_i32_8 = arith.constant 0 : i32
    %9 = arith.cmpi eq, %arg2, %c0_i32_8 : i32
    %10 = arith.extui %9 : i1 to i32
    %c0_i32_9 = arith.constant 0 : i32
    %11 = arith.cmpi ne, %10, %c0_i32_9 : i32
    scf.if %11 {
      %c0_10 = arith.constant 0 : index
      %c0_11 = arith.constant 0 : index
      %12 = vector.load %arg8[%c0_10, %c0_11] : memref<20x64xf32, #tpu.memory_space<vmem>>, vector<20x64xf32>
      %c0_12 = arith.constant 0 : index
      %c0_13 = arith.constant 0 : index
      %13 = vector.load %arg5[%c0_12, %c0_13] : memref<1x64xf32, #tpu.memory_space<vmem>>, vector<1x64xf32>
      %14 = vector.broadcast %13 : vector<1x64xf32> to vector<20x64xf32>
      %15 = arith.addf %12, %14 : vector<20x64xf32>
      %c0_14 = arith.constant 0 : index
      %c0_15 = arith.constant 0 : index
      %16 = vector.load %arg6[%c0_14, %c0_15] : memref<20x64xbf16, #tpu.memory_space<vmem>>, vector<20x64xbf16>
      %17 = arith.extf %16 : vector<20x64xbf16> to vector<20x64xf32>
      %18 = arith.addf %15, %17 : vector<20x64xf32>
      %19 = arith.truncf %18 : vector<20x64xf32> to vector<20x64xbf16>
      %c0_16 = arith.constant 0 : index
      %c0_17 = arith.constant 0 : index
      %20 = vector.load %arg7[%c0_16, %c0_17] : memref<20x64xbf16, #tpu.memory_space<vmem>>, vector<20x64xbf16>
      tpu.vector_store %arg7[%c0_16, %c0_17], %19 {strides = array<i32>} : memref<20x64xbf16, #tpu.memory_space<vmem>>, vector<20x64xbf16>,
    } else {
    }
    return
  }
  func.func @transform_0(%arg0: i32, %arg1: i32, %arg2: i32) -> (i32, i32) {
    %c0_i32 = arith.constant 0 : i32
    return %arg0, %arg2 : i32, i32
  }
  func.func @transform_1(%arg0: i32, %arg1: i32, %arg2: i32) -> (i32, i32) {
    %c0_i32 = arith.constant 0 : i32
    return %arg2, %arg1 : i32, i32
  }
  func.func @transform_2(%arg0: i32, %arg1: i32, %arg2: i32) -> (i32, i32) {
    %c0_i32 = arith.constant 0 : i32
    %c0_i32_0 = arith.constant 0 : i32
    return %c0_i32, %arg1 : i32, i32
  }
  func.func @transform_3(%arg0: i32, %arg1: i32, %arg2: i32) -> (i32, i32) {
    %c0_i32 = arith.constant 0 : i32
    return %arg0, %arg1 : i32, i32
  }
  func.func @transform_4(%arg0: i32, %arg1: i32, %arg2: i32) -> (i32, i32) {
    %c0_i32 = arith.constant 0 : i32
    return %arg0, %arg1 : i32, i32
  }
}

module attributes {stable_mosaic.version = 11 : i64} {
  func.func @_ln_mm_kernel(%arg0: i32, %arg1: i32, %arg2: memref<20x64xbf16, #tpu.memory_space<vmem>>, %arg3: memref<1x64xf32, #tpu.memory_space<vmem>>, %arg4: memref<1x64xf32, #tpu.memory_space<vmem>>, %arg5: memref<64x256xbf16, #tpu.memory_space<vmem>>, %arg6: memref<1x256xf32, #tpu.memory_space<vmem>>, %arg7: memref<20x256xbf16, #tpu.memory_space<vmem>>, %arg8: memref<20x64xbf16, #tpu.memory_space<vmem>>) attributes {dimension_semantics = [#tpu.dimension_semantics<parallel>, #tpu.dimension_semantics<arbitrary>], iteration_bounds = array<i64: 1, 1>, scalar_prefetch = 0 : i64, scratch_operands = 1 : i64, tpu.core_type = #tpu.core_type<tc>, window_params = [{transform_indices = @transform_0, window_bounds = array<i64: 20, 64>}, {pipeline_mode = #tpu.pipeline_mode<synchronous>, transform_indices = @transform_1, window_bounds = array<i64: 1, 64>}, {pipeline_mode = #tpu.pipeline_mode<synchronous>, transform_indices = @transform_2, window_bounds = array<i64: 1, 64>}, {transform_indices = @transform_3, window_bounds = array<i64: 64, 256>}, {transform_indices = @transform_4, window_bounds = array<i64: 1, 256>}, {transform_indices = @transform_5, window_bounds = array<i64: 20, 256>}]} {
    %c0_i32 = arith.constant 0 : i32
    %0 = arith.cmpi eq, %arg1, %c0_i32 : i32
    %1 = arith.extui %0 : i1 to i32
    %c0_i32_0 = arith.constant 0 : i32
    %2 = arith.cmpi ne, %1, %c0_i32_0 : i32
    scf.if %2 {
      %c0_11 = arith.constant 0 : index
      %c0_12 = arith.constant 0 : index
      %19 = vector.load %arg2[%c0_11, %c0_12] : memref<20x64xbf16, #tpu.memory_space<vmem>>, vector<20x64xbf16>
      %20 = arith.extf %19 : vector<20x64xbf16> to vector<20x64xf32>
      %cst_13 = arith.constant dense<0.000000e+00> : vector<20xf32>
      %21 = vector.multi_reduction <add>, %20, %cst_13 [1] : vector<20x64xf32> to vector<20xf32>
      %22 = vector.shape_cast %21 : vector<20xf32> to vector<20x1xf32>
      %cst_14 = arith.constant 6.400000e+01 : f32
      %23 = vector.broadcast %cst_14 : f32 to vector<20x1xf32>
      %24 = arith.divf %22, %23 : vector<20x1xf32>
      %25 = vector.broadcast %24 : vector<20x1xf32> to vector<20x64xf32>
      %26 = arith.subf %20, %25 : vector<20x64xf32>
      %27 = arith.mulf %26, %26 : vector<20x64xf32>
      %cst_15 = arith.constant dense<0.000000e+00> : vector<20xf32>
      %28 = vector.multi_reduction <add>, %27, %cst_15 [1] : vector<20x64xf32> to vector<20xf32>
      %29 = vector.shape_cast %28 : vector<20xf32> to vector<20x1xf32>
      %cst_16 = arith.constant 6.400000e+01 : f32
      %30 = vector.broadcast %cst_16 : f32 to vector<20x1xf32>
      %31 = arith.divf %29, %30 : vector<20x1xf32>
      %32 = vector.broadcast %24 : vector<20x1xf32> to vector<20x64xf32>
      %33 = arith.subf %20, %32 : vector<20x64xf32>
      %cst_17 = arith.constant 9.99999997E-7 : f32
      %34 = vector.broadcast %cst_17 : f32 to vector<20x1xf32>
      %35 = arith.addf %31, %34 : vector<20x1xf32>
      %36 = math.rsqrt %35 : vector<20x1xf32>
      %37 = vector.broadcast %36 : vector<20x1xf32> to vector<20x64xf32>
      %38 = arith.mulf %33, %37 : vector<20x64xf32>
      %c0_18 = arith.constant 0 : index
      %c0_19 = arith.constant 0 : index
      %39 = vector.load %arg3[%c0_18, %c0_19] : memref<1x64xf32, #tpu.memory_space<vmem>>, vector<1x64xf32>
      %40 = vector.broadcast %39 : vector<1x64xf32> to vector<20x64xf32>
      %41 = arith.mulf %38, %40 : vector<20x64xf32>
      %c0_20 = arith.constant 0 : index
      %c0_21 = arith.constant 0 : index
      %42 = vector.load %arg4[%c0_20, %c0_21] : memref<1x64xf32, #tpu.memory_space<vmem>>, vector<1x64xf32>
      %43 = vector.broadcast %42 : vector<1x64xf32> to vector<20x64xf32>
      %44 = arith.addf %41, %43 : vector<20x64xf32>
      %45 = arith.truncf %44 : vector<20x64xf32> to vector<20x64xbf16>
      %c0_22 = arith.constant 0 : index
      %c0_23 = arith.constant 0 : index
      %46 = vector.load %arg8[%c0_22, %c0_23] : memref<20x64xbf16, #tpu.memory_space<vmem>>, vector<20x64xbf16>
      tpu.vector_store %arg8[%c0_22, %c0_23], %45 {strides = array<i32>} : memref<20x64xbf16, #tpu.memory_space<vmem>>, vector<20x64xbf16>,
    } else {
    }
    %c0 = arith.constant 0 : index
    %c0_1 = arith.constant 0 : index
    %3 = vector.load %arg8[%c0, %c0_1] : memref<20x64xbf16, #tpu.memory_space<vmem>>, vector<20x64xbf16>
    %c0_2 = arith.constant 0 : index
    %c0_3 = arith.constant 0 : index
    %4 = vector.load %arg5[%c0_2, %c0_3] : memref<64x256xbf16, #tpu.memory_space<vmem>>, vector<64x256xbf16>
    %cst = arith.constant dense<0.000000e+00> : vector<20x256xf32>
    %5 = tpu.matmul %3, %4, %cst {dimension_numbers = #tpu.dot_dimension_numbers<[1], [0], [0], [1], [0, 0, 1, 1], [], []>} : vector<20x64xbf16>, vector<64x256xbf16>, vector<20x256xf32> -> vector<20x256xf32>
    %c0_4 = arith.constant 0 : index
    %c0_5 = arith.constant 0 : index
    %6 = vector.load %arg6[%c0_4, %c0_5] : memref<1x256xf32, #tpu.memory_space<vmem>>, vector<1x256xf32>
    %7 = vector.broadcast %6 : vector<1x256xf32> to vector<20x256xf32>
    %8 = arith.addf %5, %7 : vector<20x256xf32>
    %cst_6 = arith.constant 5.000000e-01 : f32
    %9 = vector.broadcast %cst_6 : f32 to vector<20x256xf32>
    %10 = arith.mulf %9, %8 : vector<20x256xf32>
    %cst_7 = arith.constant 0.707106769 : f32
    %11 = vector.broadcast %cst_7 : f32 to vector<20x256xf32>
    %12 = arith.mulf %8, %11 : vector<20x256xf32>
    %13 = math.erf %12 : vector<20x256xf32>
    %cst_8 = arith.constant 1.000000e+00 : f32
    %14 = vector.broadcast %cst_8 : f32 to vector<20x256xf32>
    %15 = arith.addf %14, %13 : vector<20x256xf32>
    %16 = arith.mulf %10, %15 : vector<20x256xf32>
    %17 = arith.truncf %16 : vector<20x256xf32> to vector<20x256xbf16>
    %c0_9 = arith.constant 0 : index
    %c0_10 = arith.constant 0 : index
    %18 = vector.load %arg7[%c0_9, %c0_10] : memref<20x256xbf16, #tpu.memory_space<vmem>>, vector<20x256xbf16>
    tpu.vector_store %arg7[%c0_9, %c0_10], %17 {strides = array<i32>} : memref<20x256xbf16, #tpu.memory_space<vmem>>, vector<20x256xbf16>,
    return
  }
  func.func @transform_0(%arg0: i32, %arg1: i32) -> (i32, i32) {
    %c0_i32 = arith.constant 0 : i32
    %c0_i32_0 = arith.constant 0 : i32
    return %arg0, %c0_i32 : i32, i32
  }
  func.func @transform_1(%arg0: i32, %arg1: i32) -> (i32, i32) {
    %c0_i32 = arith.constant 0 : i32
    %c0_i32_0 = arith.constant 0 : i32
    %c0_i32_1 = arith.constant 0 : i32
    return %c0_i32, %c0_i32_0 : i32, i32
  }
  func.func @transform_2(%arg0: i32, %arg1: i32) -> (i32, i32) {
    %c0_i32 = arith.constant 0 : i32
    %c0_i32_0 = arith.constant 0 : i32
    %c0_i32_1 = arith.constant 0 : i32
    return %c0_i32, %c0_i32_0 : i32, i32
  }
  func.func @transform_3(%arg0: i32, %arg1: i32) -> (i32, i32) {
    %c0_i32 = arith.constant 0 : i32
    %c0_i32_0 = arith.constant 0 : i32
    return %c0_i32, %arg1 : i32, i32
  }
  func.func @transform_4(%arg0: i32, %arg1: i32) -> (i32, i32) {
    %c0_i32 = arith.constant 0 : i32
    %c0_i32_0 = arith.constant 0 : i32
    return %c0_i32, %arg1 : i32, i32
  }
  func.func @transform_5(%arg0: i32, %arg1: i32) -> (i32, i32) {
    %c0_i32 = arith.constant 0 : i32
    return %arg0, %arg1 : i32, i32
  }
}

module attributes {stable_mosaic.version = 11 : i64} {
  func.func @_ln_mm_kernel(%arg0: i32, %arg1: i32, %arg2: memref<2x64xf32, #tpu.memory_space<vmem>>, %arg3: memref<1x64xf32, #tpu.memory_space<vmem>>, %arg4: memref<1x64xf32, #tpu.memory_space<vmem>>, %arg5: memref<64x8xbf16, #tpu.memory_space<vmem>>, %arg6: memref<1x8xf32, #tpu.memory_space<vmem>>, %arg7: memref<2x8xf32, #tpu.memory_space<vmem>>, %arg8: memref<2x64xbf16, #tpu.memory_space<vmem>>) attributes {dimension_semantics = [#tpu.dimension_semantics<parallel>, #tpu.dimension_semantics<arbitrary>], iteration_bounds = array<i64: 1, 1>, scalar_prefetch = 0 : i64, scratch_operands = 1 : i64, tpu.core_type = #tpu.core_type<tc>, window_params = [{transform_indices = @transform_0, window_bounds = array<i64: 2, 64>}, {pipeline_mode = #tpu.pipeline_mode<synchronous>, transform_indices = @transform_1, window_bounds = array<i64: 1, 64>}, {pipeline_mode = #tpu.pipeline_mode<synchronous>, transform_indices = @transform_2, window_bounds = array<i64: 1, 64>}, {transform_indices = @transform_3, window_bounds = array<i64: 64, 8>}, {transform_indices = @transform_4, window_bounds = array<i64: 1, 8>}, {transform_indices = @transform_5, window_bounds = array<i64: 2, 8>}]} {
    %c0_i32 = arith.constant 0 : i32
    %0 = arith.cmpi eq, %arg1, %c0_i32 : i32
    %1 = arith.extui %0 : i1 to i32
    %c0_i32_0 = arith.constant 0 : i32
    %2 = arith.cmpi ne, %1, %c0_i32_0 : i32
    scf.if %2 {
      %c0_8 = arith.constant 0 : index
      %c0_9 = arith.constant 0 : index
      %10 = vector.load %arg2[%c0_8, %c0_9] : memref<2x64xf32, #tpu.memory_space<vmem>>, vector<2x64xf32>
      %cst_10 = arith.constant dense<0.000000e+00> : vector<2xf32>
      %11 = vector.multi_reduction <add>, %10, %cst_10 [1] : vector<2x64xf32> to vector<2xf32>
      %12 = vector.shape_cast %11 : vector<2xf32> to vector<2x1xf32>
      %cst_11 = arith.constant 6.400000e+01 : f32
      %13 = vector.broadcast %cst_11 : f32 to vector<2x1xf32>
      %14 = arith.divf %12, %13 : vector<2x1xf32>
      %15 = vector.broadcast %14 : vector<2x1xf32> to vector<2x64xf32>
      %16 = arith.subf %10, %15 : vector<2x64xf32>
      %17 = arith.mulf %16, %16 : vector<2x64xf32>
      %cst_12 = arith.constant dense<0.000000e+00> : vector<2xf32>
      %18 = vector.multi_reduction <add>, %17, %cst_12 [1] : vector<2x64xf32> to vector<2xf32>
      %19 = vector.shape_cast %18 : vector<2xf32> to vector<2x1xf32>
      %cst_13 = arith.constant 6.400000e+01 : f32
      %20 = vector.broadcast %cst_13 : f32 to vector<2x1xf32>
      %21 = arith.divf %19, %20 : vector<2x1xf32>
      %22 = vector.broadcast %14 : vector<2x1xf32> to vector<2x64xf32>
      %23 = arith.subf %10, %22 : vector<2x64xf32>
      %cst_14 = arith.constant 9.99999974E-6 : f32
      %24 = vector.broadcast %cst_14 : f32 to vector<2x1xf32>
      %25 = arith.addf %21, %24 : vector<2x1xf32>
      %26 = math.rsqrt %25 : vector<2x1xf32>
      %27 = vector.broadcast %26 : vector<2x1xf32> to vector<2x64xf32>
      %28 = arith.mulf %23, %27 : vector<2x64xf32>
      %c0_15 = arith.constant 0 : index
      %c0_16 = arith.constant 0 : index
      %29 = vector.load %arg3[%c0_15, %c0_16] : memref<1x64xf32, #tpu.memory_space<vmem>>, vector<1x64xf32>
      %30 = vector.broadcast %29 : vector<1x64xf32> to vector<2x64xf32>
      %31 = arith.mulf %28, %30 : vector<2x64xf32>
      %c0_17 = arith.constant 0 : index
      %c0_18 = arith.constant 0 : index
      %32 = vector.load %arg4[%c0_17, %c0_18] : memref<1x64xf32, #tpu.memory_space<vmem>>, vector<1x64xf32>
      %33 = vector.broadcast %32 : vector<1x64xf32> to vector<2x64xf32>
      %34 = arith.addf %31, %33 : vector<2x64xf32>
      %35 = arith.truncf %34 : vector<2x64xf32> to vector<2x64xbf16>
      %c0_19 = arith.constant 0 : index
      %c0_20 = arith.constant 0 : index
      %36 = vector.load %arg8[%c0_19, %c0_20] : memref<2x64xbf16, #tpu.memory_space<vmem>>, vector<2x64xbf16>
      tpu.vector_store %arg8[%c0_19, %c0_20], %35 {strides = array<i32>} : memref<2x64xbf16, #tpu.memory_space<vmem>>, vector<2x64xbf16>,
    } else {
    }
    %c0 = arith.constant 0 : index
    %c0_1 = arith.constant 0 : index
    %3 = vector.load %arg8[%c0, %c0_1] : memref<2x64xbf16, #tpu.memory_space<vmem>>, vector<2x64xbf16>
    %c0_2 = arith.constant 0 : index
    %c0_3 = arith.constant 0 : index
    %4 = vector.load %arg5[%c0_2, %c0_3] : memref<64x8xbf16, #tpu.memory_space<vmem>>, vector<64x8xbf16>
    %cst = arith.constant dense<0.000000e+00> : vector<2x8xf32>
    %5 = tpu.matmul %3, %4, %cst {dimension_numbers = #tpu.dot_dimension_numbers<[1], [0], [0], [1], [0, 0, 1, 1], [], []>} : vector<2x64xbf16>, vector<64x8xbf16>, vector<2x8xf32> -> vector<2x8xf32>
    %c0_4 = arith.constant 0 : index
    %c0_5 = arith.constant 0 : index
    %6 = vector.load %arg6[%c0_4, %c0_5] : memref<1x8xf32, #tpu.memory_space<vmem>>, vector<1x8xf32>
    %7 = vector.broadcast %6 : vector<1x8xf32> to vector<2x8xf32>
    %8 = arith.addf %5, %7 : vector<2x8xf32>
    %c0_6 = arith.constant 0 : index
    %c0_7 = arith.constant 0 : index
    %9 = vector.load %arg7[%c0_6, %c0_7] : memref<2x8xf32, #tpu.memory_space<vmem>>, vector<2x8xf32>
    tpu.vector_store %arg7[%c0_6, %c0_7], %8 {strides = array<i32>} : memref<2x8xf32, #tpu.memory_space<vmem>>, vector<2x8xf32>,
    return
  }
  func.func @transform_0(%arg0: i32, %arg1: i32) -> (i32, i32) {
    %c0_i32 = arith.constant 0 : i32
    %c0_i32_0 = arith.constant 0 : i32
    return %arg0, %c0_i32 : i32, i32
  }
  func.func @transform_1(%arg0: i32, %arg1: i32) -> (i32, i32) {
    %c0_i32 = arith.constant 0 : i32
    %c0_i32_0 = arith.constant 0 : i32
    %c0_i32_1 = arith.constant 0 : i32
    return %c0_i32, %c0_i32_0 : i32, i32
  }
  func.func @transform_2(%arg0: i32, %arg1: i32) -> (i32, i32) {
    %c0_i32 = arith.constant 0 : i32
    %c0_i32_0 = arith.constant 0 : i32
    %c0_i32_1 = arith.constant 0 : i32
    return %c0_i32, %c0_i32_0 : i32, i32
  }
  func.func @transform_3(%arg0: i32, %arg1: i32) -> (i32, i32) {
    %c0_i32 = arith.constant 0 : i32
    %c0_i32_0 = arith.constant 0 : i32
    return %c0_i32, %arg1 : i32, i32
  }
  func.func @transform_4(%arg0: i32, %arg1: i32) -> (i32, i32) {
    %c0_i32 = arith.constant 0 : i32
    %c0_i32_0 = arith.constant 0 : i32
    return %c0_i32, %arg1 : i32, i32
  }
  func.func @transform_5(%arg0: i32, %arg1: i32) -> (i32, i32) {
    %c0_i32 = arith.constant 0 : i32
    return %arg0, %arg1 : i32, i32
  }
}

</mosaic_0001>

<llo_original>
// kernel: ast_forward.16
$region0: #{ast_forward.16}
  #allocation0 [shape = 'u32[]', space=smem, size = 0x4, offset = 0x4, fixed_abs, tag = 'smem constant byte address 0x4 - core index']
  #allocation1 [shape = 'u32[144,128]{1,0:T(1,128)}', space=vmem, size = 0x12000, scoped, tag = 'internal scratch']
  #allocation2 [shape = 'f32[20,64]{1,0:T(8,128)}', space=vmem, size = 0x3000, scoped, tag = 'scratch operand']
  %s0 = inlined_call_operand.vmem [shape: bf16[20,64], index: 0, kind: input, shape index: {}]
  %s1 = inlined_call_operand.vmem [shape: bf16[64,64], index: 1, kind: input, shape index: {}]
  %s2 = inlined_call_operand.vmem [shape: f32[1,64], index: 2, kind: input, shape index: {}]
  %s3 = inlined_call_operand.vmem [shape: bf16[20,64], index: 3, kind: input, shape index: {}]
  %s4 = inlined_call_operand.vmem [shape: bf16[20,64], index: 4, kind: output, shape index: {}]
  %s5 = sld [smem:[#allocation0]]
  $region34: #{ast_forward.16} parent=0
    _
  %s7 = ssub.s32 1, %s5
  %s8 = scalar_select 0, %s7, %s5
  // Predicated region
  $region2: #{ast_forward.16} parent=0 // pred_check
    _
  $region3: #{ast_forward.16} parent=0 // pred_check_branch
    %10 = sbr.rel (0) target = $region5
  $region4: #{ast_forward.16} parent=0 // pred_region
    _
  $region5: #{ast_forward.16} parent=0 // pred_fallthru
    _
  // Predicated region
  $region6: #{ast_forward.16} parent=0 // pred_check
    _
  $region7: #{ast_forward.16} parent=0 // pred_check_branch
    %12 = sbr.rel (0) target = $region9
  $region8: #{ast_forward.16} parent=0 // pred_region
    _
  $region9: #{ast_forward.16} parent=0 // pred_fallthru
    _
  // Predicated region
  $region10: #{ast_forward.16} parent=0 // pred_check
    _
  $region11: #{ast_forward.16} parent=0 // pred_check_branch
    %14 = sbr.rel (0) target = $region13
  $region12: #{ast_forward.16} parent=0 // pred_region
    _
  $region13: #{ast_forward.16} parent=0 // pred_fallthru
    _
  // Predicated region
  $region14: #{ast_forward.16} parent=0 // pred_check
    _
  $region15: #{ast_forward.16} parent=0 // pred_check_branch
    %16 = sbr.rel (0) target = $region17
  $region16: #{ast_forward.16} parent=0 // pred_region
    _
  $region17: #{ast_forward.16} parent=0 // pred_fallthru
    _
  %p18 = scmp.eq.s32.totalorder 0, 0
  // Predicated region
  $region18: #{ast_forward.16} parent=0 // pred_check
    %p19 = pneg %p18
  $region19: #{ast_forward.16} parent=0 // pred_check_branch
    %21 = sbr.rel (%p19) target = $region21
  $region20: #{ast_forward.16} parent=0 // pred_region
    %vm22 = vcmask 523264
    %23 = vst.msk [vmem:[#allocation2] sm:$0xff] %vm22, 0.0
    %24 = vst.msk [vmem:[#allocation2 + $0x8] sm:$0xff] %vm22, 0.0
    %vm25 = vcmask 519168
    %26 = vst.msk [vmem:[#allocation2 + $0x10] sm:$0xf] %vm25, 0.0
  $region21: #{ast_forward.16} parent=0 // pred_fallthru
    _
  %v27 = vld [vmem:[#allocation2] sm:$0xff]
  %v28 = vld [vmem:[#allocation2 + $0x8] sm:$0xff]
  %v29 = vld [vmem:[#allocation2 + $0x10] sm:$0xf]
  %v30 = vld [vmem:[%s0] sm:$0xf]
  %v31 = vld [vmem:[%s0 + $0x4] sm:$0xf]
  %v32 = vld [vmem:[%s0 + $0x8] sm:$0x3]
  %v33 = vld [vmem:[%s1] sm:$0xf]
  %v34 = vld [vmem:[%s1 + $0x4] sm:$0xf]
  %v35 = vld [vmem:[%s1 + $0x8] sm:$0xf]
  %v36 = vld [vmem:[%s1 + $0xc] sm:$0xf]
  %v37 = vld [vmem:[%s1 + $0x10] sm:$0xf]
  %v38 = vld [vmem:[%s1 + $0x14] sm:$0xf]
  %v39 = vld [vmem:[%s1 + $0x18] sm:$0xf]
  %v40 = vld [vmem:[%s1 + $0x1c] sm:$0xf]
  %v44 = vunpack.c.l.b16 %v30
  %v45 = vunpack.c.l.b16 %v31
  %v46 = vunpack.c.l.b16 %v32
  %v47 = vpack.c.b16 %v45, %v44
  %v48 = vpack.c.b16 %v46, %v46
  %v57 = vunpack.c.l.b16 %v33
  %v58 = vunpack.c.l.b16 %v34
  %v59 = vunpack.c.l.b16 %v35
  %v60 = vunpack.c.l.b16 %v36
  %v61 = vunpack.c.l.b16 %v37
  %v62 = vunpack.c.l.b16 %v38
  %v63 = vunpack.c.l.b16 %v39
  %v64 = vunpack.c.l.b16 %v40
  %v65 = vpack.c.b16 %v58, %v57
  %v66 = vpack.c.b16 %v60, %v59
  %v67 = vpack.c.b16 %v62, %v61
  %v68 = vpack.c.b16 %v64, %v63
  %vm73 = vcmask 523264
  %v75 = vsel %vm73, %v47, 0
  %v78 = vsel %vm73, %v48, 0
  %80 = vmatprep.subr.bf16.mxu0 0
  %81 = vmatpush1.bf16.msra.mxu0 %v65
  %82 = vmatprep.subr.bf16.mxu0 0
  %83 = vmatpush1.bf16.msra.mxu0 %v66
  %84 = vmatprep.subr.bf16.mxu0 0
  %85 = vmatpush1.bf16.msra.mxu0 %v67
  %86 = vmatprep.subr.bf16.mxu0 0
  %87 = vmatpush1.bf16.msra.mxu0 %v68
  %88 = vmatprep.subr.bf16.mxu0 0
  %89 = vmatpush1.bf16.msra.mxu0 0
  %90 = vmatprep.subr.bf16.mxu0 0
  %91 = vmatpush1.bf16.msra.mxu0 0
  %92 = vmatprep.subr.bf16.mxu0 0
  %93 = vmatpush1.bf16.msra.mxu0 0
  %94 = vmatprep.subr.bf16.mxu0 0
  %95 = vmatpush1.bf16.msra.mxu0 0
  %96 = vmatprep.subr.bf16.mxu0 0
  %97 = vmatpush1.bf16.msra.mxu0 0
  %98 = vmatprep.subr.bf16.mxu0 0
  %99 = vmatpush1.bf16.msra.mxu0 0
  %100 = vmatprep.subr.bf16.mxu0 0
  %101 = vmatpush1.bf16.msra.mxu0 0
  %102 = vmatprep.subr.bf16.mxu0 0
  %103 = vmatpush1.bf16.msra.mxu0 0
  %104 = vmatprep.subr.bf16.mxu0 0
  %105 = vmatpush1.bf16.msra.mxu0 0
  %106 = vmatprep.subr.bf16.mxu0 0
  %107 = vmatpush1.bf16.msra.mxu0 0
  %108 = vmatprep.subr.bf16.mxu0 0
  %109 = vmatpush1.bf16.msra.mxu0 0
  %110 = vmatprep.subr.bf16.mxu0 0
  %111 = vmatpush1.bf16.msra.mxu0 0
  %112 = vmatprep.mubr.bf16.mxu0 0
  %113 = vmatmul.mubr.bf16.gmra.mrb[0].mxu0 %v75
  %v114 = vpop.f32.mrb[0].mxu0
  %v115 = vadd.f32 0.0, %v114
  %v116 = vpop.f32.mrb[0].mxu0
  %v117 = vpop.f32.mrb[0].mxu0
  %v118 = vadd.f32 0.0, %v117
  %v119 = vpop.f32.mrb[0].mxu0
  %120 = vmatprep.mubr.bf16.mxu0 0
  %121 = vmatmul.mubr.bf16.gmra.mrb[0].mxu0 %v78
  %v122 = vpop.f32.mrb[0].mxu0
  %v123 = vadd.f32 0.0, %v122
  %v124 = vpop.f32.mrb[0].mxu0
  %v125 = vpop.f32.mrb[0].mxu0
  %v126 = vpop.f32.mrb[0].mxu0
  %127 = vdwg.mxu0
  %v128 = vadd.f32 %v27, %v115
  %v129 = vadd.f32 %v28, %v118
  %v130 = vadd.f32 %v29, %v123
  %131 = vst.msk [vmem:[#allocation2] sm:$0xff] %vm73, %v128
  %132 = vst.msk [vmem:[#allocation2 + $0x8] sm:$0xff] %vm73, %v129
  %vm133 = vcmask 519168
  %134 = vst.msk [vmem:[#allocation2 + $0x10] sm:$0xf] %vm133, %v130
  // Predicated region
  $region22: #{ast_forward.16} parent=0 // pred_check
    %p135 = pneg %p18
  $region23: #{ast_forward.16} parent=0 // pred_check_branch
    %137 = sbr.rel (%p135) target = $region25
  $region24: #{ast_forward.16} parent=0 // pred_region
    %v138 = vld [vmem:[#allocation2] sm:$0xff]
    %v139 = vld [vmem:[#allocation2 + $0x8] sm:$0xff]
    %v140 = vld [vmem:[#allocation2 + $0x10] sm:$0xf]
    %v141 = vld [vmem:[%s2] sm:$0x1]
    %v143 = vlaneseq
    %v144 = vshrl.u32 %v143, 7
    %v145 = vsub.s32 0, %v144
    %v146 = vrot.slane %v141, %v145
    %v148 = vadd.f32 %v138, %v146
    %v149 = vadd.f32 %v139, %v146
    %v150 = vadd.f32 %v140, %v146
    %v151 = vld [vmem:[%s3] sm:$0xf]
    %v152 = vld [vmem:[%s3 + $0x4] sm:$0xf]
    %v153 = vld [vmem:[%s3 + $0x8] sm:$0x3]
    %v154 = vunpack.c.l.bf16 %v151
    %v155 = vunpack.c.l.bf16 %v152
    %v156 = vunpack.c.l.bf16 %v153
    %v157 = vadd.f32 %v148, %v154
    %v158 = vadd.f32 %v149, %v155
    %v159 = vadd.f32 %v150, %v156
    %v160 = vpack.c.bf16 %v158, %v157
    %v161 = vpack.c.bf16 %v159, %v159
    %v164 = vunpack.c.l.b16 %v160
    %v165 = vunpack.c.h.b16 %v160
    %v166 = vunpack.c.l.b16 %v161
    %v167 = vpack.c.b16 %v164, %v164
    %v168 = vpack.c.b16 %v165, %v165
    %v169 = vpack.c.b16 %v166, %v166
    %173 = vst.msk [vmem:[%s4] sm:$0xf] %vm133, %v167
    %174 = vst.msk [vmem:[%s4 + $0x4] sm:$0xf] %vm133, %v168
    %vm175 = vcmask 517120
    %176 = vst.msk [vmem:[%s4 + $0x8] sm:$0x3] %vm175, %v169
  $region25: #{ast_forward.16} parent=0 // pred_fallthru
    _
  // Predicated region
  $region26: #{ast_forward.16} parent=0 // pred_check
    _
  $region27: #{ast_forward.16} parent=0 // pred_check_branch
    %178 = sbr.rel (0) target = $region29
  $region28: #{ast_forward.16} parent=0 // pred_region
    _
  $region29: #{ast_forward.16} parent=0 // pred_fallthru
    _
  // Predicated region
  $region30: #{ast_forward.16} parent=0 // pred_check
    _
  $region31: #{ast_forward.16} parent=0 // pred_check_branch
    %180 = sbr.rel (0) target = $region33
  $region32: #{ast_forward.16} parent=0 // pred_region
    _
  $region33: #{ast_forward.16} parent=0 // pred_fallthru
    _

// kernel: ast_forward.13
$region0: #{ast_forward.13}
  #allocation0 [shape = 'u32[]', space=smem, size = 0x4, offset = 0x4, fixed_abs, tag = 'smem constant byte address 0x4 - core index']
  #allocation1 [shape = 'u32[144,128]{1,0:T(1,128)}', space=vmem, size = 0x12000, scoped, tag = 'internal scratch']
  #allocation2 [shape = 'f32[16,64]{1,0:T(8,128)}', space=vmem, size = 0x2000, scoped, tag = 'scratch operand']
  %s0 = inlined_call_operand.vmem [shape: bf16[16,256], index: 0, kind: input, shape index: {}]
  %s1 = inlined_call_operand.vmem [shape: bf16[256,64], index: 1, kind: input, shape index: {}]
  %s2 = inlined_call_operand.vmem [shape: f32[1,64], index: 2, kind: input, shape index: {}]
  %s3 = inlined_call_operand.vmem [shape: bf16[16,64], index: 3, kind: output, shape index: {}]
  %s4 = sld [smem:[#allocation0]]
  $region30: #{ast_forward.13} parent=0
    _
  %s6 = ssub.s32 1, %s4
  %s7 = scalar_select 0, %s6, %s4
  // Predicated region
  $region2: #{ast_forward.13} parent=0 // pred_check
    _
  $region3: #{ast_forward.13} parent=0 // pred_check_branch
    %9 = sbr.rel (0) target = $region5
  $region4: #{ast_forward.13} parent=0 // pred_region
    _
  $region5: #{ast_forward.13} parent=0 // pred_fallthru
    _
  // Predicated region
  $region6: #{ast_forward.13} parent=0 // pred_check
    _
  $region7: #{ast_forward.13} parent=0 // pred_check_branch
    %11 = sbr.rel (0) target = $region9
  $region8: #{ast_forward.13} parent=0 // pred_region
    _
  $region9: #{ast_forward.13} parent=0 // pred_fallthru
    _
  // Predicated region
  $region10: #{ast_forward.13} parent=0 // pred_check
    _
  $region11: #{ast_forward.13} parent=0 // pred_check_branch
    %13 = sbr.rel (0) target = $region13
  $region12: #{ast_forward.13} parent=0 // pred_region
    _
  $region13: #{ast_forward.13} parent=0 // pred_fallthru
    _
  %p15 = scmp.eq.s32.totalorder 0, 0
  // Predicated region
  $region14: #{ast_forward.13} parent=0 // pred_check
    %p16 = pneg %p15
  $region15: #{ast_forward.13} parent=0 // pred_check_branch
    %18 = sbr.rel (%p16) target = $region17
  $region16: #{ast_forward.13} parent=0 // pred_region
    %vm19 = vcmask 523264
    %20 = vst.msk [vmem:[#allocation2] sm:$0xff] %vm19, 0.0
    %21 = vst.msk [vmem:[#allocation2 + $0x8] sm:$0xff] %vm19, 0.0
  $region17: #{ast_forward.13} parent=0 // pred_fallthru
    _
  %v22 = vld [vmem:[#allocation2] sm:$0xff]
  %v23 = vld [vmem:[#allocation2 + $0x8] sm:$0xff]
  %v24 = vld [vmem:[%s0] sm:$0xff]
  %v25 = vld [vmem:[%s0 + $0x8] sm:$0xff]
  %v26 = vld [vmem:[%s1] sm:$0xf]
  %v27 = vld [vmem:[%s1 + $0x4] sm:$0xf]
  %v28 = vld [vmem:[%s1 + $0x8] sm:$0xf]
  %v29 = vld [vmem:[%s1 + $0xc] sm:$0xf]
  %v30 = vld [vmem:[%s1 + $0x10] sm:$0xf]
  %v31 = vld [vmem:[%s1 + $0x14] sm:$0xf]
  %v32 = vld [vmem:[%s1 + $0x18] sm:$0xf]
  %v33 = vld [vmem:[%s1 + $0x1c] sm:$0xf]
  %v34 = vld [vmem:[%s1 + $0x20] sm:$0xf]
  %v35 = vld [vmem:[%s1 + $0x24] sm:$0xf]
  %v36 = vld [vmem:[%s1 + $0x28] sm:$0xf]
  %v37 = vld [vmem:[%s1 + $0x2c] sm:$0xf]
  %v38 = vld [vmem:[%s1 + $0x30] sm:$0xf]
  %v39 = vld [vmem:[%s1 + $0x34] sm:$0xf]
  %v40 = vld [vmem:[%s1 + $0x38] sm:$0xf]
  %v41 = vld [vmem:[%s1 + $0x3c] sm:$0xf]
  %v42 = vld [vmem:[%s1 + $0x40] sm:$0xf]
  %v43 = vld [vmem:[%s1 + $0x44] sm:$0xf]
  %v44 = vld [vmem:[%s1 + $0x48] sm:$0xf]
  %v45 = vld [vmem:[%s1 + $0x4c] sm:$0xf]
  %v46 = vld [vmem:[%s1 + $0x50] sm:$0xf]
  %v47 = vld [vmem:[%s1 + $0x54] sm:$0xf]
  %v48 = vld [vmem:[%s1 + $0x58] sm:$0xf]
  %v49 = vld [vmem:[%s1 + $0x5c] sm:$0xf]
  %v50 = vld [vmem:[%s1 + $0x60] sm:$0xf]
  %v51 = vld [vmem:[%s1 + $0x64] sm:$0xf]
  %v52 = vld [vmem:[%s1 + $0x68] sm:$0xf]
  %v53 = vld [vmem:[%s1 + $0x6c] sm:$0xf]
  %v54 = vld [vmem:[%s1 + $0x70] sm:$0xf]
  %v55 = vld [vmem:[%s1 + $0x74] sm:$0xf]
  %v56 = vld [vmem:[%s1 + $0x78] sm:$0xf]
  %v57 = vld [vmem:[%s1 + $0x7c] sm:$0xf]
  %v60 = vunpack.c.l.b16 %v24
  %v61 = vunpack.c.h.b16 %v24
  %v62 = vunpack.c.l.b16 %v25
  %v63 = vunpack.c.h.b16 %v25
  %v64 = vpack.c.b16 %v62, %v60
  %v65 = vpack.c.b16 %v63, %v61
  %v100 = vunpack.c.l.b16 %v26
  %v101 = vunpack.c.l.b16 %v27
  %v102 = vunpack.c.l.b16 %v28
  %v103 = vunpack.c.l.b16 %v29
  %v104 = vunpack.c.l.b16 %v30
  %v105 = vunpack.c.l.b16 %v31
  %v106 = vunpack.c.l.b16 %v32
  %v107 = vunpack.c.l.b16 %v33
  %v108 = vunpack.c.l.b16 %v34
  %v109 = vunpack.c.l.b16 %v35
  %v110 = vunpack.c.l.b16 %v36
  %v111 = vunpack.c.l.b16 %v37
  %v112 = vunpack.c.l.b16 %v38
  %v113 = vunpack.c.l.b16 %v39
  %v114 = vunpack.c.l.b16 %v40
  %v115 = vunpack.c.l.b16 %v41
  %v116 = vunpack.c.l.b16 %v42
  %v117 = vunpack.c.l.b16 %v43
  %v118 = vunpack.c.l.b16 %v44
  %v119 = vunpack.c.l.b16 %v45
  %v120 = vunpack.c.l.b16 %v46
  %v121 = vunpack.c.l.b16 %v47
  %v122 = vunpack.c.l.b16 %v48
  %v123 = vunpack.c.l.b16 %v49
  %v124 = vunpack.c.l.b16 %v50
  %v125 = vunpack.c.l.b16 %v51
  %v126 = vunpack.c.l.b16 %v52
  %v127 = vunpack.c.l.b16 %v53
  %v128 = vunpack.c.l.b16 %v54
  %v129 = vunpack.c.l.b16 %v55
  %v130 = vunpack.c.l.b16 %v56
  %v131 = vunpack.c.l.b16 %v57
  %v132 = vpack.c.b16 %v101, %v100
  %v133 = vpack.c.b16 %v103, %v102
  %v134 = vpack.c.b16 %v105, %v104
  %v135 = vpack.c.b16 %v107, %v106
  %v136 = vpack.c.b16 %v109, %v108
  %v137 = vpack.c.b16 %v111, %v110
  %v138 = vpack.c.b16 %v113, %v112
  %v139 = vpack.c.b16 %v115, %v114
  %v140 = vpack.c.b16 %v117, %v116
  %v141 = vpack.c.b16 %v119, %v118
  %v142 = vpack.c.b16 %v121, %v120
  %v143 = vpack.c.b16 %v123, %v122
  %v144 = vpack.c.b16 %v125, %v124
  %v145 = vpack.c.b16 %v127, %v126
  %v146 = vpack.c.b16 %v129, %v128
  %v147 = vpack.c.b16 %v131, %v130
  %164 = vmatprep.subr.bf16.mxu0 0
  %165 = vmatpush1.bf16.msra.mxu0 %v132
  %166 = vmatprep.subr.bf16.mxu0 0
  %167 = vmatpush1.bf16.msra.mxu0 %v133
  %168 = vmatprep.subr.bf16.mxu0 0
  %169 = vmatpush1.bf16.msra.mxu0 %v134
  %170 = vmatprep.subr.bf16.mxu0 0
  %171 = vmatpush1.bf16.msra.mxu0 %v135
  %172 = vmatprep.subr.bf16.mxu0 0
  %173 = vmatpush1.bf16.msra.mxu0 %v136
  %174 = vmatprep.subr.bf16.mxu0 0
  %175 = vmatpush1.bf16.msra.mxu0 %v137
  %176 = vmatprep.subr.bf16.mxu0 0
  %177 = vmatpush1.bf16.msra.mxu0 %v138
  %178 = vmatprep.subr.bf16.mxu0 0
  %179 = vmatpush1.bf16.msra.mxu0 %v139
  %180 = vmatprep.subr.bf16.mxu0 0
  %181 = vmatpush1.bf16.msra.mxu0 %v140
  %182 = vmatprep.subr.bf16.mxu0 0
  %183 = vmatpush1.bf16.msra.mxu0 %v141
  %184 = vmatprep.subr.bf16.mxu0 0
  %185 = vmatpush1.bf16.msra.mxu0 %v142
  %186 = vmatprep.subr.bf16.mxu0 0
  %187 = vmatpush1.bf16.msra.mxu0 %v143
  %188 = vmatprep.subr.bf16.mxu0 0
  %189 = vmatpush1.bf16.msra.mxu0 %v144
  %190 = vmatprep.subr.bf16.mxu0 0
  %191 = vmatpush1.bf16.msra.mxu0 %v145
  %192 = vmatprep.subr.bf16.mxu0 0
  %193 = vmatpush1.bf16.msra.mxu0 %v146
  %194 = vmatprep.subr.bf16.mxu0 0
  %195 = vmatpush1.bf16.msra.mxu0 %v147
  %196 = vmatprep.mubr.bf16.mxu0 %v65
  %197 = vmatmul.mubr.bf16.gmra.mrb[0].mxu0 %v64
  %v198 = vpop.f32.mrb[0].mxu0
  %v199 = vadd.f32 0.0, %v198
  %v200 = vpop.f32.mrb[0].mxu0
  %v201 = vpop.f32.mrb[0].mxu0
  %v202 = vadd.f32 0.0, %v201
  %v203 = vpop.f32.mrb[0].mxu0
  %204 = vdwg.mxu0
  %v205 = vadd.f32 %v22, %v199
  %v206 = vadd.f32 %v23, %v202
  %vm207 = vcmask 523264
  %208 = vst.msk [vmem:[#allocation2] sm:$0xff] %vm207, %v205
  %209 = vst.msk [vmem:[#allocation2 + $0x8] sm:$0xff] %vm207, %v206
  // Predicated region
  $region18: #{ast_forward.13} parent=0 // pred_check
    %p210 = pneg %p15
  $region19: #{ast_forward.13} parent=0 // pred_check_branch
    %212 = sbr.rel (%p210) target = $region21
  $region20: #{ast_forward.13} parent=0 // pred_region
    %v213 = vld [vmem:[#allocation2] sm:$0xff]
    %v214 = vld [vmem:[#allocation2 + $0x8] sm:$0xff]
    %v215 = vld [vmem:[%s2] sm:$0x1]
    %v217 = vlaneseq
    %v218 = vshrl.u32 %v217, 7
    %v219 = vsub.s32 0, %v218
    %v220 = vrot.slane %v215, %v219
    %v222 = vadd.f32 %v213, %v220
    %v223 = vadd.f32 %v214, %v220
    %v224 = vpack.c.bf16 %v223, %v222
    %v226 = vunpack.c.l.b16 %v224
    %v227 = vunpack.c.h.b16 %v224
    %v228 = vpack.c.b16 %v226, %v226
    %v229 = vpack.c.b16 %v227, %v227
    %vm232 = vcmask 519168
    %233 = vst.msk [vmem:[%s3] sm:$0xf] %vm232, %v228
    %234 = vst.msk [vmem:[%s3 + $0x4] sm:$0xf] %vm232, %v229
  $region21: #{ast_forward.13} parent=0 // pred_fallthru
    _
  // Predicated region
  $region22: #{ast_forward.13} parent=0 // pred_check
    _
  $region23: #{ast_forward.13} parent=0 // pred_check_branch
    %236 = sbr.rel (0) target = $region25
  $region24: #{ast_forward.13} parent=0 // pred_region
    _
  $region25: #{ast_forward.13} parent=0 // pred_fallthru
    _
  // Predicated region
  $region26: #{ast_forward.13} parent=0 // pred_check
    _
  $region27: #{ast_forward.13} parent=0 // pred_check_branch
    %238 = sbr.rel (0) target = $region29
  $region28: #{ast_forward.13} parent=0 // pred_region
    _
  $region29: #{ast_forward.13} parent=0 // pred_fallthru
    _

// kernel: ast_forward.14
$region0: #{ast_forward.14}
  #allocation0 [shape = 'u32[]', space=smem, size = 0x4, offset = 0x4, fixed_abs, tag = 'smem constant byte address 0x4 - core index']
  #allocation1 [shape = 'u32[144,128]{1,0:T(1,128)}', space=vmem, size = 0x12000, scoped, tag = 'internal scratch']
  #allocation2 [shape = 'bf16[20,64]{1,0:T(8,128)(2,1)}', space=vmem, size = 0x1800, scoped, tag = 'scratch operand']
  %s0 = inlined_call_operand.vmem [shape: bf16[20,64], index: 0, kind: input, shape index: {}]
  %s1 = inlined_call_operand.vmem [shape: f32[1,64], index: 1, kind: input, shape index: {}]
  %s2 = inlined_call_operand.vmem [shape: f32[1,64], index: 2, kind: input, shape index: {}]
  %s3 = inlined_call_operand.vmem [shape: bf16[64,192], index: 3, kind: input, shape index: {}]
  %s4 = inlined_call_operand.vmem [shape: f32[1,192], index: 4, kind: input, shape index: {}]
  %s5 = inlined_call_operand.vmem [shape: bf16[20,192], index: 5, kind: output, shape index: {}]
  %s6 = sld [smem:[#allocation0]]
  $region34: #{ast_forward.14} parent=0
    _
  %s8 = ssub.s32 1, %s6
  %s9 = scalar_select 0, %s8, %s6
  // Predicated region
  $region2: #{ast_forward.14} parent=0 // pred_check
    _
  $region3: #{ast_forward.14} parent=0 // pred_check_branch
    %11 = sbr.rel (0) target = $region5
  $region4: #{ast_forward.14} parent=0 // pred_region
    _
  $region5: #{ast_forward.14} parent=0 // pred_fallthru
    _
  // Predicated region
  $region6: #{ast_forward.14} parent=0 // pred_check
    _
  $region7: #{ast_forward.14} parent=0 // pred_check_branch
    %13 = sbr.rel (0) target = $region9
  $region8: #{ast_forward.14} parent=0 // pred_region
    _
  $region9: #{ast_forward.14} parent=0 // pred_fallthru
    _
  // Predicated region
  $region10: #{ast_forward.14} parent=0 // pred_check
    _
  $region11: #{ast_forward.14} parent=0 // pred_check_branch
    %15 = sbr.rel (0) target = $region13
  $region12: #{ast_forward.14} parent=0 // pred_region
    _
  $region13: #{ast_forward.14} parent=0 // pred_fallthru
    _
  // Predicated region
  $region14: #{ast_forward.14} parent=0 // pred_check
    _
  $region15: #{ast_forward.14} parent=0 // pred_check_branch
    %17 = sbr.rel (0) target = $region17
  $region16: #{ast_forward.14} parent=0 // pred_region
    _
  $region17: #{ast_forward.14} parent=0 // pred_fallthru
    _
  // Predicated region
  $region18: #{ast_forward.14} parent=0 // pred_check
    _
  $region19: #{ast_forward.14} parent=0 // pred_check_branch
    %19 = sbr.rel (0) target = $region21
  $region20: #{ast_forward.14} parent=0 // pred_region
    _
  $region21: #{ast_forward.14} parent=0 // pred_fallthru
    _
  %p21 = scmp.eq.s32.totalorder 0, 0
  // Predicated region
  $region22: #{ast_forward.14} parent=0 // pred_check
    %p22 = pneg %p21
  $region23: #{ast_forward.14} parent=0 // pred_check_branch
    %24 = sbr.rel (%p22) target = $region25
  $region24: #{ast_forward.14} parent=0 // pred_region
    %v25 = vld [vmem:[%s0] sm:$0xf]
    %v26 = vld [vmem:[%s0 + $0x4] sm:$0xf]
    %v27 = vld [vmem:[%s0 + $0x8] sm:$0x3]
    %v28 = vunpack.c.l.bf16 %v25
    %v29 = vunpack.c.l.bf16 %v26
    %v30 = vunpack.c.l.bf16 %v27
    %vm31 = vcmask 523264
    %v32 = vsel %vm31, %v28, 0.0
    %33 = vadd.xlane.f32.xlu0 %v32
    %v34 = vpop.xlane.xlu0 %33
    %v35 = vsel %vm31, %v29, 0.0
    %36 = vadd.xlane.f32.xlu0 %v35
    %v37 = vpop.xlane.xlu0 %36
    %vm38 = vcmask 519168
    %v39 = vsel %vm38, %v30, 0.0
    %40 = vadd.xlane.f32.xlu0 %v39
    %v41 = vpop.xlane.xlu0 %40
    %v42 = vrcp.pop 64.0
    %v43 = vmul.f32 %v34, %v42
    %v44 = vmul.f32 %v37, %v42
    %v45 = vmul.f32 %v41, %v42
    %v46 = vsub.f32 %v28, %v43
    %v47 = vsub.f32 %v29, %v44
    %v48 = vsub.f32 %v30, %v45
    %v49 = vmul.f32 %v46, %v46
    %v50 = vmul.f32 %v47, %v47
    %v51 = vmul.f32 %v48, %v48
    %v52 = vsel %vm31, %v49, 0.0
    %53 = vadd.xlane.f32.xlu0 %v52
    %v54 = vpop.xlane.xlu0 %53
    %v55 = vsel %vm31, %v50, 0.0
    %56 = vadd.xlane.f32.xlu0 %v55
    %v57 = vpop.xlane.xlu0 %56
    %v58 = vsel %vm38, %v51, 0.0
    %59 = vadd.xlane.f32.xlu0 %v58
    %v60 = vpop.xlane.xlu0 %59
    %v61 = vmul.f32 %v54, %v42
    %v62 = vmul.f32 %v57, %v42
    %v63 = vmul.f32 %v60, %v42
    %v64 = vadd.f32 %v61, 1e-06
    %v65 = vadd.f32 %v62, 1e-06
    %v66 = vadd.f32 %v63, 1e-06
    %v67 = vrsqrt.pop %v64
    %v68 = vrsqrt.pop %v65
    %v69 = vrsqrt.pop %v66
    %v70 = vmul.f32 %v46, %v67
    %v71 = vmul.f32 %v47, %v68
    %v72 = vmul.f32 %v48, %v69
    %v73 = vld [vmem:[%s1] sm:$0x1]
    %v75 = vlaneseq
    %v76 = vshrl.u32 %v75, 7
    %v77 = vsub.s32 0, %v76
    %v78 = vrot.slane %v73, %v77
    %v80 = vmul.f32 %v70, %v78
    %v81 = vmul.f32 %v71, %v78
    %v82 = vmul.f32 %v72, %v78
    %v83 = vld [vmem:[%s2] sm:$0x1]
    %v85 = vlaneseq
    %v86 = vshrl.u32 %v85, 7
    %v87 = vsub.s32 0, %v86
    %v88 = vrot.slane %v83, %v87
    %v90 = vadd.f32 %v80, %v88
    %v91 = vadd.f32 %v81, %v88
    %v92 = vadd.f32 %v82, %v88
    %v93 = vpack.c.bf16 %v91, %v90
    %v94 = vpack.c.bf16 %v92, %v92
    %v97 = vunpack.c.l.b16 %v93
    %v98 = vunpack.c.h.b16 %v93
    %v99 = vunpack.c.l.b16 %v94
    %v100 = vpack.c.b16 %v97, %v97
    %v101 = vpack.c.b16 %v98, %v98
    %v102 = vpack.c.b16 %v99, %v99
    %106 = vst.msk [vmem:[#allocation2] sm:$0xf] %vm38, %v100
    %107 = vst.msk [vmem:[#allocation2 + $0x4] sm:$0xf] %vm38, %v101
    %vm108 = vcmask 517120
    %109 = vst.msk [vmem:[#allocation2 + $0x8] sm:$0x3] %vm108, %v102
  $region25: #{ast_forward.14} parent=0 // pred_fallthru
    _
  %v110 = vld [vmem:[#allocation2] sm:$0xf]
  %v111 = vld [vmem:[#allocation2 + $0x4] sm:$0xf]
  %v112 = vld [vmem:[#allocation2 + $0x8] sm:$0x3]
  %v113 = vld [vmem:[%s3] sm:$0xff]
  %v114 = vld [vmem:[%s3 + $0x8] sm:$0xff]
  %v115 = vld [vmem:[%s3 + $0x10] sm:$0xff]
  %v116 = vld [vmem:[%s3 + $0x18] sm:$0xff]
  %v117 = vld [vmem:[%s3 + $0x20] sm:$0xff]
  %v118 = vld [vmem:[%s3 + $0x28] sm:$0xff]
  %v119 = vld [vmem:[%s3 + $0x30] sm:$0xff]
  %v120 = vld [vmem:[%s3 + $0x38] sm:$0xff]
  %v121 = vld [vmem:[%s4] sm:$0x3]
  %v123 = vlaneseq
  %v124 = vshrl.u32 %v123, 7
  %v125 = vsub.s32 0, %v124
  %v126 = vrot.slane %v121, %v125
  %v127 = vlaneseq
  %v128 = vshrl.u32 %v127, 7
  %v129 = vsub.s32 1, %v128
  %v130 = vrot.slane %v121, %v129
  %v136 = vunpack.c.l.b16 %v110
  %v137 = vunpack.c.l.b16 %v111
  %v138 = vunpack.c.l.b16 %v112
  %v139 = vpack.c.b16 %v137, %v136
  %v140 = vpack.c.b16 %v138, %v138
  %v149 = vunpack.c.l.b16 %v113
  %v150 = vunpack.c.h.b16 %v113
  %v151 = vunpack.c.l.b16 %v114
  %v152 = vunpack.c.h.b16 %v114
  %v153 = vunpack.c.l.b16 %v115
  %v154 = vunpack.c.h.b16 %v115
  %v155 = vunpack.c.l.b16 %v116
  %v156 = vunpack.c.h.b16 %v116
  %v157 = vunpack.c.l.b16 %v117
  %v158 = vunpack.c.h.b16 %v117
  %v159 = vunpack.c.l.b16 %v118
  %v160 = vunpack.c.h.b16 %v118
  %v161 = vunpack.c.l.b16 %v119
  %v162 = vunpack.c.h.b16 %v119
  %v163 = vunpack.c.l.b16 %v120
  %v164 = vunpack.c.h.b16 %v120
  %v165 = vpack.c.b16 %v151, %v149
  %v166 = vpack.c.b16 %v152, %v150
  %v167 = vpack.c.b16 %v155, %v153
  %v168 = vpack.c.b16 %v156, %v154
  %v169 = vpack.c.b16 %v159, %v157
  %v170 = vpack.c.b16 %v160, %v158
  %v171 = vpack.c.b16 %v163, %v161
  %v172 = vpack.c.b16 %v164, %v162
  %vm181 = vcmask 523264
  %v183 = vsel %vm181, %v139, 0
  %v186 = vsel %vm181, %v140, 0
  %188 = vmatprep.subr.bf16.mxu0 %v166
  %189 = vmatpush1.bf16.msra.mxu0 %v165
  %190 = vmatprep.subr.bf16.mxu0 %v168
  %191 = vmatpush1.bf16.msra.mxu0 %v167
  %192 = vmatprep.subr.bf16.mxu0 %v170
  %193 = vmatpush1.bf16.msra.mxu0 %v169
  %194 = vmatprep.subr.bf16.mxu0 %v172
  %195 = vmatpush1.bf16.msra.mxu0 %v171
  %196 = vmatprep.subr.bf16.mxu0 0
  %197 = vmatpush1.bf16.msra.mxu0 0
  %198 = vmatprep.subr.bf16.mxu0 0
  %199 = vmatpush1.bf16.msra.mxu0 0
  %200 = vmatprep.subr.bf16.mxu0 0
  %201 = vmatpush1.bf16.msra.mxu0 0
  %202 = vmatprep.subr.bf16.mxu0 0
  %203 = vmatpush1.bf16.msra.mxu0 0
  %204 = vmatprep.subr.bf16.mxu0 0
  %205 = vmatpush1.bf16.msra.mxu0 0
  %206 = vmatprep.subr.bf16.mxu0 0
  %207 = vmatpush1.bf16.msra.mxu0 0
  %208 = vmatprep.subr.bf16.mxu0 0
  %209 = vmatpush1.bf16.msra.mxu0 0
  %210 = vmatprep.subr.bf16.mxu0 0
  %211 = vmatpush1.bf16.msra.mxu0 0
  %212 = vmatprep.subr.bf16.mxu0 0
  %213 = vmatpush1.bf16.msra.mxu0 0
  %214 = vmatprep.subr.bf16.mxu0 0
  %215 = vmatpush1.bf16.msra.mxu0 0
  %216 = vmatprep.subr.bf16.mxu0 0
  %217 = vmatpush1.bf16.msra.mxu0 0
  %218 = vmatprep.subr.bf16.mxu0 0
  %219 = vmatpush1.bf16.msra.mxu0 0
  %220 = vmatprep.mubr.bf16.mxu0 0
  %221 = vmatmul.mubr.bf16.gmra.mrb[0].mxu0 %v183
  %v222 = vpop.f32.mrb[0].mxu0
  %v223 = vadd.f32 %v126, %v222
  %v224 = vpop.f32.mrb[0].mxu0
  %v225 = vadd.f32 %v130, %v224
  %v226 = vpop.f32.mrb[0].mxu0
  %v227 = vadd.f32 %v126, %v226
  %v228 = vpop.f32.mrb[0].mxu0
  %v229 = vadd.f32 %v130, %v228
  %230 = vmatprep.mubr.bf16.mxu0 0
  %231 = vmatmul.mubr.bf16.gmra.mrb[0].mxu0 %v186
  %v232 = vpop.f32.mrb[0].mxu0
  %v233 = vadd.f32 %v126, %v232
  %v234 = vpop.f32.mrb[0].mxu0
  %v235 = vadd.f32 %v130, %v234
  %v236 = vpop.f32.mrb[0].mxu0
  %v237 = vpop.f32.mrb[0].mxu0
  %238 = vdwg.mxu0
  %v239 = vpack.c.bf16 %v227, %v223
  %v240 = vpack.c.bf16 %v229, %v225
  %v241 = vpack.c.bf16 %v233, %v233
  %v242 = vpack.c.bf16 %v235, %v235
  %v247 = vunpack.c.l.b16 %v239
  %v248 = vunpack.c.l.b16 %v240
  %v249 = vunpack.c.h.b16 %v239
  %v250 = vunpack.c.h.b16 %v240
  %v251 = vunpack.c.l.b16 %v241
  %v252 = vunpack.c.l.b16 %v242
  %v253 = vpack.c.b16 %v248, %v247
  %v254 = vpack.c.b16 %v250, %v249
  %v255 = vpack.c.b16 %v252, %v251
  %vm259 = vcmask 1043456
  %vm260 = vcmask 523268
  %vm261 = vmor %vm260, %vm259
  %262 = vst.msk [vmem:[%s5] sm:$0xff] %vm261, %v253
  %263 = vst.msk [vmem:[%s5 + $0x8] sm:$0xff] %vm261, %v254
  %vm264 = vcmask 1041408
  %vm265 = vcmask 521220
  %vm266 = vmor %vm265, %vm264
  %267 = vst.msk [vmem:[%s5 + $0x10] sm:$0x33] %vm266, %v255
  // Predicated region
  $region26: #{ast_forward.14} parent=0 // pred_check
    _
  $region27: #{ast_forward.14} parent=0 // pred_check_branch
    %269 = sbr.rel (0) target = $region29
  $region28: #{ast_forward.14} parent=0 // pred_region
    _
  $region29: #{ast_forward.14} parent=0 // pred_fallthru
    _
  // Predicated region
  $region30: #{ast_forward.14} parent=0 // pred_check
    _
  $region31: #{ast_forward.14} parent=0 // pred_check_branch
    %271 = sbr.rel (0) target = $region33
  $region32: #{ast_forward.14} parent=0 // pred_region
    _
  $region33: #{ast_forward.14} parent=0 // pred_fallthru
    _

// kernel: ast_forward.15
$region0: #{ast_forward.15}
  #allocation0 [shape = 'u32[]', space=smem, size = 0x4, offset = 0x4, fixed_abs, tag = 'smem constant byte address 0x4 - core index']
  #allocation1 [shape = 'u32[144,128]{1,0:T(1,128)}', space=vmem, size = 0x12000, scoped, tag = 'internal scratch']
  %s0 = inlined_call_operand.vmem [shape: bf16[2,10,192], index: 0, kind: input, shape index: {}]
  %s1 = inlined_call_operand.vmem [shape: bf16[2,10,64], index: 1, kind: output, shape index: {}]
  %s2 = sld [smem:[#allocation0]]
  $region37: #{ast_forward.15} parent=0
    _
  %s4 = ssub.s32 1, %s2
  %s5 = scalar_select 0, %s4, %s2
  loop: start=0, step=1, limit=4
  $region2: #{ast_forward.15} parent=0 // loop_pre_header
    _
  $region3: #{ast_forward.15} parent=0 // loop_header
    %s7 = sphi 0, %s11
    %p8 = scmp.ge.s32.totalorder %s7, 4
    %s17 = sphi 0, %s19
    %s20 = sphi 0, %s17
    %s21 = sphi 0, %s20
    %s37 = sphi 0, %s21
    %s43 = sphi 0, %s45
    %s46 = sphi 0, %s43
    %s47 = sphi 0, %s46
    %s63 = sphi 0, %s47
  $region4: #{ast_forward.15} parent=0 // loop_header_branch
    %10 = sbr.rel (%p8) target = $region8
  $region5: #{ast_forward.15} parent=0 // loop_body
    %s12 = ssub.s32 %s7, 1
    %s13 = ssub.s32 %s7, 2
    %s14 = sadd.s32 %s7, 1
    %s15 = ssub.s32 %s7, %s14
    %p16 = scmp.eq.s32.totalorder %s15, 0
    %s18 = sadd.s32 %s17, 1
    %s19 = scalar_select %p16, %s17, %s18
    %p22 = pneg %p16
    %p23 = scmp.eq.s32.totalorder %s7, 1
    %p24 = por %p22, %p23
    %p25 = scmp.ne.s32.totalorder %s17, %s20
    %p26 = scmp.eq.s32.totalorder %s7, 0
    %p27 = por %p25, %p26
    %p28 = scmp.ne.s32.totalorder %s17, %s20
    %p29 = scmp.eq.s32.totalorder %s12, 1
    %p30 = por %p28, %p29
    %p31 = scmp.ne.s32.totalorder %s20, %s21
    %p32 = scmp.eq.s32.totalorder %s12, 0
    %p33 = por %p31, %p32
    %p34 = scmp.ne.s32.totalorder %s20, %s21
    %p35 = scmp.eq.s32.totalorder %s13, 1
    %p36 = por %p34, %p35
    %p38 = scmp.ne.s32.totalorder %s21, %s37
    %p39 = scmp.eq.s32.totalorder %s13, 0
    %p40 = por %p38, %p39
    %s41 = ssub.s32 %s7, %s14
    %p42 = scmp.eq.s32.totalorder %s41, 0
    %s44 = sadd.s32 %s43, 1
    %s45 = scalar_select %p42, %s43, %s44
    %p48 = pneg %p42
    %p49 = scmp.eq.s32.totalorder %s7, 1
    %p50 = por %p48, %p49
    %p51 = scmp.ne.s32.totalorder %s43, %s46
    %p52 = scmp.eq.s32.totalorder %s7, 0
    %p53 = por %p51, %p52
    %p54 = scmp.ne.s32.totalorder %s43, %s46
    %p55 = scmp.eq.s32.totalorder %s12, 1
    %p56 = por %p54, %p55
    %p57 = scmp.ne.s32.totalorder %s46, %s47
    %p58 = scmp.eq.s32.totalorder %s12, 0
    %p59 = por %p57, %p58
    %p60 = scmp.ne.s32.totalorder %s46, %s47
    %p61 = scmp.eq.s32.totalorder %s13, 1
    %p62 = por %p60, %p61
    %p64 = scmp.ne.s32.totalorder %s47, %s63
    %p65 = scmp.eq.s32.totalorder %s13, 0
    %p66 = por %p64, %p65
    %p67 = scmp.le.s32.totalorder 1, %s7
    %p68 = scmp.lt.s32.totalorder %s7, 3
    %p69 = pnand %p67, %p68
    %p70 = pneg %p69
    // Predicated region
    $region9: #{ast_forward.15} parent=5 // pred_check
      _
    $region10: #{ast_forward.15} parent=5 // pred_check_branch
      %72 = sbr.rel (%p69) target = $region12
    $region11: #{ast_forward.15} parent=5 // pred_region
      %s73 = ssub.s32 %s7, 1
    $region12: #{ast_forward.15} parent=5 // pred_fallthru
      _
    %p74 = scmp.lt.s32.totalorder %s7, 2
    // Predicated region
    $region13: #{ast_forward.15} parent=5 // pred_check
      %p75 = pneg %p74
    $region14: #{ast_forward.15} parent=5 // pred_check_branch
      %77 = sbr.rel (%p75) target = $region16
    $region15: #{ast_forward.15} parent=5 // pred_region
      // Predicated region
      $region17: #{ast_forward.15} parent=15 // pred_check
        %p78 = pneg %p27
      $region18: #{ast_forward.15} parent=15 // pred_check_branch
        %80 = sbr.rel (%p78) target = $region20
      $region19: #{ast_forward.15} parent=15 // pred_region
        %p81 = scmp.lt.s32.totalorder %s7, 1
        %s82 = scalar_select %p81, %s7, 1
        %s83 = smul.addr %s82, 4
        %s84 = smul.addr %s83, 4
        %s85 = scalar_lea.vmem %s0, %s84
      $region20: #{ast_forward.15} parent=15 // pred_fallthru
        _
    $region16: #{ast_forward.15} parent=5 // pred_fallthru
      _
    %p86 = scmp.le.s32.totalorder 1, %s7
    %p87 = scmp.lt.s32.totalorder %s7, 3
    %p88 = pnand %p86, %p87
    %p89 = pneg %p88
    // Predicated region
    $region21: #{ast_forward.15} parent=5 // pred_check
      _
    $region22: #{ast_forward.15} parent=5 // pred_check_branch
      %91 = sbr.rel (%p88) target = $region24
    $region23: #{ast_forward.15} parent=5 // pred_region
      %s92 = ssub.s32 %s7, 1
      %p93 = scmp.lt.s32.totalorder %s12, 1
      %s94 = scalar_select %p93, %s12, 1
      %s95 = smul.addr %s94, 4
      %s96 = smul.addr %s95, 4
      %s97 = scalar_lea.vmem %s0, %s96
      %p98 = pneg %p33
      %p99 = pneg %p30
      %p100 = pneg %p59
      %p101 = pneg %p56
      %p102 = scmp.lt.s32.totalorder %s12, 1
      %s103 = scalar_select %p102, %s12, 1
      %s104 = smul.addr %s103, 2
      %s105 = smul.addr %s104, 4
      %s106 = scalar_lea.vmem %s1, %s105
      %p107 = scmp.lt.s32.totalorder %s12, 1
      %s108 = scalar_select %p107, %s12, 1
      %s109 = smul.addr %s108, 4
      %s110 = smul.addr %s109, 4
      %s111 = scalar_lea.vmem %s0, %s110
      %p112 = scmp.lt.s32.totalorder %s12, 1
      %s113 = scalar_select %p112, %s12, 1
      %s114 = smul.addr %s113, 2
      %s115 = smul.addr %s114, 4
      %s116 = scalar_lea.vmem %s1, %s115
      %v118 = vld [vmem:[%s111] sm:$0xf]
      %v119 = vld [vmem:[%s111 + $0x8] sm:$0x1]
      %v120 = vld [vmem:[%s111 + $0x4] sm:$0xf]
      %v121 = vld [vmem:[%s111 + $0xc] sm:$0x1]
      %v124 = vunpack.c.l.b16 %v118
      %v125 = vunpack.c.l.b16 %v119
      %v126 = vpack.c.b16 %v125, %v124
      %127 = vrot.lane.b32.xlu0 %v126, 64
      %v128 = vpop.permute.xlu0 %127
      %vm129 = vcmask 130048
      %v131 = vsel %vm129, %v126, 0
      %v134 = vsel %vm129, %v128, 0
      %136 = vmatprep.subr.bf16.mxu0 0
      %137 = vmatpush1.bf16.xpose.msra.mxu0 %v134
      %138 = vmatprep.subr.bf16.mxu0 0
      %139 = vmatpush1.bf16.xpose.msra.mxu0 0
      %140 = vmatprep.subr.bf16.mxu0 0
      %141 = vmatpush1.bf16.xpose.msra.mxu0 0
      %142 = vmatprep.subr.bf16.mxu0 0
      %143 = vmatpush1.bf16.xpose.msra.mxu0 0
      %144 = vmatprep.subr.bf16.mxu0 0
      %145 = vmatpush1.bf16.xpose.msra.mxu0 0
      %146 = vmatprep.subr.bf16.mxu0 0
      %147 = vmatpush1.bf16.xpose.msra.mxu0 0
      %148 = vmatprep.subr.bf16.mxu0 0
      %149 = vmatpush1.bf16.xpose.msra.mxu0 0
      %150 = vmatprep.subr.bf16.mxu0 0
      %151 = vmatpush1.bf16.xpose.msra.mxu0 0
      %152 = vmatprep.subr.bf16.mxu0 0
      %153 = vmatpush1.bf16.xpose.msra.mxu0 0
      %154 = vmatprep.subr.bf16.mxu0 0
      %155 = vmatpush1.bf16.xpose.msra.mxu0 0
      %156 = vmatprep.subr.bf16.mxu0 0
      %157 = vmatpush1.bf16.xpose.msra.mxu0 0
      %158 = vmatprep.subr.bf16.mxu0 0
      %159 = vmatpush1.bf16.xpose.msra.mxu0 0
      %160 = vmatprep.subr.bf16.mxu0 0
      %161 = vmatpush1.bf16.xpose.msra.mxu0 0
      %162 = vmatprep.subr.bf16.mxu0 0
      %163 = vmatpush1.bf16.xpose.msra.mxu0 0
      %164 = vmatprep.subr.bf16.mxu0 0
      %165 = vmatpush1.bf16.xpose.msra.mxu0 0
      %166 = vmatprep.subr.bf16.mxu0 0
      %167 = vmatpush1.bf16.xpose.msra.mxu0 0
      %168 = vmatprep.mubr.bf16.mxu0 0
      %169 = vmatmul.mubr.bf16.gmra.mrb[0].mxu0 %v131
      %v170 = vpop.f32.mrb[0].mxu0
      %v171 = vadd.f32 0.0, %v170
      %v172 = vpop.f32.mrb[0].mxu0
      %v173 = vpop.f32.mrb[0].mxu0
      %v174 = vadd.f32 0.0, %v173
      %v175 = vpop.f32.mrb[0].mxu0
      %176 = vdwg.mxu0
      %v177 = vmul.f32 %v171, 0.25
      %v178 = vmul.f32 %v174, 0.25
      %vm179 = vcmask 80896
      %v180 = vsel %vm179, %v177, -inf
      %181 = vmax.xlane.f32.xlu0 %v180
      %v182 = vpop.xlane.xlu0 %181
      %vm183 = vcmask 74752
      %v184 = vsel %vm183, %v178, -inf
      %185 = vmax.xlane.f32.xlu0 %v184
      %v186 = vpop.xlane.xlu0 %185
      %v187 = vsub.f32 %v177, %v182
      %v188 = vsub.f32 %v178, %v186
      %v189 = vmul.f32 %v187, 1.442695
      %v190 = vpow.pop %v189
      %v191 = vmul.f32 %v188, 1.442695
      %v192 = vpow.pop %v191
      %v193 = vsel %vm179, %v190, 0.0
      %194 = vadd.xlane.f32.xlu0 %v193
      %v195 = vpop.xlane.xlu0 %194
      %v196 = vsel %vm183, %v192, 0.0
      %197 = vadd.xlane.f32.xlu0 %v196
      %v198 = vpop.xlane.xlu0 %197
      %v199 = vrcp.pop %v195
      %v200 = vrcp.pop %v198
      %v201 = vmul.f32 %v190, %v199
      %v202 = vmul.f32 %v192, %v200
      %v203 = vpack.c.bf16 %v202, %v201
      %v206 = vunpack.c.l.b16 %v120
      %v207 = vunpack.c.l.b16 %v121
      %v208 = vpack.c.b16 %v207, %v206
      %v210 = vsel %vm179, %v203, 0
      %vm212 = vcmask 1044480
      %v214 = vsel %vm212, %v208, 0
      %216 = vmatprep.subr.bf16.mxu0 0
      %217 = vmatpush1.bf16.msra.mxu0 %v214
      %218 = vmatprep.subr.bf16.mxu0 0
      %219 = vmatpush1.bf16.msra.mxu0 0
      %220 = vmatprep.subr.bf16.mxu0 0
      %221 = vmatpush1.bf16.msra.mxu0 0
      %222 = vmatprep.subr.bf16.mxu0 0
      %223 = vmatpush1.bf16.msra.mxu0 0
      %224 = vmatprep.subr.bf16.mxu0 0
      %225 = vmatpush1.bf16.msra.mxu0 0
      %226 = vmatprep.subr.bf16.mxu0 0
      %227 = vmatpush1.bf16.msra.mxu0 0
      %228 = vmatprep.subr.bf16.mxu0 0
      %229 = vmatpush1.bf16.msra.mxu0 0
      %230 = vmatprep.subr.bf16.mxu0 0
      %231 = vmatpush1.bf16.msra.mxu0 0
      %232 = vmatprep.subr.bf16.mxu0 0
      %233 = vmatpush1.bf16.msra.mxu0 0
      %234 = vmatprep.subr.bf16.mxu0 0
      %235 = vmatpush1.bf16.msra.mxu0 0
      %236 = vmatprep.subr.bf16.mxu0 0
      %237 = vmatpush1.bf16.msra.mxu0 0
      %238 = vmatprep.subr.bf16.mxu0 0
      %239 = vmatpush1.bf16.msra.mxu0 0
      %240 = vmatprep.subr.bf16.mxu0 0
      %241 = vmatpush1.bf16.msra.mxu0 0
      %242 = vmatprep.subr.bf16.mxu0 0
      %243 = vmatpush1.bf16.msra.mxu0 0
      %244 = vmatprep.subr.bf16.mxu0 0
      %245 = vmatpush1.bf16.msra.mxu0 0
      %246 = vmatprep.subr.bf16.mxu0 0
      %247 = vmatpush1.bf16.msra.mxu0 0
      %248 = vmatprep.mubr.bf16.mxu0 0
      %249 = vmatmul.mubr.bf16.gmra.mrb[0].mxu0 %v210
      %v250 = vpop.f32.mrb[0].mxu0
      %v251 = vadd.f32 0.0, %v250
      %v252 = vpop.f32.mrb[0].mxu0
      %v253 = vpop.f32.mrb[0].mxu0
      %v254 = vadd.f32 0.0, %v253
      %v255 = vpop.f32.mrb[0].mxu0
      %256 = vdwg.mxu0
      %v257 = vpack.c.bf16 %v254, %v251
      %258 = vrot.lane.b32.xlu0 %v126, 112
      %v259 = vpop.permute.xlu0 %258
      %260 = vrot.lane.b32.xlu0 %v126, 48
      %v261 = vpop.permute.xlu0 %260
      %v263 = vsel %vm129, %v259, 0
      %v266 = vsel %vm129, %v261, 0
      %268 = vmatprep.subr.bf16.mxu0 0
      %269 = vmatpush1.bf16.xpose.msra.mxu0 %v266
      %270 = vmatprep.subr.bf16.mxu0 0
      %271 = vmatpush1.bf16.xpose.msra.mxu0 0
      %272 = vmatprep.subr.bf16.mxu0 0
      %273 = vmatpush1.bf16.xpose.msra.mxu0 0
      %274 = vmatprep.subr.bf16.mxu0 0
      %275 = vmatpush1.bf16.xpose.msra.mxu0 0
      %276 = vmatprep.subr.bf16.mxu0 0
      %277 = vmatpush1.bf16.xpose.msra.mxu0 0
      %278 = vmatprep.subr.bf16.mxu0 0
      %279 = vmatpush1.bf16.xpose.msra.mxu0 0
      %280 = vmatprep.subr.bf16.mxu0 0
      %281 = vmatpush1.bf16.xpose.msra.mxu0 0
      %282 = vmatprep.subr.bf16.mxu0 0
      %283 = vmatpush1.bf16.xpose.msra.mxu0 0
      %284 = vmatprep.subr.bf16.mxu0 0
      %285 = vmatpush1.bf16.xpose.msra.mxu0 0
      %286 = vmatprep.subr.bf16.mxu0 0
      %287 = vmatpush1.bf16.xpose.msra.mxu0 0
      %288 = vmatprep.subr.bf16.mxu0 0
      %289 = vmatpush1.bf16.xpose.msra.mxu0 0
      %290 = vmatprep.subr.bf16.mxu0 0
      %291 = vmatpush1.bf16.xpose.msra.mxu0 0
      %292 = vmatprep.subr.bf16.mxu0 0
      %293 = vmatpush1.bf16.xpose.msra.mxu0 0
      %294 = vmatprep.subr.bf16.mxu0 0
      %295 = vmatpush1.bf16.xpose.msra.mxu0 0
      %296 = vmatprep.subr.bf16.mxu0 0
      %297 = vmatpush1.bf16.xpose.msra.mxu0 0
      %298 = vmatprep.subr.bf16.mxu0 0
      %299 = vmatpush1.bf16.xpose.msra.mxu0 0
      %300 = vmatprep.mubr.bf16.mxu0 0
      %301 = vmatmul.mubr.bf16.gmra.mrb[0].mxu0 %v263
      %v302 = vpop.f32.mrb[0].mxu0
      %v303 = vadd.f32 0.0, %v302
      %v304 = vpop.f32.mrb[0].mxu0
      %v305 = vpop.f32.mrb[0].mxu0
      %v306 = vadd.f32 0.0, %v305
      %v307 = vpop.f32.mrb[0].mxu0
      %308 = vdwg.mxu0
      %v309 = vmul.f32 %v303, 0.25
      %v310 = vmul.f32 %v306, 0.25
      %v311 = vsel %vm179, %v309, -inf
      %312 = vmax.xlane.f32.xlu0 %v311
      %v313 = vpop.xlane.xlu0 %312
      %v314 = vsel %vm183, %v310, -inf
      %315 = vmax.xlane.f32.xlu0 %v314
      %v316 = vpop.xlane.xlu0 %315
      %v317 = vsub.f32 %v309, %v313
      %v318 = vsub.f32 %v310, %v316
      %v319 = vmul.f32 %v317, 1.442695
      %v320 = vpow.pop %v319
      %v321 = vmul.f32 %v318, 1.442695
      %v322 = vpow.pop %v321
      %v323 = vsel %vm179, %v320, 0.0
      %324 = vadd.xlane.f32.xlu0 %v323
      %v325 = vpop.xlane.xlu0 %324
      %v326 = vsel %vm183, %v322, 0.0
      %327 = vadd.xlane.f32.xlu0 %v326
      %v328 = vpop.xlane.xlu0 %327
      %v329 = vrcp.pop %v325
      %v330 = vrcp.pop %v328
      %v331 = vmul.f32 %v320, %v329
      %v332 = vmul.f32 %v322, %v330
      %v333 = vpack.c.bf16 %v332, %v331
      %334 = vrot.lane.b32.xlu0 %v208, 112
      %v335 = vpop.permute.xlu0 %334
      %v337 = vsel %vm179, %v333, 0
      %v340 = vsel %vm212, %v335, 0
      %342 = vmatprep.subr.bf16.mxu0 0
      %343 = vmatpush1.bf16.msra.mxu0 %v340
      %344 = vmatprep.subr.bf16.mxu0 0
      %345 = vmatpush1.bf16.msra.mxu0 0
      %346 = vmatprep.subr.bf16.mxu0 0
      %347 = vmatpush1.bf16.msra.mxu0 0
      %348 = vmatprep.subr.bf16.mxu0 0
      %349 = vmatpush1.bf16.msra.mxu0 0
      %350 = vmatprep.subr.bf16.mxu0 0
      %351 = vmatpush1.bf16.msra.mxu0 0
      %352 = vmatprep.subr.bf16.mxu0 0
      %353 = vmatpush1.bf16.msra.mxu0 0
      %354 = vmatprep.subr.bf16.mxu0 0
      %355 = vmatpush1.bf16.msra.mxu0 0
      %356 = vmatprep.subr.bf16.mxu0 0
      %357 = vmatpush1.bf16.msra.mxu0 0
      %358 = vmatprep.subr.bf16.mxu0 0
      %359 = vmatpush1.bf16.msra.mxu0 0
      %360 = vmatprep.subr.bf16.mxu0 0
      %361 = vmatpush1.bf16.msra.mxu0 0
      %362 = vmatprep.subr.bf16.mxu0 0
      %363 = vmatpush1.bf16.msra.mxu0 0
      %364 = vmatprep.subr.bf16.mxu0 0
      %365 = vmatpush1.bf16.msra.mxu0 0
      %366 = vmatprep.subr.bf16.mxu0 0
      %367 = vmatpush1.bf16.msra.mxu0 0
      %368 = vmatprep.subr.bf16.mxu0 0
      %369 = vmatpush1.bf16.msra.mxu0 0
      %370 = vmatprep.subr.bf16.mxu0 0
      %371 = vmatpush1.bf16.msra.mxu0 0
      %372 = vmatprep.subr.bf16.mxu0 0
      %373 = vmatpush1.bf16.msra.mxu0 0
      %374 = vmatprep.mubr.bf16.mxu0 0
      %375 = vmatmul.mubr.bf16.gmra.mrb[0].mxu0 %v337
      %v376 = vpop.f32.mrb[0].mxu0
      %v377 = vadd.f32 0.0, %v376
      %v378 = vpop.f32.mrb[0].mxu0
      %v379 = vpop.f32.mrb[0].mxu0
      %v380 = vadd.f32 0.0, %v379
      %v381 = vpop.f32.mrb[0].mxu0
      %382 = vdwg.mxu0
      %v383 = vpack.c.bf16 %v380, %v377
      %384 = vrot.lane.b32.xlu0 %v126, 96
      %v385 = vpop.permute.xlu0 %384
      %386 = vrot.lane.b32.xlu0 %v126, 32
      %v387 = vpop.permute.xlu0 %386
      %v389 = vsel %vm129, %v385, 0
      %v392 = vsel %vm129, %v387, 0
      %394 = vmatprep.subr.bf16.mxu0 0
      %395 = vmatpush1.bf16.xpose.msra.mxu0 %v392
      %396 = vmatprep.subr.bf16.mxu0 0
      %397 = vmatpush1.bf16.xpose.msra.mxu0 0
      %398 = vmatprep.subr.bf16.mxu0 0
      %399 = vmatpush1.bf16.xpose.msra.mxu0 0
      %400 = vmatprep.subr.bf16.mxu0 0
      %401 = vmatpush1.bf16.xpose.msra.mxu0 0
      %402 = vmatprep.subr.bf16.mxu0 0
      %403 = vmatpush1.bf16.xpose.msra.mxu0 0
      %404 = vmatprep.subr.bf16.mxu0 0
      %405 = vmatpush1.bf16.xpose.msra.mxu0 0
      %406 = vmatprep.subr.bf16.mxu0 0
      %407 = vmatpush1.bf16.xpose.msra.mxu0 0
      %408 = vmatprep.subr.bf16.mxu0 0
      %409 = vmatpush1.bf16.xpose.msra.mxu0 0
      %410 = vmatprep.subr.bf16.mxu0 0
      %411 = vmatpush1.bf16.xpose.msra.mxu0 0
      %412 = vmatprep.subr.bf16.mxu0 0
      %413 = vmatpush1.bf16.xpose.msra.mxu0 0
      %414 = vmatprep.subr.bf16.mxu0 0
      %415 = vmatpush1.bf16.xpose.msra.mxu0 0
      %416 = vmatprep.subr.bf16.mxu0 0
      %417 = vmatpush1.bf16.xpose.msra.mxu0 0
      %418 = vmatprep.subr.bf16.mxu0 0
      %419 = vmatpush1.bf16.xpose.msra.mxu0 0
      %420 = vmatprep.subr.bf16.mxu0 0
      %421 = vmatpush1.bf16.xpose.msra.mxu0 0
      %422 = vmatprep.subr.bf16.mxu0 0
      %423 = vmatpush1.bf16.xpose.msra.mxu0 0
      %424 = vmatprep.subr.bf16.mxu0 0
      %425 = vmatpush1.bf16.xpose.msra.mxu0 0
      %426 = vmatprep.mubr.bf16.mxu0 0
      %427 = vmatmul.mubr.bf16.gmra.mrb[0].mxu0 %v389
      %v428 = vpop.f32.mrb[0].mxu0
      %v429 = vadd.f32 0.0, %v428
      %v430 = vpop.f32.mrb[0].mxu0
      %v431 = vpop.f32.mrb[0].mxu0
      %v432 = vadd.f32 0.0, %v431
      %v433 = vpop.f32.mrb[0].mxu0
      %434 = vdwg.mxu0
      %v435 = vmul.f32 %v429, 0.25
      %v436 = vmul.f32 %v432, 0.25
      %v437 = vsel %vm179, %v435, -inf
      %438 = vmax.xlane.f32.xlu0 %v437
      %v439 = vpop.xlane.xlu0 %438
      %v440 = vsel %vm183, %v436, -inf
      %441 = vmax.xlane.f32.xlu0 %v440
      %v442 = vpop.xlane.xlu0 %441
      %v443 = vsub.f32 %v435, %v439
      %v444 = vsub.f32 %v436, %v442
      %v445 = vmul.f32 %v443, 1.442695
      %v446 = vpow.pop %v445
      %v447 = vmul.f32 %v444, 1.442695
      %v448 = vpow.pop %v447
      %v449 = vsel %vm179, %v446, 0.0
      %450 = vadd.xlane.f32.xlu0 %v449
      %v451 = vpop.xlane.xlu0 %450
      %v452 = vsel %vm183, %v448, 0.0
      %453 = vadd.xlane.f32.xlu0 %v452
      %v454 = vpop.xlane.xlu0 %453
      %v455 = vrcp.pop %v451
      %v456 = vrcp.pop %v454
      %v457 = vmul.f32 %v446, %v455
      %v458 = vmul.f32 %v448, %v456
      %v459 = vpack.c.bf16 %v458, %v457
      %460 = vrot.lane.b32.xlu0 %v208, 96
      %v461 = vpop.permute.xlu0 %460
      %v463 = vsel %vm179, %v459, 0
      %v466 = vsel %vm212, %v461, 0
      %468 = vmatprep.subr.bf16.mxu0 0
      %469 = vmatpush1.bf16.msra.mxu0 %v466
      %470 = vmatprep.subr.bf16.mxu0 0
      %471 = vmatpush1.bf16.msra.mxu0 0
      %472 = vmatprep.subr.bf16.mxu0 0
      %473 = vmatpush1.bf16.msra.mxu0 0
      %474 = vmatprep.subr.bf16.mxu0 0
      %475 = vmatpush1.bf16.msra.mxu0 0
      %476 = vmatprep.subr.bf16.mxu0 0
      %477 = vmatpush1.bf16.msra.mxu0 0
      %478 = vmatprep.subr.bf16.mxu0 0
      %479 = vmatpush1.bf16.msra.mxu0 0
      %480 = vmatprep.subr.bf16.mxu0 0
      %481 = vmatpush1.bf16.msra.mxu0 0
      %482 = vmatprep.subr.bf16.mxu0 0
      %483 = vmatpush1.bf16.msra.mxu0 0
      %484 = vmatprep.subr.bf16.mxu0 0
      %485 = vmatpush1.bf16.msra.mxu0 0
      %486 = vmatprep.subr.bf16.mxu0 0
      %487 = vmatpush1.bf16.msra.mxu0 0
      %488 = vmatprep.subr.bf16.mxu0 0
      %489 = vmatpush1.bf16.msra.mxu0 0
      %490 = vmatprep.subr.bf16.mxu0 0
      %491 = vmatpush1.bf16.msra.mxu0 0
      %492 = vmatprep.subr.bf16.mxu0 0
      %493 = vmatpush1.bf16.msra.mxu0 0
      %494 = vmatprep.subr.bf16.mxu0 0
      %495 = vmatpush1.bf16.msra.mxu0 0
      %496 = vmatprep.subr.bf16.mxu0 0
      %497 = vmatpush1.bf16.msra.mxu0 0
      %498 = vmatprep.subr.bf16.mxu0 0
      %499 = vmatpush1.bf16.msra.mxu0 0
      %500 = vmatprep.mubr.bf16.mxu0 0
      %501 = vmatmul.mubr.bf16.gmra.mrb[0].mxu0 %v463
      %v502 = vpop.f32.mrb[0].mxu0
      %v503 = vadd.f32 0.0, %v502
      %v504 = vpop.f32.mrb[0].mxu0
      %v505 = vpop.f32.mrb[0].mxu0
      %v506 = vadd.f32 0.0, %v505
      %v507 = vpop.f32.mrb[0].mxu0
      %508 = vdwg.mxu0
      %v509 = vpack.c.bf16 %v506, %v503
      %510 = vrot.lane.b32.xlu0 %v126, 80
      %v511 = vpop.permute.xlu0 %510
      %512 = vrot.lane.b32.xlu0 %v126, 16
      %v513 = vpop.permute.xlu0 %512
      %v515 = vsel %vm129, %v511, 0
      %v518 = vsel %vm129, %v513, 0
      %520 = vmatprep.subr.bf16.mxu0 0
      %521 = vmatpush1.bf16.xpose.msra.mxu0 %v518
      %522 = vmatprep.subr.bf16.mxu0 0
      %523 = vmatpush1.bf16.xpose.msra.mxu0 0
      %524 = vmatprep.subr.bf16.mxu0 0
      %525 = vmatpush1.bf16.xpose.msra.mxu0 0
      %526 = vmatprep.subr.bf16.mxu0 0
      %527 = vmatpush1.bf16.xpose.msra.mxu0 0
      %528 = vmatprep.subr.bf16.mxu0 0
      %529 = vmatpush1.bf16.xpose.msra.mxu0 0
      %530 = vmatprep.subr.bf16.mxu0 0
      %531 = vmatpush1.bf16.xpose.msra.mxu0 0
      %532 = vmatprep.subr.bf16.mxu0 0
      %533 = vmatpush1.bf16.xpose.msra.mxu0 0
      %534 = vmatprep.subr.bf16.mxu0 0
      %535 = vmatpush1.bf16.xpose.msra.mxu0 0
      %536 = vmatprep.subr.bf16.mxu0 0
      %537 = vmatpush1.bf16.xpose.msra.mxu0 0
      %538 = vmatprep.subr.bf16.mxu0 0
      %539 = vmatpush1.bf16.xpose.msra.mxu0 0
      %540 = vmatprep.subr.bf16.mxu0 0
      %541 = vmatpush1.bf16.xpose.msra.mxu0 0
      %542 = vmatprep.subr.bf16.mxu0 0
      %543 = vmatpush1.bf16.xpose.msra.mxu0 0
      %544 = vmatprep.subr.bf16.mxu0 0
      %545 = vmatpush1.bf16.xpose.msra.mxu0 0
      %546 = vmatprep.subr.bf16.mxu0 0
      %547 = vmatpush1.bf16.xpose.msra.mxu0 0
      %548 = vmatprep.subr.bf16.mxu0 0
      %549 = vmatpush1.bf16.xpose.msra.mxu0 0
      %550 = vmatprep.subr.bf16.mxu0 0
      %551 = vmatpush1.bf16.xpose.msra.mxu0 0
      %552 = vmatprep.mubr.bf16.mxu0 0
      %553 = vmatmul.mubr.bf16.gmra.mrb[0].mxu0 %v515
      %v554 = vpop.f32.mrb[0].mxu0
      %v555 = vadd.f32 0.0, %v554
      %v556 = vpop.f32.mrb[0].mxu0
      %v557 = vpop.f32.mrb[0].mxu0
      %v558 = vadd.f32 0.0, %v557
      %v559 = vpop.f32.mrb[0].mxu0
      %560 = vdwg.mxu0
      %v561 = vmul.f32 %v555, 0.25
      %v562 = vmul.f32 %v558, 0.25
      %v563 = vsel %vm179, %v561, -inf
      %564 = vmax.xlane.f32.xlu0 %v563
      %v565 = vpop.xlane.xlu0 %564
      %v566 = vsel %vm183, %v562, -inf
      %567 = vmax.xlane.f32.xlu0 %v566
      %v568 = vpop.xlane.xlu0 %567
      %v569 = vsub.f32 %v561, %v565
      %v570 = vsub.f32 %v562, %v568
      %v571 = vmul.f32 %v569, 1.442695
      %v572 = vpow.pop %v571
      %v573 = vmul.f32 %v570, 1.442695
      %v574 = vpow.pop %v573
      %v575 = vsel %vm179, %v572, 0.0
      %576 = vadd.xlane.f32.xlu0 %v575
      %v577 = vpop.xlane.xlu0 %576
      %v578 = vsel %vm183, %v574, 0.0
      %579 = vadd.xlane.f32.xlu0 %v578
      %v580 = vpop.xlane.xlu0 %579
      %v581 = vrcp.pop %v577
      %v582 = vrcp.pop %v580
      %v583 = vmul.f32 %v572, %v581
      %v584 = vmul.f32 %v574, %v582
      %v585 = vpack.c.bf16 %v584, %v583
      %586 = vrot.lane.b32.xlu0 %v208, 80
      %v587 = vpop.permute.xlu0 %586
      %v589 = vsel %vm179, %v585, 0
      %v592 = vsel %vm212, %v587, 0
      %594 = vmatprep.subr.bf16.mxu0 0
      %595 = vmatpush1.bf16.msra.mxu0 %v592
      %596 = vmatprep.subr.bf16.mxu0 0
      %597 = vmatpush1.bf16.msra.mxu0 0
      %598 = vmatprep.subr.bf16.mxu0 0
      %599 = vmatpush1.bf16.msra.mxu0 0
      %600 = vmatprep.subr.bf16.mxu0 0
      %601 = vmatpush1.bf16.msra.mxu0 0
      %602 = vmatprep.subr.bf16.mxu0 0
      %603 = vmatpush1.bf16.msra.mxu0 0
      %604 = vmatprep.subr.bf16.mxu0 0
      %605 = vmatpush1.bf16.msra.mxu0 0
      %606 = vmatprep.subr.bf16.mxu0 0
      %607 = vmatpush1.bf16.msra.mxu0 0
      %608 = vmatprep.subr.bf16.mxu0 0
      %609 = vmatpush1.bf16.msra.mxu0 0
      %610 = vmatprep.subr.bf16.mxu0 0
      %611 = vmatpush1.bf16.msra.mxu0 0
      %612 = vmatprep.subr.bf16.mxu0 0
      %613 = vmatpush1.bf16.msra.mxu0 0
      %614 = vmatprep.subr.bf16.mxu0 0
      %615 = vmatpush1.bf16.msra.mxu0 0
      %616 = vmatprep.subr.bf16.mxu0 0
      %617 = vmatpush1.bf16.msra.mxu0 0
      %618 = vmatprep.subr.bf16.mxu0 0
      %619 = vmatpush1.bf16.msra.mxu0 0
      %620 = vmatprep.subr.bf16.mxu0 0
      %621 = vmatpush1.bf16.msra.mxu0 0
      %622 = vmatprep.subr.bf16.mxu0 0
      %623 = vmatpush1.bf16.msra.mxu0 0
      %624 = vmatprep.subr.bf16.mxu0 0
      %625 = vmatpush1.bf16.msra.mxu0 0
      %626 = vmatprep.mubr.bf16.mxu0 0
      %627 = vmatmul.mubr.bf16.gmra.mrb[0].mxu0 %v589
      %v628 = vpop.f32.mrb[0].mxu0
      %v629 = vadd.f32 0.0, %v628
      %v630 = vpop.f32.mrb[0].mxu0
      %v631 = vpop.f32.mrb[0].mxu0
      %v632 = vadd.f32 0.0, %v631
      %v633 = vpop.f32.mrb[0].mxu0
      %634 = vdwg.mxu0
      %v635 = vpack.c.bf16 %v632, %v629
      %637 = vrot.lane.b32.xlu0 %v383, 16
      %v638 = vpop.permute.xlu0 %637
      %640 = vrot.lane.b32.xlu0 %v509, 32
      %v641 = vpop.permute.xlu0 %640
      %643 = vrot.lane.b32.xlu0 %v635, 48
      %v644 = vpop.permute.xlu0 %643
      %v647 = vsel %vm129, %v257, %v638
      %vm648 = vcmask 261120
      %v650 = vsel %vm648, %v647, %v641
      %vm651 = vcmask 392192
      %v653 = vsel %vm651, %v650, %v644
      %v655 = vunpack.c.l.b16 %v653
      %v656 = vunpack.c.h.b16 %v653
      %v657 = vpack.c.b16 %v655, %v655
      %v658 = vpack.c.b16 %v656, %v656
      %vm661 = vcmask 519168
      %662 = vst.msk [vmem:[%s116] sm:$0xf] %vm661, %v657
      %vm663 = vcmask 516096
      %664 = vst.msk [vmem:[%s116 + $0x4] sm:$0x1] %vm663, %v658
      %p665 = scmp.lt.s32.totalorder %s12, 1
      %s666 = scalar_select %p665, %s12, 1
      %s667 = smul.addr %s666, 2
      %s668 = smul.addr %s667, 4
      %s669 = scalar_lea.vmem %s1, %s668
      // Predicated region
      $region25: #{ast_forward.15} parent=23 // pred_check
        %p670 = pneg %p56
      $region26: #{ast_forward.15} parent=23 // pred_check_branch
        %672 = sbr.rel (%p670) target = $region28
      $region27: #{ast_forward.15} parent=23 // pred_region
        _
      $region28: #{ast_forward.15} parent=23 // pred_fallthru
        _
    $region24: #{ast_forward.15} parent=5 // pred_fallthru
      _
    %p673 = scmp.le.s32.totalorder 2, %s7
    // Predicated region
    $region29: #{ast_forward.15} parent=5 // pred_check
      %p674 = pneg %p673
    $region30: #{ast_forward.15} parent=5 // pred_check_branch
      %676 = sbr.rel (%p674) target = $region32
    $region31: #{ast_forward.15} parent=5 // pred_region
      %s677 = ssub.s32 %s7, 2
      // Predicated region
      $region33: #{ast_forward.15} parent=31 // pred_check
        %p678 = pneg %p62
      $region34: #{ast_forward.15} parent=31 // pred_check_branch
        %680 = sbr.rel (%p678) target = $region36
      $region35: #{ast_forward.15} parent=31 // pred_region
        %p681 = scmp.lt.s32.totalorder %s13, 1
        %s682 = scalar_select %p681, %s13, 1
        %s683 = smul.addr %s682, 2
        %s684 = smul.addr %s683, 4
        %s685 = scalar_lea.vmem %s1, %s684
      $region36: #{ast_forward.15} parent=31 // pred_fallthru
        _
    $region32: #{ast_forward.15} parent=5 // pred_fallthru
      _
  $region6: #{ast_forward.15} parent=0 // loop_footer
    %s11 = sadd.s32 1, %s7
  $region7: #{ast_forward.15} parent=0 // loop_footer_branch
    %6 = sbr.rel target = $region3
  $region8: #{ast_forward.15} parent=0 // loop_exit
    _

// kernel: ast_forward.24
$region0: #{ast_forward.24}
  #allocation0 [shape = 'u32[]', space=smem, size = 0x4, offset = 0x4, fixed_abs, tag = 'smem constant byte address 0x4 - core index']
  #allocation1 [shape = 'u32[144,128]{1,0:T(1,128)}', space=vmem, size = 0x12000, scoped, tag = 'internal scratch']
  %s0 = inlined_call_operand.vmem [shape: bf16[20,64], index: 0, kind: input, shape index: {}]
  %s1 = inlined_call_operand.vmem [shape: f32[1,64], index: 1, kind: input, shape index: {}]
  %s2 = inlined_call_operand.vmem [shape: f32[1,64], index: 2, kind: input, shape index: {}]
  %s3 = inlined_call_operand.vmem [shape: f32[20,64], index: 3, kind: output, shape index: {}]
  %s4 = sld [smem:[#allocation0]]
  $region22: #{ast_forward.24} parent=0
    _
  %s6 = ssub.s32 1, %s4
  %s7 = scalar_select 0, %s6, %s4
  // Predicated region
  $region2: #{ast_forward.24} parent=0 // pred_check
    _
  $region3: #{ast_forward.24} parent=0 // pred_check_branch
    %9 = sbr.rel (0) target = $region5
  $region4: #{ast_forward.24} parent=0 // pred_region
    _
  $region5: #{ast_forward.24} parent=0 // pred_fallthru
    _
  // Predicated region
  $region6: #{ast_forward.24} parent=0 // pred_check
    _
  $region7: #{ast_forward.24} parent=0 // pred_check_branch
    %11 = sbr.rel (0) target = $region9
  $region8: #{ast_forward.24} parent=0 // pred_region
    _
  $region9: #{ast_forward.24} parent=0 // pred_fallthru
    _
  // Predicated region
  $region10: #{ast_forward.24} parent=0 // pred_check
    _
  $region11: #{ast_forward.24} parent=0 // pred_check_branch
    %13 = sbr.rel (0) target = $region13
  $region12: #{ast_forward.24} parent=0 // pred_region
    _
  $region13: #{ast_forward.24} parent=0 // pred_fallthru
    _
  %v14 = vld [vmem:[%s0] sm:$0xf]
  %v15 = vld [vmem:[%s0 + $0x4] sm:$0xf]
  %v16 = vld [vmem:[%s0 + $0x8] sm:$0x3]
  %v17 = vunpack.c.l.bf16 %v14
  %v18 = vunpack.c.l.bf16 %v15
  %v19 = vunpack.c.l.bf16 %v16
  %vm20 = vcmask 523264
  %v21 = vsel %vm20, %v17, 0.0
  %22 = vadd.xlane.f32.xlu0 %v21
  %v23 = vpop.xlane.xlu0 %22
  %v24 = vsel %vm20, %v18, 0.0
  %25 = vadd.xlane.f32.xlu0 %v24
  %v26 = vpop.xlane.xlu0 %25
  %vm27 = vcmask 519168
  %v28 = vsel %vm27, %v19, 0.0
  %29 = vadd.xlane.f32.xlu0 %v28
  %v30 = vpop.xlane.xlu0 %29
  %v31 = vrcp.pop 64.0
  %v32 = vmul.f32 %v23, %v31
  %v33 = vmul.f32 %v26, %v31
  %v34 = vmul.f32 %v30, %v31
  %v35 = vsub.f32 %v17, %v32
  %v36 = vsub.f32 %v18, %v33
  %v37 = vsub.f32 %v19, %v34
  %v38 = vmul.f32 %v35, %v35
  %v39 = vmul.f32 %v36, %v36
  %v40 = vmul.f32 %v37, %v37
  %v41 = vsel %vm20, %v38, 0.0
  %42 = vadd.xlane.f32.xlu0 %v41
  %v43 = vpop.xlane.xlu0 %42
  %v44 = vsel %vm20, %v39, 0.0
  %45 = vadd.xlane.f32.xlu0 %v44
  %v46 = vpop.xlane.xlu0 %45
  %v47 = vsel %vm27, %v40, 0.0
  %48 = vadd.xlane.f32.xlu0 %v47
  %v49 = vpop.xlane.xlu0 %48
  %v50 = vmul.f32 %v43, %v31
  %v51 = vmul.f32 %v46, %v31
  %v52 = vmul.f32 %v49, %v31
  %v53 = vadd.f32 %v50, 1e-06
  %v54 = vadd.f32 %v51, 1e-06
  %v55 = vadd.f32 %v52, 1e-06
  %v56 = vrsqrt.pop %v53
  %v57 = vrsqrt.pop %v54
  %v58 = vrsqrt.pop %v55
  %v59 = vmul.f32 %v35, %v56
  %v60 = vmul.f32 %v36, %v57
  %v61 = vmul.f32 %v37, %v58
  %v62 = vld [vmem:[%s1] sm:$0x1]
  %v64 = vlaneseq
  %v65 = vshrl.u32 %v64, 7
  %v66 = vsub.s32 0, %v65
  %v67 = vrot.slane %v62, %v66
  %v69 = vmul.f32 %v59, %v67
  %v70 = vmul.f32 %v60, %v67
  %v71 = vmul.f32 %v61, %v67
  %v72 = vld [vmem:[%s2] sm:$0x1]
  %v74 = vlaneseq
  %v75 = vshrl.u32 %v74, 7
  %v76 = vsub.s32 0, %v75
  %v77 = vrot.slane %v72, %v76
  %v79 = vadd.f32 %v69, %v77
  %v80 = vadd.f32 %v70, %v77
  %v81 = vadd.f32 %v71, %v77
  %82 = vst.msk [vmem:[%s3] sm:$0xff] %vm20, %v79
  %83 = vst.msk [vmem:[%s3 + $0x8] sm:$0xff] %vm20, %v80
  %84 = vst.msk [vmem:[%s3 + $0x10] sm:$0xf] %vm27, %v81
  // Predicated region
  $region14: #{ast_forward.24} parent=0 // pred_check
    _
  $region15: #{ast_forward.24} parent=0 // pred_check_branch
    %86 = sbr.rel (0) target = $region17
  $region16: #{ast_forward.24} parent=0 // pred_region
    _
  $region17: #{ast_forward.24} parent=0 // pred_fallthru
    _
  // Predicated region
  $region18: #{ast_forward.24} parent=0 // pred_check
    _
  $region19: #{ast_forward.24} parent=0 // pred_check_branch
    %88 = sbr.rel (0) target = $region21
  $region20: #{ast_forward.24} parent=0 // pred_region
    _
  $region21: #{ast_forward.24} parent=0 // pred_fallthru
    _

// kernel: ast_forward.17
$region0: #{ast_forward.17}
  #allocation0 [shape = 'u32[]', space=smem, size = 0x4, offset = 0x4, fixed_abs, tag = 'smem constant byte address 0x4 - core index']
  #allocation1 [shape = 'u32[144,128]{1,0:T(1,128)}', space=vmem, size = 0x12000, scoped, tag = 'internal scratch']
  #allocation2 [shape = 'bf16[20,64]{1,0:T(8,128)(2,1)}', space=vmem, size = 0x1800, scoped, tag = 'scratch operand']
  %s0 = inlined_call_operand.vmem [shape: bf16[20,64], index: 0, kind: input, shape index: {}]
  %s1 = inlined_call_operand.vmem [shape: f32[1,64], index: 1, kind: input, shape index: {}]
  %s2 = inlined_call_operand.vmem [shape: f32[1,64], index: 2, kind: input, shape index: {}]
  %s3 = inlined_call_operand.vmem [shape: bf16[64,256], index: 3, kind: input, shape index: {}]
  %s4 = inlined_call_operand.vmem [shape: f32[1,256], index: 4, kind: input, shape index: {}]
  %s5 = inlined_call_operand.vmem [shape: bf16[20,256], index: 5, kind: output, shape index: {}]
  %s6 = sld [smem:[#allocation0]]
  $region34: #{ast_forward.17} parent=0
    _
  %s8 = ssub.s32 1, %s6
  %s9 = scalar_select 0, %s8, %s6
  // Predicated region
  $region2: #{ast_forward.17} parent=0 // pred_check
    _
  $region3: #{ast_forward.17} parent=0 // pred_check_branch
    %11 = sbr.rel (0) target = $region5
  $region4: #{ast_forward.17} parent=0 // pred_region
    _
  $region5: #{ast_forward.17} parent=0 // pred_fallthru
    _
  // Predicated region
  $region6: #{ast_forward.17} parent=0 // pred_check
    _
  $region7: #{ast_forward.17} parent=0 // pred_check_branch
    %13 = sbr.rel (0) target = $region9
  $region8: #{ast_forward.17} parent=0 // pred_region
    _
  $region9: #{ast_forward.17} parent=0 // pred_fallthru
    _
  // Predicated region
  $region10: #{ast_forward.17} parent=0 // pred_check
    _
  $region11: #{ast_forward.17} parent=0 // pred_check_branch
    %15 = sbr.rel (0) target = $region13
  $region12: #{ast_forward.17} parent=0 // pred_region
    _
  $region13: #{ast_forward.17} parent=0 // pred_fallthru
    _
  // Predicated region
  $region14: #{ast_forward.17} parent=0 // pred_check
    _
  $region15: #{ast_forward.17} parent=0 // pred_check_branch
    %17 = sbr.rel (0) target = $region17
  $region16: #{ast_forward.17} parent=0 // pred_region
    _
  $region17: #{ast_forward.17} parent=0 // pred_fallthru
    _
  // Predicated region
  $region18: #{ast_forward.17} parent=0 // pred_check
    _
  $region19: #{ast_forward.17} parent=0 // pred_check_branch
    %19 = sbr.rel (0) target = $region21
  $region20: #{ast_forward.17} parent=0 // pred_region
    _
  $region21: #{ast_forward.17} parent=0 // pred_fallthru
    _
  %p21 = scmp.eq.s32.totalorder 0, 0
  // Predicated region
  $region22: #{ast_forward.17} parent=0 // pred_check
    %p22 = pneg %p21
  $region23: #{ast_forward.17} parent=0 // pred_check_branch
    %24 = sbr.rel (%p22) target = $region25
  $region24: #{ast_forward.17} parent=0 // pred_region
    %v25 = vld [vmem:[%s0] sm:$0xf]
    %v26 = vld [vmem:[%s0 + $0x4] sm:$0xf]
    %v27 = vld [vmem:[%s0 + $0x8] sm:$0x3]
    %v28 = vunpack.c.l.bf16 %v25
    %v29 = vunpack.c.l.bf16 %v26
    %v30 = vunpack.c.l.bf16 %v27
    %vm31 = vcmask 523264
    %v32 = vsel %vm31, %v28, 0.0
    %33 = vadd.xlane.f32.xlu0 %v32
    %v34 = vpop.xlane.xlu0 %33
    %v35 = vsel %vm31, %v29, 0.0
    %36 = vadd.xlane.f32.xlu0 %v35
    %v37 = vpop.xlane.xlu0 %36
    %vm38 = vcmask 519168
    %v39 = vsel %vm38, %v30, 0.0
    %40 = vadd.xlane.f32.xlu0 %v39
    %v41 = vpop.xlane.xlu0 %40
    %v42 = vrcp.pop 64.0
    %v43 = vmul.f32 %v34, %v42
    %v44 = vmul.f32 %v37, %v42
    %v45 = vmul.f32 %v41, %v42
    %v46 = vsub.f32 %v28, %v43
    %v47 = vsub.f32 %v29, %v44
    %v48 = vsub.f32 %v30, %v45
    %v49 = vmul.f32 %v46, %v46
    %v50 = vmul.f32 %v47, %v47
    %v51 = vmul.f32 %v48, %v48
    %v52 = vsel %vm31, %v49, 0.0
    %53 = vadd.xlane.f32.xlu0 %v52
    %v54 = vpop.xlane.xlu0 %53
    %v55 = vsel %vm31, %v50, 0.0
    %56 = vadd.xlane.f32.xlu0 %v55
    %v57 = vpop.xlane.xlu0 %56
    %v58 = vsel %vm38, %v51, 0.0
    %59 = vadd.xlane.f32.xlu0 %v58
    %v60 = vpop.xlane.xlu0 %59
    %v61 = vmul.f32 %v54, %v42
    %v62 = vmul.f32 %v57, %v42
    %v63 = vmul.f32 %v60, %v42
    %v64 = vadd.f32 %v61, 1e-06
    %v65 = vadd.f32 %v62, 1e-06
    %v66 = vadd.f32 %v63, 1e-06
    %v67 = vrsqrt.pop %v64
    %v68 = vrsqrt.pop %v65
    %v69 = vrsqrt.pop %v66
    %v70 = vmul.f32 %v46, %v67
    %v71 = vmul.f32 %v47, %v68
    %v72 = vmul.f32 %v48, %v69
    %v73 = vld [vmem:[%s1] sm:$0x1]
    %v75 = vlaneseq
    %v76 = vshrl.u32 %v75, 7
    %v77 = vsub.s32 0, %v76
    %v78 = vrot.slane %v73, %v77
    %v80 = vmul.f32 %v70, %v78
    %v81 = vmul.f32 %v71, %v78
    %v82 = vmul.f32 %v72, %v78
    %v83 = vld [vmem:[%s2] sm:$0x1]
    %v85 = vlaneseq
    %v86 = vshrl.u32 %v85, 7
    %v87 = vsub.s32 0, %v86
    %v88 = vrot.slane %v83, %v87
    %v90 = vadd.f32 %v80, %v88
    %v91 = vadd.f32 %v81, %v88
    %v92 = vadd.f32 %v82, %v88
    %v93 = vpack.c.bf16 %v91, %v90
    %v94 = vpack.c.bf16 %v92, %v92
    %v97 = vunpack.c.l.b16 %v93
    %v98 = vunpack.c.h.b16 %v93
    %v99 = vunpack.c.l.b16 %v94
    %v100 = vpack.c.b16 %v97, %v97
    %v101 = vpack.c.b16 %v98, %v98
    %v102 = vpack.c.b16 %v99, %v99
    %106 = vst.msk [vmem:[#allocation2] sm:$0xf] %vm38, %v100
    %107 = vst.msk [vmem:[#allocation2 + $0x4] sm:$0xf] %vm38, %v101
    %vm108 = vcmask 517120
    %109 = vst.msk [vmem:[#allocation2 + $0x8] sm:$0x3] %vm108, %v102
  $region25: #{ast_forward.17} parent=0 // pred_fallthru
    _
  %v110 = vld [vmem:[#allocation2] sm:$0xf]
  %v111 = vld [vmem:[#allocation2 + $0x4] sm:$0xf]
  %v112 = vld [vmem:[#allocation2 + $0x8] sm:$0x3]
  %v113 = vld [vmem:[%s3] sm:$0xff]
  %v114 = vld [vmem:[%s3 + $0x8] sm:$0xff]
  %v115 = vld [vmem:[%s3 + $0x10] sm:$0xff]
  %v116 = vld [vmem:[%s3 + $0x18] sm:$0xff]
  %v117 = vld [vmem:[%s3 + $0x20] sm:$0xff]
  %v118 = vld [vmem:[%s3 + $0x28] sm:$0xff]
  %v119 = vld [vmem:[%s3 + $0x30] sm:$0xff]
  %v120 = vld [vmem:[%s3 + $0x38] sm:$0xff]
  %v121 = vld [vmem:[%s4] sm:$0x3]
  %v123 = vlaneseq
  %v124 = vshrl.u32 %v123, 7
  %v125 = vsub.s32 0, %v124
  %v126 = vrot.slane %v121, %v125
  %v127 = vlaneseq
  %v128 = vshrl.u32 %v127, 7
  %v129 = vsub.s32 1, %v128
  %v130 = vrot.slane %v121, %v129
  %v136 = vunpack.c.l.b16 %v110
  %v137 = vunpack.c.l.b16 %v111
  %v138 = vunpack.c.l.b16 %v112
  %v139 = vpack.c.b16 %v137, %v136
  %v140 = vpack.c.b16 %v138, %v138
  %v149 = vunpack.c.l.b16 %v113
  %v150 = vunpack.c.h.b16 %v113
  %v151 = vunpack.c.l.b16 %v114
  %v152 = vunpack.c.h.b16 %v114
  %v153 = vunpack.c.l.b16 %v115
  %v154 = vunpack.c.h.b16 %v115
  %v155 = vunpack.c.l.b16 %v116
  %v156 = vunpack.c.h.b16 %v116
  %v157 = vunpack.c.l.b16 %v117
  %v158 = vunpack.c.h.b16 %v117
  %v159 = vunpack.c.l.b16 %v118
  %v160 = vunpack.c.h.b16 %v118
  %v161 = vunpack.c.l.b16 %v119
  %v162 = vunpack.c.h.b16 %v119
  %v163 = vunpack.c.l.b16 %v120
  %v164 = vunpack.c.h.b16 %v120
  %v165 = vpack.c.b16 %v151, %v149
  %v166 = vpack.c.b16 %v152, %v150
  %v167 = vpack.c.b16 %v155, %v153
  %v168 = vpack.c.b16 %v156, %v154
  %v169 = vpack.c.b16 %v159, %v157
  %v170 = vpack.c.b16 %v160, %v158
  %v171 = vpack.c.b16 %v163, %v161
  %v172 = vpack.c.b16 %v164, %v162
  %vm181 = vcmask 523264
  %v183 = vsel %vm181, %v139, 0
  %v186 = vsel %vm181, %v140, 0
  %188 = vmatprep.subr.bf16.mxu0 %v166
  %189 = vmatpush1.bf16.msra.mxu0 %v165
  %190 = vmatprep.subr.bf16.mxu0 %v168
  %191 = vmatpush1.bf16.msra.mxu0 %v167
  %192 = vmatprep.subr.bf16.mxu0 %v170
  %193 = vmatpush1.bf16.msra.mxu0 %v169
  %194 = vmatprep.subr.bf16.mxu0 %v172
  %195 = vmatpush1.bf16.msra.mxu0 %v171
  %196 = vmatprep.subr.bf16.mxu0 0
  %197 = vmatpush1.bf16.msra.mxu0 0
  %198 = vmatprep.subr.bf16.mxu0 0
  %199 = vmatpush1.bf16.msra.mxu0 0
  %200 = vmatprep.subr.bf16.mxu0 0
  %201 = vmatpush1.bf16.msra.mxu0 0
  %202 = vmatprep.subr.bf16.mxu0 0
  %203 = vmatpush1.bf16.msra.mxu0 0
  %204 = vmatprep.subr.bf16.mxu0 0
  %205 = vmatpush1.bf16.msra.mxu0 0
  %206 = vmatprep.subr.bf16.mxu0 0
  %207 = vmatpush1.bf16.msra.mxu0 0
  %208 = vmatprep.subr.bf16.mxu0 0
  %209 = vmatpush1.bf16.msra.mxu0 0
  %210 = vmatprep.subr.bf16.mxu0 0
  %211 = vmatpush1.bf16.msra.mxu0 0
  %212 = vmatprep.subr.bf16.mxu0 0
  %213 = vmatpush1.bf16.msra.mxu0 0
  %214 = vmatprep.subr.bf16.mxu0 0
  %215 = vmatpush1.bf16.msra.mxu0 0
  %216 = vmatprep.subr.bf16.mxu0 0
  %217 = vmatpush1.bf16.msra.mxu0 0
  %218 = vmatprep.subr.bf16.mxu0 0
  %219 = vmatpush1.bf16.msra.mxu0 0
  %220 = vmatprep.mubr.bf16.mxu0 0
  %221 = vmatmul.mubr.bf16.gmra.mrb[0].mxu0 %v183
  %v222 = vpop.f32.mrb[0].mxu0
  %v223 = vadd.f32 %v126, %v222
  %v224 = vpop.f32.mrb[0].mxu0
  %v225 = vadd.f32 %v130, %v224
  %v226 = vpop.f32.mrb[0].mxu0
  %v227 = vadd.f32 %v126, %v226
  %v228 = vpop.f32.mrb[0].mxu0
  %v229 = vadd.f32 %v130, %v228
  %230 = vmatprep.mubr.bf16.mxu0 0
  %231 = vmatmul.mubr.bf16.gmra.mrb[0].mxu0 %v186
  %v232 = vpop.f32.mrb[0].mxu0
  %v233 = vadd.f32 %v126, %v232
  %v234 = vpop.f32.mrb[0].mxu0
  %v235 = vadd.f32 %v130, %v234
  %v236 = vpop.f32.mrb[0].mxu0
  %v237 = vpop.f32.mrb[0].mxu0
  %238 = vdwg.mxu0
  %v239 = vmul.f32 %v223, 0.5
  %v240 = vmul.f32 %v225, 0.5
  %v241 = vmul.f32 %v227, 0.5
  %v242 = vmul.f32 %v229, 0.5
  %v243 = vmul.f32 %v233, 0.5
  %v244 = vmul.f32 %v235, 0.5
  %v245 = vmul.f32 %v223, 0.70710677
  %v246 = vmul.f32 %v225, 0.70710677
  %v247 = vmul.f32 %v227, 0.70710677
  %v248 = vmul.f32 %v229, 0.70710677
  %v249 = vmul.f32 %v233, 0.70710677
  %v250 = vmul.f32 %v235, 0.70710677
  %v251 = verf.f32.pop %v245
  %v252 = verf.f32.pop %v246
  %v253 = verf.f32.pop %v247
  %v254 = verf.f32.pop %v248
  %v255 = verf.f32.pop %v249
  %v256 = verf.f32.pop %v250
  %v257 = vadd.f32 %v251, 1.0
  %v258 = vadd.f32 %v252, 1.0
  %v259 = vadd.f32 %v253, 1.0
  %v260 = vadd.f32 %v254, 1.0
  %v261 = vadd.f32 %v255, 1.0
  %v262 = vadd.f32 %v256, 1.0
  %v263 = vmul.f32 %v239, %v257
  %v264 = vmul.f32 %v240, %v258
  %v265 = vmul.f32 %v241, %v259
  %v266 = vmul.f32 %v242, %v260
  %v267 = vmul.f32 %v243, %v261
  %v268 = vmul.f32 %v244, %v262
  %v269 = vpack.c.bf16 %v265, %v263
  %v270 = vpack.c.bf16 %v266, %v264
  %v271 = vpack.c.bf16 %v267, %v267
  %v272 = vpack.c.bf16 %v268, %v268
  %v277 = vunpack.c.l.b16 %v269
  %v278 = vunpack.c.l.b16 %v270
  %v279 = vunpack.c.h.b16 %v269
  %v280 = vunpack.c.h.b16 %v270
  %v281 = vunpack.c.l.b16 %v271
  %v282 = vunpack.c.l.b16 %v272
  %v283 = vpack.c.b16 %v278, %v277
  %v284 = vpack.c.b16 %v280, %v279
  %v285 = vpack.c.b16 %v282, %v281
  %289 = vst [vmem:[%s5] sm:$0xff] %v283
  %290 = vst [vmem:[%s5 + $0x8] sm:$0xff] %v284
  %291 = vst [vmem:[%s5 + $0x10] sm:$0x33] %v285
  // Predicated region
  $region26: #{ast_forward.17} parent=0 // pred_check
    _
  $region27: #{ast_forward.17} parent=0 // pred_check_branch
    %293 = sbr.rel (0) target = $region29
  $region28: #{ast_forward.17} parent=0 // pred_region
    _
  $region29: #{ast_forward.17} parent=0 // pred_fallthru
    _
  // Predicated region
  $region30: #{ast_forward.17} parent=0 // pred_check
    _
  $region31: #{ast_forward.17} parent=0 // pred_check_branch
    %295 = sbr.rel (0) target = $region33
  $region32: #{ast_forward.17} parent=0 // pred_region
    _
  $region33: #{ast_forward.17} parent=0 // pred_fallthru
    _

// kernel: ast_forward.18
$region0: #{ast_forward.18}
  #allocation0 [shape = 'u32[]', space=smem, size = 0x4, offset = 0x4, fixed_abs, tag = 'smem constant byte address 0x4 - core index']
  #allocation1 [shape = 'u32[144,128]{1,0:T(1,128)}', space=vmem, size = 0x12000, scoped, tag = 'internal scratch']
  #allocation2 [shape = 'f32[20,64]{1,0:T(8,128)}', space=vmem, size = 0x3000, scoped, tag = 'scratch operand']
  %s0 = inlined_call_operand.vmem [shape: bf16[20,256], index: 0, kind: input, shape index: {}]
  %s1 = inlined_call_operand.vmem [shape: bf16[256,64], index: 1, kind: input, shape index: {}]
  %s2 = inlined_call_operand.vmem [shape: f32[1,64], index: 2, kind: input, shape index: {}]
  %s3 = inlined_call_operand.vmem [shape: bf16[20,64], index: 3, kind: input, shape index: {}]
  %s4 = inlined_call_operand.vmem [shape: bf16[20,64], index: 4, kind: output, shape index: {}]
  %s5 = sld [smem:[#allocation0]]
  $region34: #{ast_forward.18} parent=0
    _
  %s7 = ssub.s32 1, %s5
  %s8 = scalar_select 0, %s7, %s5
  // Predicated region
  $region2: #{ast_forward.18} parent=0 // pred_check
    _
  $region3: #{ast_forward.18} parent=0 // pred_check_branch
    %10 = sbr.rel (0) target = $region5
  $region4: #{ast_forward.18} parent=0 // pred_region
    _
  $region5: #{ast_forward.18} parent=0 // pred_fallthru
    _
  // Predicated region
  $region6: #{ast_forward.18} parent=0 // pred_check
    _
  $region7: #{ast_forward.18} parent=0 // pred_check_branch
    %12 = sbr.rel (0) target = $region9
  $region8: #{ast_forward.18} parent=0 // pred_region
    _
  $region9: #{ast_forward.18} parent=0 // pred_fallthru
    _
  // Predicated region
  $region10: #{ast_forward.18} parent=0 // pred_check
    _
  $region11: #{ast_forward.18} parent=0 // pred_check_branch
    %14 = sbr.rel (0) target = $region13
  $region12: #{ast_forward.18} parent=0 // pred_region
    _
  $region13: #{ast_forward.18} parent=0 // pred_fallthru
    _
  // Predicated region
  $region14: #{ast_forward.18} parent=0 // pred_check
    _
  $region15: #{ast_forward.18} parent=0 // pred_check_branch
    %16 = sbr.rel (0) target = $region17
  $region16: #{ast_forward.18} parent=0 // pred_region
    _
  $region17: #{ast_forward.18} parent=0 // pred_fallthru
    _
  %p18 = scmp.eq.s32.totalorder 0, 0
  // Predicated region
  $region18: #{ast_forward.18} parent=0 // pred_check
    %p19 = pneg %p18
  $region19: #{ast_forward.18} parent=0 // pred_check_branch
    %21 = sbr.rel (%p19) target = $region21
  $region20: #{ast_forward.18} parent=0 // pred_region
    %vm22 = vcmask 523264
    %23 = vst.msk [vmem:[#allocation2] sm:$0xff] %vm22, 0.0
    %24 = vst.msk [vmem:[#allocation2 + $0x8] sm:$0xff] %vm22, 0.0
    %vm25 = vcmask 519168
    %26 = vst.msk [vmem:[#allocation2 + $0x10] sm:$0xf] %vm25, 0.0
  $region21: #{ast_forward.18} parent=0 // pred_fallthru
    _
  %v27 = vld [vmem:[#allocation2] sm:$0xff]
  %v28 = vld [vmem:[#allocation2 + $0x8] sm:$0xff]
  %v29 = vld [vmem:[#allocation2 + $0x10] sm:$0xf]
  %v30 = vld [vmem:[%s0] sm:$0xff]
  %v31 = vld [vmem:[%s0 + $0x8] sm:$0xff]
  %v32 = vld [vmem:[%s0 + $0x10] sm:$0x33]
  %v33 = vld [vmem:[%s1] sm:$0xf]
  %v34 = vld [vmem:[%s1 + $0x4] sm:$0xf]
  %v35 = vld [vmem:[%s1 + $0x8] sm:$0xf]
  %v36 = vld [vmem:[%s1 + $0xc] sm:$0xf]
  %v37 = vld [vmem:[%s1 + $0x10] sm:$0xf]
  %v38 = vld [vmem:[%s1 + $0x14] sm:$0xf]
  %v39 = vld [vmem:[%s1 + $0x18] sm:$0xf]
  %v40 = vld [vmem:[%s1 + $0x1c] sm:$0xf]
  %v41 = vld [vmem:[%s1 + $0x20] sm:$0xf]
  %v42 = vld [vmem:[%s1 + $0x24] sm:$0xf]
  %v43 = vld [vmem:[%s1 + $0x28] sm:$0xf]
  %v44 = vld [vmem:[%s1 + $0x2c] sm:$0xf]
  %v45 = vld [vmem:[%s1 + $0x30] sm:$0xf]
  %v46 = vld [vmem:[%s1 + $0x34] sm:$0xf]
  %v47 = vld [vmem:[%s1 + $0x38] sm:$0xf]
  %v48 = vld [vmem:[%s1 + $0x3c] sm:$0xf]
  %v49 = vld [vmem:[%s1 + $0x40] sm:$0xf]
  %v50 = vld [vmem:[%s1 + $0x44] sm:$0xf]
  %v51 = vld [vmem:[%s1 + $0x48] sm:$0xf]
  %v52 = vld [vmem:[%s1 + $0x4c] sm:$0xf]
  %v53 = vld [vmem:[%s1 + $0x50] sm:$0xf]
  %v54 = vld [vmem:[%s1 + $0x54] sm:$0xf]
  %v55 = vld [vmem:[%s1 + $0x58] sm:$0xf]
  %v56 = vld [vmem:[%s1 + $0x5c] sm:$0xf]
  %v57 = vld [vmem:[%s1 + $0x60] sm:$0xf]
  %v58 = vld [vmem:[%s1 + $0x64] sm:$0xf]
  %v59 = vld [vmem:[%s1 + $0x68] sm:$0xf]
  %v60 = vld [vmem:[%s1 + $0x6c] sm:$0xf]
  %v61 = vld [vmem:[%s1 + $0x70] sm:$0xf]
  %v62 = vld [vmem:[%s1 + $0x74] sm:$0xf]
  %v63 = vld [vmem:[%s1 + $0x78] sm:$0xf]
  %v64 = vld [vmem:[%s1 + $0x7c] sm:$0xf]
  %v68 = vunpack.c.l.b16 %v30
  %v69 = vunpack.c.h.b16 %v30
  %v70 = vunpack.c.l.b16 %v31
  %v71 = vunpack.c.h.b16 %v31
  %v72 = vunpack.c.l.b16 %v32
  %v73 = vunpack.c.h.b16 %v32
  %v74 = vpack.c.b16 %v70, %v68
  %v75 = vpack.c.b16 %v71, %v69
  %v76 = vpack.c.b16 %v72, %v72
  %v77 = vpack.c.b16 %v73, %v73
  %v114 = vunpack.c.l.b16 %v33
  %v115 = vunpack.c.l.b16 %v34
  %v116 = vunpack.c.l.b16 %v35
  %v117 = vunpack.c.l.b16 %v36
  %v118 = vunpack.c.l.b16 %v37
  %v119 = vunpack.c.l.b16 %v38
  %v120 = vunpack.c.l.b16 %v39
  %v121 = vunpack.c.l.b16 %v40
  %v122 = vunpack.c.l.b16 %v41
  %v123 = vunpack.c.l.b16 %v42
  %v124 = vunpack.c.l.b16 %v43
  %v125 = vunpack.c.l.b16 %v44
  %v126 = vunpack.c.l.b16 %v45
  %v127 = vunpack.c.l.b16 %v46
  %v128 = vunpack.c.l.b16 %v47
  %v129 = vunpack.c.l.b16 %v48
  %v130 = vunpack.c.l.b16 %v49
  %v131 = vunpack.c.l.b16 %v50
  %v132 = vunpack.c.l.b16 %v51
  %v133 = vunpack.c.l.b16 %v52
  %v134 = vunpack.c.l.b16 %v53
  %v135 = vunpack.c.l.b16 %v54
  %v136 = vunpack.c.l.b16 %v55
  %v137 = vunpack.c.l.b16 %v56
  %v138 = vunpack.c.l.b16 %v57
  %v139 = vunpack.c.l.b16 %v58
  %v140 = vunpack.c.l.b16 %v59
  %v141 = vunpack.c.l.b16 %v60
  %v142 = vunpack.c.l.b16 %v61
  %v143 = vunpack.c.l.b16 %v62
  %v144 = vunpack.c.l.b16 %v63
  %v145 = vunpack.c.l.b16 %v64
  %v146 = vpack.c.b16 %v115, %v114
  %v147 = vpack.c.b16 %v117, %v116
  %v148 = vpack.c.b16 %v119, %v118
  %v149 = vpack.c.b16 %v121, %v120
  %v150 = vpack.c.b16 %v123, %v122
  %v151 = vpack.c.b16 %v125, %v124
  %v152 = vpack.c.b16 %v127, %v126
  %v153 = vpack.c.b16 %v129, %v128
  %v154 = vpack.c.b16 %v131, %v130
  %v155 = vpack.c.b16 %v133, %v132
  %v156 = vpack.c.b16 %v135, %v134
  %v157 = vpack.c.b16 %v137, %v136
  %v158 = vpack.c.b16 %v139, %v138
  %v159 = vpack.c.b16 %v141, %v140
  %v160 = vpack.c.b16 %v143, %v142
  %v161 = vpack.c.b16 %v145, %v144
  %178 = vmatprep.subr.bf16.mxu0 0
  %179 = vmatpush1.bf16.msra.mxu0 %v146
  %180 = vmatprep.subr.bf16.mxu0 0
  %181 = vmatpush1.bf16.msra.mxu0 %v147
  %182 = vmatprep.subr.bf16.mxu0 0
  %183 = vmatpush1.bf16.msra.mxu0 %v148
  %184 = vmatprep.subr.bf16.mxu0 0
  %185 = vmatpush1.bf16.msra.mxu0 %v149
  %186 = vmatprep.subr.bf16.mxu0 0
  %187 = vmatpush1.bf16.msra.mxu0 %v150
  %188 = vmatprep.subr.bf16.mxu0 0
  %189 = vmatpush1.bf16.msra.mxu0 %v151
  %190 = vmatprep.subr.bf16.mxu0 0
  %191 = vmatpush1.bf16.msra.mxu0 %v152
  %192 = vmatprep.subr.bf16.mxu0 0
  %193 = vmatpush1.bf16.msra.mxu0 %v153
  %194 = vmatprep.subr.bf16.mxu0 0
  %195 = vmatpush1.bf16.msra.mxu0 %v154
  %196 = vmatprep.subr.bf16.mxu0 0
  %197 = vmatpush1.bf16.msra.mxu0 %v155
  %198 = vmatprep.subr.bf16.mxu0 0
  %199 = vmatpush1.bf16.msra.mxu0 %v156
  %200 = vmatprep.subr.bf16.mxu0 0
  %201 = vmatpush1.bf16.msra.mxu0 %v157
  %202 = vmatprep.subr.bf16.mxu0 0
  %203 = vmatpush1.bf16.msra.mxu0 %v158
  %204 = vmatprep.subr.bf16.mxu0 0
  %205 = vmatpush1.bf16.msra.mxu0 %v159
  %206 = vmatprep.subr.bf16.mxu0 0
  %207 = vmatpush1.bf16.msra.mxu0 %v160
  %208 = vmatprep.subr.bf16.mxu0 0
  %209 = vmatpush1.bf16.msra.mxu0 %v161
  %210 = vmatprep.mubr.bf16.mxu0 %v75
  %211 = vmatmul.mubr.bf16.gmra.mrb[0].mxu0 %v74
  %v212 = vpop.f32.mrb[0].mxu0
  %v213 = vadd.f32 0.0, %v212
  %v214 = vpop.f32.mrb[0].mxu0
  %v215 = vpop.f32.mrb[0].mxu0
  %v216 = vadd.f32 0.0, %v215
  %v217 = vpop.f32.mrb[0].mxu0
  %218 = vmatprep.mubr.bf16.mxu0 %v77
  %219 = vmatmul.mubr.bf16.gmra.mrb[0].mxu0 %v76
  %v220 = vpop.f32.mrb[0].mxu0
  %v221 = vadd.f32 0.0, %v220
  %v222 = vpop.f32.mrb[0].mxu0
  %v223 = vpop.f32.mrb[0].mxu0
  %v224 = vpop.f32.mrb[0].mxu0
  %225 = vdwg.mxu0
  %v226 = vadd.f32 %v27, %v213
  %v227 = vadd.f32 %v28, %v216
  %v228 = vadd.f32 %v29, %v221
  %vm229 = vcmask 523264
  %230 = vst.msk [vmem:[#allocation2] sm:$0xff] %vm229, %v226
  %231 = vst.msk [vmem:[#allocation2 + $0x8] sm:$0xff] %vm229, %v227
  %vm232 = vcmask 519168
  %233 = vst.msk [vmem:[#allocation2 + $0x10] sm:$0xf] %vm232, %v228
  // Predicated region
  $region22: #{ast_forward.18} parent=0 // pred_check
    %p234 = pneg %p18
  $region23: #{ast_forward.18} parent=0 // pred_check_branch
    %236 = sbr.rel (%p234) target = $region25
  $region24: #{ast_forward.18} parent=0 // pred_region
    %v237 = vld [vmem:[#allocation2] sm:$0xff]
    %v238 = vld [vmem:[#allocation2 + $0x8] sm:$0xff]
    %v239 = vld [vmem:[#allocation2 + $0x10] sm:$0xf]
    %v240 = vld [vmem:[%s2] sm:$0x1]
    %v242 = vlaneseq
    %v243 = vshrl.u32 %v242, 7
    %v244 = vsub.s32 0, %v243
    %v245 = vrot.slane %v240, %v244
    %v247 = vadd.f32 %v237, %v245
    %v248 = vadd.f32 %v238, %v245
    %v249 = vadd.f32 %v239, %v245
    %v250 = vld [vmem:[%s3] sm:$0xf]
    %v251 = vld [vmem:[%s3 + $0x4] sm:$0xf]
    %v252 = vld [vmem:[%s3 + $0x8] sm:$0x3]
    %v253 = vunpack.c.l.bf16 %v250
    %v254 = vunpack.c.l.bf16 %v251
    %v255 = vunpack.c.l.bf16 %v252
    %v256 = vadd.f32 %v247, %v253
    %v257 = vadd.f32 %v248, %v254
    %v258 = vadd.f32 %v249, %v255
    %v259 = vpack.c.bf16 %v257, %v256
    %v260 = vpack.c.bf16 %v258, %v258
    %v263 = vunpack.c.l.b16 %v259
    %v264 = vunpack.c.h.b16 %v259
    %v265 = vunpack.c.l.b16 %v260
    %v266 = vpack.c.b16 %v263, %v263
    %v267 = vpack.c.b16 %v264, %v264
    %v268 = vpack.c.b16 %v265, %v265
    %272 = vst.msk [vmem:[%s4] sm:$0xf] %vm232, %v266
    %273 = vst.msk [vmem:[%s4 + $0x4] sm:$0xf] %vm232, %v267
    %vm274 = vcmask 517120
    %275 = vst.msk [vmem:[%s4 + $0x8] sm:$0x3] %vm274, %v268
  $region25: #{ast_forward.18} parent=0 // pred_fallthru
    _
  // Predicated region
  $region26: #{ast_forward.18} parent=0 // pred_check
    _
  $region27: #{ast_forward.18} parent=0 // pred_check_branch
    %277 = sbr.rel (0) target = $region29
  $region28: #{ast_forward.18} parent=0 // pred_region
    _
  $region29: #{ast_forward.18} parent=0 // pred_fallthru
    _
  // Predicated region
  $region30: #{ast_forward.18} parent=0 // pred_check
    _
  $region31: #{ast_forward.18} parent=0 // pred_check_branch
    %279 = sbr.rel (0) target = $region33
  $region32: #{ast_forward.18} parent=0 // pred_region
    _
  $region33: #{ast_forward.18} parent=0 // pred_fallthru
    _

// kernel: ast_forward.25
$region0: #{ast_forward.25}
  #allocation0 [shape = 'u32[]', space=smem, size = 0x4, offset = 0x4, fixed_abs, tag = 'smem constant byte address 0x4 - core index']
  #allocation1 [shape = 'u32[144,128]{1,0:T(1,128)}', space=vmem, size = 0x12000, scoped, tag = 'internal scratch']
  #allocation2 [shape = 'bf16[2,64]{1,0:T(2,128)(2,1)}', space=vmem, size = 0x200, scoped, tag = 'scratch operand']
  %s0 = inlined_call_operand.vmem [shape: f32[2,64], index: 0, kind: input, shape index: {}]
  %s1 = inlined_call_operand.vmem [shape: f32[1,64], index: 1, kind: input, shape index: {}]
  %s2 = inlined_call_operand.vmem [shape: f32[1,64], index: 2, kind: input, shape index: {}]
  %s3 = inlined_call_operand.vmem [shape: bf16[64,8], index: 3, kind: input, shape index: {}]
  %s4 = inlined_call_operand.vmem [shape: f32[1,8], index: 4, kind: input, shape index: {}]
  %s5 = inlined_call_operand.hbm [shape: f32[2,8], index: 5, kind: output, shape index: {}]
  %s6 = sld [smem:[#allocation0]]
  $region34: #{ast_forward.25} parent=0
    _
  %s8 = ssub.s32 1, %s6
  %s9 = scalar_select 0, %s8, %s6
  $region1: #{ast_forward.25} parent=0
    #allocation3 [shape = 'u8[1024]{0}', space=vmem, size = 0x400, scoped, tag = 'output window, operand 0, single buffered']
    #allocation4 [shape = 's32[1]{0}', space=sflag, size = 0x4, scoped, tag = 'scoped memory for ast_forward.25']
    %10 = vsyncpa [#allocation4], 0
    // Predicated region
    $region2: #{ast_forward.25} parent=1 // pred_check
      _
    $region3: #{ast_forward.25} parent=1 // pred_check_branch
      %12 = sbr.rel (0) target = $region5
    $region4: #{ast_forward.25} parent=1 // pred_region
      _
    $region5: #{ast_forward.25} parent=1 // pred_fallthru
      _
    // Predicated region
    $region6: #{ast_forward.25} parent=1 // pred_check
      _
    $region7: #{ast_forward.25} parent=1 // pred_check_branch
      %14 = sbr.rel (0) target = $region9
    $region8: #{ast_forward.25} parent=1 // pred_region
      _
    $region9: #{ast_forward.25} parent=1 // pred_fallthru
      _
    // Predicated region
    $region10: #{ast_forward.25} parent=1 // pred_check
      _
    $region11: #{ast_forward.25} parent=1 // pred_check_branch
      %16 = sbr.rel (0) target = $region13
    $region12: #{ast_forward.25} parent=1 // pred_region
      _
    $region13: #{ast_forward.25} parent=1 // pred_fallthru
      _
    // Predicated region
    $region14: #{ast_forward.25} parent=1 // pred_check
      _
    $region15: #{ast_forward.25} parent=1 // pred_check_branch
      %18 = sbr.rel (0) target = $region17
    $region16: #{ast_forward.25} parent=1 // pred_region
      _
    $region17: #{ast_forward.25} parent=1 // pred_fallthru
      _
    // Predicated region
    $region18: #{ast_forward.25} parent=1 // pred_check
      _
    $region19: #{ast_forward.25} parent=1 // pred_check_branch
      %20 = sbr.rel (0) target = $region21
    $region20: #{ast_forward.25} parent=1 // pred_region
      _
    $region21: #{ast_forward.25} parent=1 // pred_fallthru
      _
    %p22 = scmp.eq.s32.totalorder 0, 0
    // Predicated region
    $region22: #{ast_forward.25} parent=1 // pred_check
      %p23 = pneg %p22
    $region23: #{ast_forward.25} parent=1 // pred_check_branch
      %25 = sbr.rel (%p23) target = $region25
    $region24: #{ast_forward.25} parent=1 // pred_region
      %v26 = vld [vmem:[%s0] sm:$0x3]
      %vm27 = vcmask 517120
      %v28 = vsel %vm27, %v26, 0.0
      %29 = vadd.xlane.f32.xlu0 %v28
      %v30 = vpop.xlane.xlu0 %29
      %v31 = vrcp.pop 64.0
      %v32 = vmul.f32 %v30, %v31
      %v33 = vsub.f32 %v26, %v32
      %v34 = vmul.f32 %v33, %v33
      %v35 = vsel %vm27, %v34, 0.0
      %36 = vadd.xlane.f32.xlu0 %v35
      %v37 = vpop.xlane.xlu0 %36
      %v38 = vmul.f32 %v37, %v31
      %v39 = vadd.f32 %v38, 1e-05
      %v40 = vrsqrt.pop %v39
      %v41 = vmul.f32 %v33, %v40
      %v42 = vld [vmem:[%s1] sm:$0x1]
      %v44 = vlaneseq
      %v45 = vshrl.u32 %v44, 7
      %v46 = vsub.s32 0, %v45
      %v47 = vrot.slane %v42, %v46
      %v49 = vmul.f32 %v41, %v47
      %v50 = vld [vmem:[%s2] sm:$0x1]
      %v52 = vlaneseq
      %v53 = vshrl.u32 %v52, 7
      %v54 = vsub.s32 0, %v53
      %v55 = vrot.slane %v50, %v54
      %v57 = vadd.f32 %v49, %v55
      %v58 = vpack.c.bf16 %v57, %v57
      %vm59 = vcmask 516096
      %60 = vst.msk [vmem:[#allocation2] sm:$0x1] %vm59, %v58
    $region25: #{ast_forward.25} parent=1 // pred_fallthru
      _
    %v61 = vld [vmem:[#allocation2] sm:$0x1]
    %v62 = vld [vmem:[%s3] sm:$0xf]
    %v63 = vld [vmem:[%s3 + $0x4] sm:$0xf]
    %v64 = vld [vmem:[%s3 + $0x8] sm:$0xf]
    %v65 = vld [vmem:[%s3 + $0xc] sm:$0xf]
    %v66 = vld [vmem:[%s3 + $0x10] sm:$0xf]
    %v67 = vld [vmem:[%s3 + $0x14] sm:$0xf]
    %v68 = vld [vmem:[%s3 + $0x18] sm:$0xf]
    %v69 = vld [vmem:[%s3 + $0x1c] sm:$0xf]
    %v70 = vld [vmem:[%s4] sm:$0x1]
    %v72 = vlaneseq
    %v73 = vshrl.u32 %v72, 7
    %v74 = vsub.s32 0, %v73
    %v75 = vrot.slane %v70, %v74
    %v85 = vunpack.c.l.b16 %v62
    %v86 = vunpack.c.l.b16 %v63
    %v87 = vunpack.c.l.b16 %v64
    %v88 = vunpack.c.l.b16 %v65
    %v89 = vunpack.c.l.b16 %v66
    %v90 = vunpack.c.l.b16 %v67
    %v91 = vunpack.c.l.b16 %v68
    %v92 = vunpack.c.l.b16 %v69
    %v93 = vpack.c.b16 %v86, %v85
    %v94 = vpack.c.b16 %v88, %v87
    %v95 = vpack.c.b16 %v90, %v89
    %v96 = vpack.c.b16 %v92, %v91
    %vm101 = vcmask 523264
    %v103 = vsel %vm101, %v61, 0
    %105 = vmatprep.subr.bf16.mxu0 0
    %106 = vmatpush1.bf16.msra.mxu0 %v93
    %107 = vmatprep.subr.bf16.mxu0 0
    %108 = vmatpush1.bf16.msra.mxu0 %v94
    %109 = vmatprep.subr.bf16.mxu0 0
    %110 = vmatpush1.bf16.msra.mxu0 %v95
    %111 = vmatprep.subr.bf16.mxu0 0
    %112 = vmatpush1.bf16.msra.mxu0 %v96
    %113 = vmatprep.subr.bf16.mxu0 0
    %114 = vmatpush1.bf16.msra.mxu0 0
    %115 = vmatprep.subr.bf16.mxu0 0
    %116 = vmatpush1.bf16.msra.mxu0 0
    %117 = vmatprep.subr.bf16.mxu0 0
    %118 = vmatpush1.bf16.msra.mxu0 0
    %119 = vmatprep.subr.bf16.mxu0 0
    %120 = vmatpush1.bf16.msra.mxu0 0
    %121 = vmatprep.subr.bf16.mxu0 0
    %122 = vmatpush1.bf16.msra.mxu0 0
    %123 = vmatprep.subr.bf16.mxu0 0
    %124 = vmatpush1.bf16.msra.mxu0 0
    %125 = vmatprep.subr.bf16.mxu0 0
    %126 = vmatpush1.bf16.msra.mxu0 0
    %127 = vmatprep.subr.bf16.mxu0 0
    %128 = vmatpush1.bf16.msra.mxu0 0
    %129 = vmatprep.subr.bf16.mxu0 0
    %130 = vmatpush1.bf16.msra.mxu0 0
    %131 = vmatprep.subr.bf16.mxu0 0
    %132 = vmatpush1.bf16.msra.mxu0 0
    %133 = vmatprep.subr.bf16.mxu0 0
    %134 = vmatpush1.bf16.msra.mxu0 0
    %135 = vmatprep.subr.bf16.mxu0 0
    %136 = vmatpush1.bf16.msra.mxu0 0
    %137 = vmatprep.mubr.bf16.mxu0 0
    %138 = vmatmul.mubr.bf16.gmra.mrb[0].mxu0 %v103
    %v139 = vpop.f32.mrb[0].mxu0
    %v140 = vadd.f32 %v75, %v139
    %v141 = vpop.f32.mrb[0].mxu0
    %v142 = vpop.f32.mrb[0].mxu0
    %v143 = vpop.f32.mrb[0].mxu0
    %144 = vdwg.mxu0
    %vm145 = vcmask 58368
    %146 = vst.msk [vmem:[#allocation3] sm:$0x3] %vm145, %v140
    // Predicated region
    $region26: #{ast_forward.25} parent=1 // pred_check
      _
    $region27: #{ast_forward.25} parent=1 // pred_check_branch
      %148 = sbr.rel (0) target = $region29
    $region28: #{ast_forward.25} parent=1 // pred_region
      %s150 = ssub.s32 32, 32
      %151 = vsyncadd [#allocation4], %s150
      %s153 = sshll.u32 [#allocation3], 4
      %s154 = int_to_ptr.vmem [resolvable:$true] %s153
      %156 = dma.vmem_to_hbm [thread:$0]  %s154, 32, %s5, [#allocation4]
    $region29: #{ast_forward.25} parent=1 // pred_fallthru
      _
    // Predicated region
    $region30: #{ast_forward.25} parent=1 // pred_check
      _
    $region31: #{ast_forward.25} parent=1 // pred_check_branch
      %158 = sbr.rel (0) target = $region33
    $region32: #{ast_forward.25} parent=1 // pred_region
      %159 = dma.done [#allocation4], 32
    $region33: #{ast_forward.25} parent=1 // pred_fallthru
      _
    %160 = vsyncpa [#allocation4], 1

</llo_original>
